<compile_context>
chip_gen: v7x
topology: tpu7x:2x2x1
jax: 0.10.0
libtpu: 0.0.40
codegen_flags: <defaults>
</compile_context>

<pallas_src>
import functools

import jax
import jax.numpy as jnp
from jax import lax
from jax.experimental import pallas as pl
from jax.experimental.pallas import tpu as pltpu


def _se_basic_block_kernel(x_ref, w1_ref, w2_ref, b1_ref, b2_ref,
                           wfc1_ref, wfc2_ref, mask_ref, pool_ref, bcast_ref,
                           out_ref, stage_ref, patch_ref,
                           *, c, width, lanes, pad, n_imgs):
    """One lane tile (= n_imgs whole images): conv-bn-relu-conv-bn-SE-add-relu."""
    # Zero the lane-padding strips once; the interior is rewritten per conv and
    # every out-of-image tap is masked, so pad contents only need to be finite.
    stage_ref[:, 0:pad] = jnp.zeros((c, pad), jnp.float32)
    stage_ref[:, pad + lanes:2 * pad + lanes] = jnp.zeros((c, pad), jnp.float32)

    def conv_bn(act, w_ref, b_ref):
        """3x3 SAME conv + folded-BN bias as a single K=9*C MXU matmul."""
        stage_ref[:, pad:pad + lanes] = act                      # aligned store
        t, m = 0, 0
        for kh in range(3):
            for kw in range(3):
                d = (kh - 1) * width + (kw - 1)
                if d == 0:
                    patch_ref[t * c:(t + 1) * c, :] = act        # center tap
                else:
                    raw = stage_ref[:, pad + d:pad + d + lanes]  # (C, L_t)
                    patch_ref[t * c:(t + 1) * c, :] = raw * mask_ref[m:m + 1, :]
                    m += 1
                t += 1
        return jnp.dot(w_ref[...], patch_ref[...],
                       preferred_element_type=jnp.float32) + b_ref[...]

    x = x_ref[...]                                               # (C, L_t)
    h1 = jnp.maximum(conv_bn(x, w1_ref, b1_ref), 0.0)            # conv1+bn1+relu
    h2 = conv_bn(h1, w2_ref, b2_ref)                             # conv2+bn2

    # ---- SE: per-image pool -> FC+relu -> FC+sigmoid -> gate, all lane-dense ----
    pooled = jnp.dot(h2, pool_ref[...],
                     preferred_element_type=jnp.float32)         # (C, n_imgs)
    y = jnp.maximum(jnp.dot(wfc1_ref[...], pooled,
                            preferred_element_type=jnp.float32), 0.0)
    gate = jax.nn.sigmoid(jnp.dot(wfc2_ref[...], y,
                                  preferred_element_type=jnp.float32))  # (C, n_imgs)
    if n_imgs == 1:
        gate_b = gate                                            # (C,1) lane-bcast
    else:
        gate_b = jnp.dot(gate, bcast_ref[...],
                         preferred_element_type=jnp.float32)     # (C, L_t)

    # ---- residual (identity downsample) + final relu; lane-dense store ----------
    out_ref[...] = jnp.maximum(h2 * gate_b + x, 0.0).astype(out_ref.dtype)


@functools.partial(jax.jit, static_argnames=("eps", "tile_imgs"))
def cifar_se_basic_block(x, w1, w2, gamma1, beta1, mean1, var1,
                         gamma2, beta2, mean2, var2, wfc1, wfc2,
                         eps=1e-5, tile_imgs=None):
    """x: (N, C, H, W) NCHW. w1, w2: OIHW (Cout, Cin, 3, 3). wfc1: (hidden, C),
    wfc2: (C, hidden) -- PyTorch nn.Linear weights (no bias).
    Identity-downsample configuration only (inplanes == planes, stride == 1)."""
    N, Cin, H, W = x.shape
    C = w1.shape[0]
    assert Cin == C and w1.shape[2:] == (3, 3), "identity-downsample path only"
    hidden = wfc1.shape[0]
    HW = H * W
    L = N * HW
    PAD = 128          # lane padding so every shifted tap is an in-bounds load

    # Lane-axis tiling: whole images per tile so SE pooling and boundary masks
    # stay tile-local; target a few thousand lanes per tile.
    if tile_imgs is None:
        tile_imgs = max(1, min(N, 4096 // HW))
    while N % tile_imgs:
        tile_imgs -= 1
    Lt = tile_imgs * HW
    num_tiles = N // tile_imgs

    # ---- layout plumbing (host-side, no compute hoisted) ------------------------
    # activations -> (C, N*H*W): channels on sublanes, batch*spatial on lanes.
    x_flat = jnp.transpose(x, (1, 0, 2, 3)).reshape(C, L)

    # Fold BN (inference) into conv weights (per-output-channel scale) + bias;
    # flatten weights to (C, 9*Cin) in im2col tap order (kh, kw, c_in).
    s1 = gamma1 / jnp.sqrt(var1 + eps)
    s2 = gamma2 / jnp.sqrt(var2 + eps)
    b1 = (beta1 - mean1 * s1).reshape(C, 1)
    b2 = (beta2 - mean2 * s2).reshape(C, 1)
    w1_flat = jnp.transpose(w1 * s1[:, None, None, None],
                            (0, 2, 3, 1)).reshape(C, 9 * C)
    w2_flat = jnp.transpose(w2 * s2[:, None, None, None],
                            (0, 2, 3, 1)).reshape(C, 9 * C)

    # Per-tile constants: 8 tap-validity masks, pooling / broadcast matrices.
    idx = jnp.arange(Lt, dtype=jnp.int32)
    hh = (idx // W) % H
    ww = idx % W
    masks = []
    for kh in range(3):
        for kw in range(3):
            dh, dw = kh - 1, kw - 1
            if dh == 0 and dw == 0:
                continue
            valid = ((hh + dh >= 0) & (hh + dh < H) &
                     (ww + dw >= 0) & (ww + dw < W))
            masks.append(valid.astype(jnp.float32))
    mask_arr = jnp.stack(masks, axis=0)                          # (8, Lt)
    img_id = idx // HW
    ind = (img_id[:, None] ==
           jnp.arange(tile_imgs, dtype=jnp.int32)[None, :]).astype(jnp.float32)
    pool_mat = ind / HW                                          # (Lt, tile_imgs)
    bcast_mat = ind.T                                            # (tile_imgs, Lt)

    kernel = functools.partial(_se_basic_block_kernel,
                               c=C, width=W, lanes=Lt, pad=PAD, n_imgs=tile_imgs)
    const = lambda i: (0, 0)

    cost = pl.CostEstimate(
        flops=int(2 * 2 * C * 9 * C * L            # two im2col conv matmuls
                  + 2 * C * L * (1 + tile_imgs)    # SE pool + gate broadcast
                  + 4 * hidden * C * N             # SE FCs
                  + 8 * C * L),                    # elementwise epilogues
        transcendentals=int(C * N),
        bytes_accessed=int(4 * (2 * C * L + 2 * 9 * C * C + 8 * Lt
                                + 2 * Lt * tile_imgs)))

    out_flat = pl.pallas_call(
        kernel,
        out_shape=jax.ShapeDtypeStruct((C, L), jnp.float32),
        grid_spec=pltpu.PrefetchScalarGridSpec(
            num_scalar_prefetch=0,
            grid=(num_tiles,),
            in_specs=[
                pl.BlockSpec((C, Lt), lambda i: (0, i)),         # x tile (+residual)
                pl.BlockSpec((C, 9 * C), const),                 # conv1 w (BN folded)
                pl.BlockSpec((C, 9 * C), const),                 # conv2 w (BN folded)
                pl.BlockSpec((C, 1), const),                     # bn1 bias
                pl.BlockSpec((C, 1), const),                     # bn2 bias
                pl.BlockSpec((hidden, C), const),                # SE fc1
                pl.BlockSpec((C, hidden), const),                # SE fc2
                pl.BlockSpec((8, Lt), const),                    # tap masks
                pl.BlockSpec((Lt, tile_imgs), const),            # pool matrix
                pl.BlockSpec((tile_imgs, Lt), const),            # bcast matrix
            ],
            out_specs=pl.BlockSpec((C, Lt), lambda i: (0, i)),
            scratch_shapes=[
                pltpu.VMEM((C, 2 * PAD + Lt), jnp.float32),      # padded staging
                pltpu.VMEM((9 * C, Lt), jnp.float32),            # im2col patches
            ]),
        compiler_params=pltpu.CompilerParams(
            dimension_semantics=("parallel",)),
        cost_estimate=cost,
    )(x_flat, w1_flat, w2_flat, b1, b2, wfc1, wfc2,
      mask_arr, pool_mat, bcast_mat)

    return jnp.transpose(out_flat.reshape(C, N, H, W), (1, 0, 2, 3))


if __name__ == "__main__":
    N, H, W = 2, 16, 16
    inplanes = planes = 16
    reduction = 4
    hidden = planes // reduction
    eps = 1e-5

    keys = jax.random.split(jax.random.PRNGKey(0), 13)
    x = jax.random.normal(keys[0], (N, inplanes, H, W), jnp.float32)

    # conv weights (OIHW, PyTorch layout)
    w1 = jax.random.normal(keys[1], (planes, inplanes, 3, 3), jnp.float32) * 0.1
    w2 = jax.random.normal(keys[2], (planes, planes, 3, 3), jnp.float32) * 0.1

    # BatchNorm parameters (inference mode)
    gamma1 = 1.0 + 0.1 * jax.random.normal(keys[3], (planes,), jnp.float32)
    beta1 = 0.1 * jax.random.normal(keys[4], (planes,), jnp.float32)
    mean1 = 0.1 * jax.random.normal(keys[5], (planes,), jnp.float32)
    var1 = 1.0 + 0.1 * jnp.abs(jax.random.normal(keys[6], (planes,), jnp.float32))
    gamma2 = 1.0 + 0.1 * jax.random.normal(keys[7], (planes,), jnp.float32)
    beta2 = 0.1 * jax.random.normal(keys[8], (planes,), jnp.float32)
    mean2 = 0.1 * jax.random.normal(keys[9], (planes,), jnp.float32)
    var2 = 1.0 + 0.1 * jnp.abs(jax.random.normal(keys[10], (planes,), jnp.float32))

    # SE FC weights in PyTorch nn.Linear layout (out, in), no bias
    wfc1 = jax.random.normal(keys[11], (hidden, planes), jnp.float32) * 0.2
    wfc2 = jax.random.normal(keys[12], (planes, hidden), jnp.float32) * 0.2

    args = (x, w1, w2, gamma1, beta1, mean1, var1,
            gamma2, beta2, mean2, var2, wfc1, wfc2)

    out = jax.block_until_ready(cifar_se_basic_block(*args, eps=eps))
    # also exercise the multi-tile (grid > 1) path: one image per lane tile
    out_tiled = jax.block_until_ready(
        cifar_se_basic_block(*args, eps=eps, tile_imgs=1))

    # pure-JAX NCHW reference
    def conv_ref(a, w):
        return lax.conv_general_dilated(a, w, (1, 1), 'SAME',
                                        dimension_numbers=('NCHW', 'OIHW', 'NCHW'))

    s1 = gamma1 / jnp.sqrt(var1 + eps); rb1 = beta1 - mean1 * s1
    s2 = gamma2 / jnp.sqrt(var2 + eps); rb2 = beta2 - mean2 * s2
    ref = jnp.maximum(conv_ref(x, w1) * s1[None, :, None, None]
                      + rb1[None, :, None, None], 0.0)
    ref = conv_ref(ref, w2) * s2[None, :, None, None] + rb2[None, :, None, None]
    pooled = ref.mean(axis=(2, 3))                                   # (N, C)
    yv = jax.nn.sigmoid(jnp.maximum(pooled @ wfc1.T, 0.0) @ wfc2.T)  # (N, C)
    ref = jnp.maximum(ref * yv[:, :, None, None] + x, 0.0)

    assert out.shape == (N, planes, H, W)
    assert jnp.allclose(out, ref, atol=1e-4, rtol=1e-4), "mismatch vs JAX reference"
    assert jnp.allclose(out_tiled, ref, atol=1e-4, rtol=1e-4), "mismatch (tiled path)"
    print("KERNEL_OK")
</pallas_src>

<mosaic_0001>
module attributes {stable_mosaic.version = 11 : i64} {
  func.func @_se_basic_block_kernel(%arg0: i32, %arg1: memref<16x512xf32, #tpu.memory_space<vmem>>, %arg2: memref<16x144xf32, #tpu.memory_space<vmem>>, %arg3: memref<16x144xf32, #tpu.memory_space<vmem>>, %arg4: memref<16x1xf32, #tpu.memory_space<vmem>>, %arg5: memref<16x1xf32, #tpu.memory_space<vmem>>, %arg6: memref<4x16xf32, #tpu.memory_space<vmem>>, %arg7: memref<16x4xf32, #tpu.memory_space<vmem>>, %arg8: memref<8x512xf32, #tpu.memory_space<vmem>>, %arg9: memref<512x2xf32, #tpu.memory_space<vmem>>, %arg10: memref<2x512xf32, #tpu.memory_space<vmem>>, %arg11: memref<16x512xf32, #tpu.memory_space<vmem>>, %arg12: memref<16x768xf32, #tpu.memory_space<vmem>>, %arg13: memref<144x512xf32, #tpu.memory_space<vmem>>) attributes {dimension_semantics = [#tpu.dimension_semantics<parallel>], iteration_bounds = array<i64: 1>, scalar_prefetch = 0 : i64, scratch_operands = 2 : i64, tpu.core_type = #tpu.core_type<tc>, window_params = [{transform_indices = @transform_0, window_bounds = array<i64: 16, 512>}, {pipeline_mode = #tpu.pipeline_mode<synchronous>, transform_indices = @transform_1, window_bounds = array<i64: 16, 144>}, {pipeline_mode = #tpu.pipeline_mode<synchronous>, transform_indices = @transform_2, window_bounds = array<i64: 16, 144>}, {pipeline_mode = #tpu.pipeline_mode<synchronous>, transform_indices = @transform_3, window_bounds = array<i64: 16, 1>}, {pipeline_mode = #tpu.pipeline_mode<synchronous>, transform_indices = @transform_4, window_bounds = array<i64: 16, 1>}, {pipeline_mode = #tpu.pipeline_mode<synchronous>, transform_indices = @transform_5, window_bounds = array<i64: 4, 16>}, {pipeline_mode = #tpu.pipeline_mode<synchronous>, transform_indices = @transform_6, window_bounds = array<i64: 16, 4>}, {pipeline_mode = #tpu.pipeline_mode<synchronous>, transform_indices = @transform_7, window_bounds = array<i64: 8, 512>}, {pipeline_mode = #tpu.pipeline_mode<synchronous>, transform_indices = @transform_8, window_bounds = array<i64: 512, 2>}, {pipeline_mode = #tpu.pipeline_mode<synchronous>, transform_indices = @transform_9, window_bounds = array<i64: 2, 512>}, {transform_indices = @transform_10, window_bounds = array<i64: 16, 512>}]} {
    %cst = arith.constant 0.000000e+00 : f32
    %0 = vector.broadcast %cst : f32 to vector<16x128xf32>
    %c0 = arith.constant 0 : index
    %c0_0 = arith.constant 0 : index
    %1 = vector.load %arg12[%c0, %c0_0] : memref<16x768xf32, #tpu.memory_space<vmem>>, vector<16x128xf32>
    tpu.vector_store %arg12[%c0, %c0_0], %0 {strides = array<i32>} : memref<16x768xf32, #tpu.memory_space<vmem>>, vector<16x128xf32>,
    %cst_1 = arith.constant 0.000000e+00 : f32
    %2 = vector.broadcast %cst_1 : f32 to vector<16x128xf32>
    %c0_2 = arith.constant 0 : index
    %c640 = arith.constant 640 : index
    %3 = vector.load %arg12[%c0_2, %c640] : memref<16x768xf32, #tpu.memory_space<vmem>>, vector<16x128xf32>
    tpu.vector_store %arg12[%c0_2, %c640], %2 {strides = array<i32>} : memref<16x768xf32, #tpu.memory_space<vmem>>, vector<16x128xf32>,
    %c0_3 = arith.constant 0 : index
    %c0_4 = arith.constant 0 : index
    %4 = vector.load %arg1[%c0_3, %c0_4] : memref<16x512xf32, #tpu.memory_space<vmem>>, vector<16x512xf32>
    %c0_5 = arith.constant 0 : index
    %c128 = arith.constant 128 : index
    %5 = vector.load %arg12[%c0_5, %c128] : memref<16x768xf32, #tpu.memory_space<vmem>>, vector<16x512xf32>
    tpu.vector_store %arg12[%c0_5, %c128], %4 {strides = array<i32>} : memref<16x768xf32, #tpu.memory_space<vmem>>, vector<16x512xf32>,
    %c0_6 = arith.constant 0 : index
    %c111 = arith.constant 111 : index
    %6 = vector.load %arg12[%c0_6, %c111] : memref<16x768xf32, #tpu.memory_space<vmem>>, vector<16x512xf32>
    %c0_7 = arith.constant 0 : index
    %c0_8 = arith.constant 0 : index
    %7 = vector.load %arg8[%c0_7, %c0_8] : memref<8x512xf32, #tpu.memory_space<vmem>>, vector<1x512xf32>
    %8 = vector.broadcast %7 : vector<1x512xf32> to vector<16x512xf32>
    %9 = arith.mulf %6, %8 : vector<16x512xf32>
    %c0_9 = arith.constant 0 : index
    %c0_10 = arith.constant 0 : index
    %10 = vector.load %arg13[%c0_9, %c0_10] : memref<144x512xf32, #tpu.memory_space<vmem>>, vector<16x512xf32>
    tpu.vector_store %arg13[%c0_9, %c0_10], %9 {strides = array<i32>} : memref<144x512xf32, #tpu.memory_space<vmem>>, vector<16x512xf32>,
    %c0_11 = arith.constant 0 : index
    %c112 = arith.constant 112 : index
    %11 = vector.load %arg12[%c0_11, %c112] : memref<16x768xf32, #tpu.memory_space<vmem>>, vector<16x512xf32>
    %c1 = arith.constant 1 : index
    %c0_12 = arith.constant 0 : index
    %12 = vector.load %arg8[%c1, %c0_12] : memref<8x512xf32, #tpu.memory_space<vmem>>, vector<1x512xf32>
    %13 = vector.broadcast %12 : vector<1x512xf32> to vector<16x512xf32>
    %14 = arith.mulf %11, %13 : vector<16x512xf32>
    %c16 = arith.constant 16 : index
    %c0_13 = arith.constant 0 : index
    %15 = vector.load %arg13[%c16, %c0_13] : memref<144x512xf32, #tpu.memory_space<vmem>>, vector<16x512xf32>
    tpu.vector_store %arg13[%c16, %c0_13], %14 {strides = array<i32>} : memref<144x512xf32, #tpu.memory_space<vmem>>, vector<16x512xf32>,
    %c0_14 = arith.constant 0 : index
    %c113 = arith.constant 113 : index
    %16 = vector.load %arg12[%c0_14, %c113] : memref<16x768xf32, #tpu.memory_space<vmem>>, vector<16x512xf32>
    %c2 = arith.constant 2 : index
    %c0_15 = arith.constant 0 : index
    %17 = vector.load %arg8[%c2, %c0_15] : memref<8x512xf32, #tpu.memory_space<vmem>>, vector<1x512xf32>
    %18 = vector.broadcast %17 : vector<1x512xf32> to vector<16x512xf32>
    %19 = arith.mulf %16, %18 : vector<16x512xf32>
    %c32 = arith.constant 32 : index
    %c0_16 = arith.constant 0 : index
    %20 = vector.load %arg13[%c32, %c0_16] : memref<144x512xf32, #tpu.memory_space<vmem>>, vector<16x512xf32>
    tpu.vector_store %arg13[%c32, %c0_16], %19 {strides = array<i32>} : memref<144x512xf32, #tpu.memory_space<vmem>>, vector<16x512xf32>,
    %c0_17 = arith.constant 0 : index
    %c127 = arith.constant 127 : index
    %21 = vector.load %arg12[%c0_17, %c127] : memref<16x768xf32, #tpu.memory_space<vmem>>, vector<16x512xf32>
    %c3 = arith.constant 3 : index
    %c0_18 = arith.constant 0 : index
    %22 = vector.load %arg8[%c3, %c0_18] : memref<8x512xf32, #tpu.memory_space<vmem>>, vector<1x512xf32>
    %23 = vector.broadcast %22 : vector<1x512xf32> to vector<16x512xf32>
    %24 = arith.mulf %21, %23 : vector<16x512xf32>
    %c48 = arith.constant 48 : index
    %c0_19 = arith.constant 0 : index
    %25 = vector.load %arg13[%c48, %c0_19] : memref<144x512xf32, #tpu.memory_space<vmem>>, vector<16x512xf32>
    tpu.vector_store %arg13[%c48, %c0_19], %24 {strides = array<i32>} : memref<144x512xf32, #tpu.memory_space<vmem>>, vector<16x512xf32>,
    %c64 = arith.constant 64 : index
    %c0_20 = arith.constant 0 : index
    %26 = vector.load %arg13[%c64, %c0_20] : memref<144x512xf32, #tpu.memory_space<vmem>>, vector<16x512xf32>
    tpu.vector_store %arg13[%c64, %c0_20], %4 {strides = array<i32>} : memref<144x512xf32, #tpu.memory_space<vmem>>, vector<16x512xf32>,
    %c0_21 = arith.constant 0 : index
    %c129 = arith.constant 129 : index
    %27 = vector.load %arg12[%c0_21, %c129] : memref<16x768xf32, #tpu.memory_space<vmem>>, vector<16x512xf32>
    %c4 = arith.constant 4 : index
    %c0_22 = arith.constant 0 : index
    %28 = vector.load %arg8[%c4, %c0_22] : memref<8x512xf32, #tpu.memory_space<vmem>>, vector<1x512xf32>
    %29 = vector.broadcast %28 : vector<1x512xf32> to vector<16x512xf32>
    %30 = arith.mulf %27, %29 : vector<16x512xf32>
    %c80 = arith.constant 80 : index
    %c0_23 = arith.constant 0 : index
    %31 = vector.load %arg13[%c80, %c0_23] : memref<144x512xf32, #tpu.memory_space<vmem>>, vector<16x512xf32>
    tpu.vector_store %arg13[%c80, %c0_23], %30 {strides = array<i32>} : memref<144x512xf32, #tpu.memory_space<vmem>>, vector<16x512xf32>,
    %c0_24 = arith.constant 0 : index
    %c143 = arith.constant 143 : index
    %32 = vector.load %arg12[%c0_24, %c143] : memref<16x768xf32, #tpu.memory_space<vmem>>, vector<16x512xf32>
    %c5 = arith.constant 5 : index
    %c0_25 = arith.constant 0 : index
    %33 = vector.load %arg8[%c5, %c0_25] : memref<8x512xf32, #tpu.memory_space<vmem>>, vector<1x512xf32>
    %34 = vector.broadcast %33 : vector<1x512xf32> to vector<16x512xf32>
    %35 = arith.mulf %32, %34 : vector<16x512xf32>
    %c96 = arith.constant 96 : index
    %c0_26 = arith.constant 0 : index
    %36 = vector.load %arg13[%c96, %c0_26] : memref<144x512xf32, #tpu.memory_space<vmem>>, vector<16x512xf32>
    tpu.vector_store %arg13[%c96, %c0_26], %35 {strides = array<i32>} : memref<144x512xf32, #tpu.memory_space<vmem>>, vector<16x512xf32>,
    %c0_27 = arith.constant 0 : index
    %c144 = arith.constant 144 : index
    %37 = vector.load %arg12[%c0_27, %c144] : memref<16x768xf32, #tpu.memory_space<vmem>>, vector<16x512xf32>
    %c6 = arith.constant 6 : index
    %c0_28 = arith.constant 0 : index
    %38 = vector.load %arg8[%c6, %c0_28] : memref<8x512xf32, #tpu.memory_space<vmem>>, vector<1x512xf32>
    %39 = vector.broadcast %38 : vector<1x512xf32> to vector<16x512xf32>
    %40 = arith.mulf %37, %39 : vector<16x512xf32>
    %c112_29 = arith.constant 112 : index
    %c0_30 = arith.constant 0 : index
    %41 = vector.load %arg13[%c112_29, %c0_30] : memref<144x512xf32, #tpu.memory_space<vmem>>, vector<16x512xf32>
    tpu.vector_store %arg13[%c112_29, %c0_30], %40 {strides = array<i32>} : memref<144x512xf32, #tpu.memory_space<vmem>>, vector<16x512xf32>,
    %c0_31 = arith.constant 0 : index
    %c145 = arith.constant 145 : index
    %42 = vector.load %arg12[%c0_31, %c145] : memref<16x768xf32, #tpu.memory_space<vmem>>, vector<16x512xf32>
    %c7 = arith.constant 7 : index
    %c0_32 = arith.constant 0 : index
    %43 = vector.load %arg8[%c7, %c0_32] : memref<8x512xf32, #tpu.memory_space<vmem>>, vector<1x512xf32>
    %44 = vector.broadcast %43 : vector<1x512xf32> to vector<16x512xf32>
    %45 = arith.mulf %42, %44 : vector<16x512xf32>
    %c128_33 = arith.constant 128 : index
    %c0_34 = arith.constant 0 : index
    %46 = vector.load %arg13[%c128_33, %c0_34] : memref<144x512xf32, #tpu.memory_space<vmem>>, vector<16x512xf32>
    tpu.vector_store %arg13[%c128_33, %c0_34], %45 {strides = array<i32>} : memref<144x512xf32, #tpu.memory_space<vmem>>, vector<16x512xf32>,
    %c0_35 = arith.constant 0 : index
    %c0_36 = arith.constant 0 : index
    %47 = vector.load %arg2[%c0_35, %c0_36] : memref<16x144xf32, #tpu.memory_space<vmem>>, vector<16x144xf32>
    %c0_37 = arith.constant 0 : index
    %c0_38 = arith.constant 0 : index
    %48 = vector.load %arg13[%c0_37, %c0_38] : memref<144x512xf32, #tpu.memory_space<vmem>>, vector<144x512xf32>
    %cst_39 = arith.constant dense<0.000000e+00> : vector<16x512xf32>
    %49 = tpu.matmul %47, %48, %cst_39 {dimension_numbers = #tpu.dot_dimension_numbers<[1], [0], [0], [1], [0, 0, 1, 1], [], []>} : vector<16x144xf32>, vector<144x512xf32>, vector<16x512xf32> -> vector<16x512xf32>
    %c0_40 = arith.constant 0 : index
    %c0_41 = arith.constant 0 : index
    %50 = vector.load %arg4[%c0_40, %c0_41] : memref<16x1xf32, #tpu.memory_space<vmem>>, vector<16x1xf32>
    %51 = vector.broadcast %50 : vector<16x1xf32> to vector<16x512xf32>
    %52 = arith.addf %49, %51 : vector<16x512xf32>
    %cst_42 = arith.constant 0.000000e+00 : f32
    %53 = vector.broadcast %cst_42 : f32 to vector<16x512xf32>
    %54 = arith.maximumf %52, %53 : vector<16x512xf32>
    %c0_43 = arith.constant 0 : index
    %c128_44 = arith.constant 128 : index
    %55 = vector.load %arg12[%c0_43, %c128_44] : memref<16x768xf32, #tpu.memory_space<vmem>>, vector<16x512xf32>
    tpu.vector_store %arg12[%c0_43, %c128_44], %54 {strides = array<i32>} : memref<16x768xf32, #tpu.memory_space<vmem>>, vector<16x512xf32>,
    %c0_45 = arith.constant 0 : index
    %c111_46 = arith.constant 111 : index
    %56 = vector.load %arg12[%c0_45, %c111_46] : memref<16x768xf32, #tpu.memory_space<vmem>>, vector<16x512xf32>
    %c0_47 = arith.constant 0 : index
    %c0_48 = arith.constant 0 : index
    %57 = vector.load %arg8[%c0_47, %c0_48] : memref<8x512xf32, #tpu.memory_space<vmem>>, vector<1x512xf32>
    %58 = vector.broadcast %57 : vector<1x512xf32> to vector<16x512xf32>
    %59 = arith.mulf %56, %58 : vector<16x512xf32>
    %c0_49 = arith.constant 0 : index
    %c0_50 = arith.constant 0 : index
    %60 = vector.load %arg13[%c0_49, %c0_50] : memref<144x512xf32, #tpu.memory_space<vmem>>, vector<16x512xf32>
    tpu.vector_store %arg13[%c0_49, %c0_50], %59 {strides = array<i32>} : memref<144x512xf32, #tpu.memory_space<vmem>>, vector<16x512xf32>,
    %c0_51 = arith.constant 0 : index
    %c112_52 = arith.constant 112 : index
    %61 = vector.load %arg12[%c0_51, %c112_52] : memref<16x768xf32, #tpu.memory_space<vmem>>, vector<16x512xf32>
    %c1_53 = arith.constant 1 : index
    %c0_54 = arith.constant 0 : index
    %62 = vector.load %arg8[%c1_53, %c0_54] : memref<8x512xf32, #tpu.memory_space<vmem>>, vector<1x512xf32>
    %63 = vector.broadcast %62 : vector<1x512xf32> to vector<16x512xf32>
    %64 = arith.mulf %61, %63 : vector<16x512xf32>
    %c16_55 = arith.constant 16 : index
    %c0_56 = arith.constant 0 : index
    %65 = vector.load %arg13[%c16_55, %c0_56] : memref<144x512xf32, #tpu.memory_space<vmem>>, vector<16x512xf32>
    tpu.vector_store %arg13[%c16_55, %c0_56], %64 {strides = array<i32>} : memref<144x512xf32, #tpu.memory_space<vmem>>, vector<16x512xf32>,
    %c0_57 = arith.constant 0 : index
    %c113_58 = arith.constant 113 : index
    %66 = vector.load %arg12[%c0_57, %c113_58] : memref<16x768xf32, #tpu.memory_space<vmem>>, vector<16x512xf32>
    %c2_59 = arith.constant 2 : index
    %c0_60 = arith.constant 0 : index
    %67 = vector.load %arg8[%c2_59, %c0_60] : memref<8x512xf32, #tpu.memory_space<vmem>>, vector<1x512xf32>
    %68 = vector.broadcast %67 : vector<1x512xf32> to vector<16x512xf32>
    %69 = arith.mulf %66, %68 : vector<16x512xf32>
    %c32_61 = arith.constant 32 : index
    %c0_62 = arith.constant 0 : index
    %70 = vector.load %arg13[%c32_61, %c0_62] : memref<144x512xf32, #tpu.memory_space<vmem>>, vector<16x512xf32>
    tpu.vector_store %arg13[%c32_61, %c0_62], %69 {strides = array<i32>} : memref<144x512xf32, #tpu.memory_space<vmem>>, vector<16x512xf32>,
    %c0_63 = arith.constant 0 : index
    %c127_64 = arith.constant 127 : index
    %71 = vector.load %arg12[%c0_63, %c127_64] : memref<16x768xf32, #tpu.memory_space<vmem>>, vector<16x512xf32>
    %c3_65 = arith.constant 3 : index
    %c0_66 = arith.constant 0 : index
    %72 = vector.load %arg8[%c3_65, %c0_66] : memref<8x512xf32, #tpu.memory_space<vmem>>, vector<1x512xf32>
    %73 = vector.broadcast %72 : vector<1x512xf32> to vector<16x512xf32>
    %74 = arith.mulf %71, %73 : vector<16x512xf32>
    %c48_67 = arith.constant 48 : index
    %c0_68 = arith.constant 0 : index
    %75 = vector.load %arg13[%c48_67, %c0_68] : memref<144x512xf32, #tpu.memory_space<vmem>>, vector<16x512xf32>
    tpu.vector_store %arg13[%c48_67, %c0_68], %74 {strides = array<i32>} : memref<144x512xf32, #tpu.memory_space<vmem>>, vector<16x512xf32>,
    %c64_69 = arith.constant 64 : index
    %c0_70 = arith.constant 0 : index
    %76 = vector.load %arg13[%c64_69, %c0_70] : memref<144x512xf32, #tpu.memory_space<vmem>>, vector<16x512xf32>
    tpu.vector_store %arg13[%c64_69, %c0_70], %54 {strides = array<i32>} : memref<144x512xf32, #tpu.memory_space<vmem>>, vector<16x512xf32>,
    %c0_71 = arith.constant 0 : index
    %c129_72 = arith.constant 129 : index
    %77 = vector.load %arg12[%c0_71, %c129_72] : memref<16x768xf32, #tpu.memory_space<vmem>>, vector<16x512xf32>
    %c4_73 = arith.constant 4 : index
    %c0_74 = arith.constant 0 : index
    %78 = vector.load %arg8[%c4_73, %c0_74] : memref<8x512xf32, #tpu.memory_space<vmem>>, vector<1x512xf32>
    %79 = vector.broadcast %78 : vector<1x512xf32> to vector<16x512xf32>
    %80 = arith.mulf %77, %79 : vector<16x512xf32>
    %c80_75 = arith.constant 80 : index
    %c0_76 = arith.constant 0 : index
    %81 = vector.load %arg13[%c80_75, %c0_76] : memref<144x512xf32, #tpu.memory_space<vmem>>, vector<16x512xf32>
    tpu.vector_store %arg13[%c80_75, %c0_76], %80 {strides = array<i32>} : memref<144x512xf32, #tpu.memory_space<vmem>>, vector<16x512xf32>,
    %c0_77 = arith.constant 0 : index
    %c143_78 = arith.constant 143 : index
    %82 = vector.load %arg12[%c0_77, %c143_78] : memref<16x768xf32, #tpu.memory_space<vmem>>, vector<16x512xf32>
    %c5_79 = arith.constant 5 : index
    %c0_80 = arith.constant 0 : index
    %83 = vector.load %arg8[%c5_79, %c0_80] : memref<8x512xf32, #tpu.memory_space<vmem>>, vector<1x512xf32>
    %84 = vector.broadcast %83 : vector<1x512xf32> to vector<16x512xf32>
    %85 = arith.mulf %82, %84 : vector<16x512xf32>
    %c96_81 = arith.constant 96 : index
    %c0_82 = arith.constant 0 : index
    %86 = vector.load %arg13[%c96_81, %c0_82] : memref<144x512xf32, #tpu.memory_space<vmem>>, vector<16x512xf32>
    tpu.vector_store %arg13[%c96_81, %c0_82], %85 {strides = array<i32>} : memref<144x512xf32, #tpu.memory_space<vmem>>, vector<16x512xf32>,
    %c0_83 = arith.constant 0 : index
    %c144_84 = arith.constant 144 : index
    %87 = vector.load %arg12[%c0_83, %c144_84] : memref<16x768xf32, #tpu.memory_space<vmem>>, vector<16x512xf32>
    %c6_85 = arith.constant 6 : index
    %c0_86 = arith.constant 0 : index
    %88 = vector.load %arg8[%c6_85, %c0_86] : memref<8x512xf32, #tpu.memory_space<vmem>>, vector<1x512xf32>
    %89 = vector.broadcast %88 : vector<1x512xf32> to vector<16x512xf32>
    %90 = arith.mulf %87, %89 : vector<16x512xf32>
    %c112_87 = arith.constant 112 : index
    %c0_88 = arith.constant 0 : index
    %91 = vector.load %arg13[%c112_87, %c0_88] : memref<144x512xf32, #tpu.memory_space<vmem>>, vector<16x512xf32>
    tpu.vector_store %arg13[%c112_87, %c0_88], %90 {strides = array<i32>} : memref<144x512xf32, #tpu.memory_space<vmem>>, vector<16x512xf32>,
    %c0_89 = arith.constant 0 : index
    %c145_90 = arith.constant 145 : index
    %92 = vector.load %arg12[%c0_89, %c145_90] : memref<16x768xf32, #tpu.memory_space<vmem>>, vector<16x512xf32>
    %c7_91 = arith.constant 7 : index
    %c0_92 = arith.constant 0 : index
    %93 = vector.load %arg8[%c7_91, %c0_92] : memref<8x512xf32, #tpu.memory_space<vmem>>, vector<1x512xf32>
    %94 = vector.broadcast %93 : vector<1x512xf32> to vector<16x512xf32>
    %95 = arith.mulf %92, %94 : vector<16x512xf32>
    %c128_93 = arith.constant 128 : index
    %c0_94 = arith.constant 0 : index
    %96 = vector.load %arg13[%c128_93, %c0_94] : memref<144x512xf32, #tpu.memory_space<vmem>>, vector<16x512xf32>
    tpu.vector_store %arg13[%c128_93, %c0_94], %95 {strides = array<i32>} : memref<144x512xf32, #tpu.memory_space<vmem>>, vector<16x512xf32>,
    %c0_95 = arith.constant 0 : index
    %c0_96 = arith.constant 0 : index
    %97 = vector.load %arg3[%c0_95, %c0_96] : memref<16x144xf32, #tpu.memory_space<vmem>>, vector<16x144xf32>
    %c0_97 = arith.constant 0 : index
    %c0_98 = arith.constant 0 : index
    %98 = vector.load %arg13[%c0_97, %c0_98] : memref<144x512xf32, #tpu.memory_space<vmem>>, vector<144x512xf32>
    %cst_99 = arith.constant dense<0.000000e+00> : vector<16x512xf32>
    %99 = tpu.matmul %97, %98, %cst_99 {dimension_numbers = #tpu.dot_dimension_numbers<[1], [0], [0], [1], [0, 0, 1, 1], [], []>} : vector<16x144xf32>, vector<144x512xf32>, vector<16x512xf32> -> vector<16x512xf32>
    %c0_100 = arith.constant 0 : index
    %c0_101 = arith.constant 0 : index
    %100 = vector.load %arg5[%c0_100, %c0_101] : memref<16x1xf32, #tpu.memory_space<vmem>>, vector<16x1xf32>
    %101 = vector.broadcast %100 : vector<16x1xf32> to vector<16x512xf32>
    %102 = arith.addf %99, %101 : vector<16x512xf32>
    %c0_102 = arith.constant 0 : index
    %c0_103 = arith.constant 0 : index
    %103 = vector.load %arg9[%c0_102, %c0_103] : memref<512x2xf32, #tpu.memory_space<vmem>>, vector<512x2xf32>
    %cst_104 = arith.constant dense<0.000000e+00> : vector<16x2xf32>
    %104 = tpu.matmul %102, %103, %cst_104 {dimension_numbers = #tpu.dot_dimension_numbers<[1], [0], [0], [1], [0, 0, 1, 1], [], []>} : vector<16x512xf32>, vector<512x2xf32>, vector<16x2xf32> -> vector<16x2xf32>
    %c0_105 = arith.constant 0 : index
    %c0_106 = arith.constant 0 : index
    %105 = vector.load %arg6[%c0_105, %c0_106] : memref<4x16xf32, #tpu.memory_space<vmem>>, vector<4x16xf32>
    %cst_107 = arith.constant dense<0.000000e+00> : vector<4x2xf32>
    %106 = tpu.matmul %105, %104, %cst_107 {dimension_numbers = #tpu.dot_dimension_numbers<[1], [0], [0], [1], [0, 0, 1, 1], [], []>} : vector<4x16xf32>, vector<16x2xf32>, vector<4x2xf32> -> vector<4x2xf32>
    %cst_108 = arith.constant 0.000000e+00 : f32
    %107 = vector.broadcast %cst_108 : f32 to vector<4x2xf32>
    %108 = arith.maximumf %106, %107 : vector<4x2xf32>
    %c0_109 = arith.constant 0 : index
    %c0_110 = arith.constant 0 : index
    %109 = vector.load %arg7[%c0_109, %c0_110] : memref<16x4xf32, #tpu.memory_space<vmem>>, vector<16x4xf32>
    %cst_111 = arith.constant dense<0.000000e+00> : vector<16x2xf32>
    %110 = tpu.matmul %109, %108, %cst_111 {dimension_numbers = #tpu.dot_dimension_numbers<[1], [0], [0], [1], [0, 0, 1, 1], [], []>} : vector<16x4xf32>, vector<4x2xf32>, vector<16x2xf32> -> vector<16x2xf32>
    %111 = arith.negf %110 : vector<16x2xf32>
    %112 = math.exp %111 : vector<16x2xf32>
    %cst_112 = arith.constant 1.000000e+00 : f32
    %113 = vector.broadcast %cst_112 : f32 to vector<16x2xf32>
    %114 = arith.addf %113, %112 : vector<16x2xf32>
    %115 = arith.divf %113, %114 : vector<16x2xf32>
    %c0_113 = arith.constant 0 : index
    %c0_114 = arith.constant 0 : index
    %116 = vector.load %arg10[%c0_113, %c0_114] : memref<2x512xf32, #tpu.memory_space<vmem>>, vector<2x512xf32>
    %cst_115 = arith.constant dense<0.000000e+00> : vector<16x512xf32>
    %117 = tpu.matmul %115, %116, %cst_115 {dimension_numbers = #tpu.dot_dimension_numbers<[1], [0], [0], [1], [0, 0, 1, 1], [], []>} : vector<16x2xf32>, vector<2x512xf32>, vector<16x512xf32> -> vector<16x512xf32>
    %118 = arith.mulf %102, %117 : vector<16x512xf32>
    %119 = arith.addf %118, %4 : vector<16x512xf32>
    %cst_116 = arith.constant 0.000000e+00 : f32
    %120 = vector.broadcast %cst_116 : f32 to vector<16x512xf32>
    %121 = arith.maximumf %119, %120 : vector<16x512xf32>
    %c0_117 = arith.constant 0 : index
    %c0_118 = arith.constant 0 : index
    %122 = vector.load %arg11[%c0_117, %c0_118] : memref<16x512xf32, #tpu.memory_space<vmem>>, vector<16x512xf32>
    tpu.vector_store %arg11[%c0_117, %c0_118], %121 {strides = array<i32>} : memref<16x512xf32, #tpu.memory_space<vmem>>, vector<16x512xf32>,
    return
  }
  func.func @transform_0(%arg0: i32) -> (i32, i32) {
    %c0_i32 = arith.constant 0 : i32
    %c0_i32_0 = arith.constant 0 : i32
    return %c0_i32, %arg0 : i32, i32
  }
  func.func @transform_1(%arg0: i32) -> (i32, i32) {
    %c0_i32 = arith.constant 0 : i32
    %c0_i32_0 = arith.constant 0 : i32
    %c0_i32_1 = arith.constant 0 : i32
    return %c0_i32, %c0_i32_0 : i32, i32
  }
  func.func @transform_2(%arg0: i32) -> (i32, i32) {
    %c0_i32 = arith.constant 0 : i32
    %c0_i32_0 = arith.constant 0 : i32
    %c0_i32_1 = arith.constant 0 : i32
    return %c0_i32, %c0_i32_0 : i32, i32
  }
  func.func @transform_3(%arg0: i32) -> (i32, i32) {
    %c0_i32 = arith.constant 0 : i32
    %c0_i32_0 = arith.constant 0 : i32
    %c0_i32_1 = arith.constant 0 : i32
    return %c0_i32, %c0_i32_0 : i32, i32
  }
  func.func @transform_4(%arg0: i32) -> (i32, i32) {
    %c0_i32 = arith.constant 0 : i32
    %c0_i32_0 = arith.constant 0 : i32
    %c0_i32_1 = arith.constant 0 : i32
    return %c0_i32, %c0_i32_0 : i32, i32
  }
  func.func @transform_5(%arg0: i32) -> (i32, i32) {
    %c0_i32 = arith.constant 0 : i32
    %c0_i32_0 = arith.constant 0 : i32
    %c0_i32_1 = arith.constant 0 : i32
    return %c0_i32, %c0_i32_0 : i32, i32
  }
  func.func @transform_6(%arg0: i32) -> (i32, i32) {
    %c0_i32 = arith.constant 0 : i32
    %c0_i32_0 = arith.constant 0 : i32
    %c0_i32_1 = arith.constant 0 : i32
    return %c0_i32, %c0_i32_0 : i32, i32
  }
  func.func @transform_7(%arg0: i32) -> (i32, i32) {
    %c0_i32 = arith.constant 0 : i32
    %c0_i32_0 = arith.constant 0 : i32
    %c0_i32_1 = arith.constant 0 : i32
    return %c0_i32, %c0_i32_0 : i32, i32
  }
  func.func @transform_8(%arg0: i32) -> (i32, i32) {
    %c0_i32 = arith.constant 0 : i32
    %c0_i32_0 = arith.constant 0 : i32
    %c0_i32_1 = arith.constant 0 : i32
    return %c0_i32, %c0_i32_0 : i32, i32
  }
  func.func @transform_9(%arg0: i32) -> (i32, i32) {
    %c0_i32 = arith.constant 0 : i32
    %c0_i32_0 = arith.constant 0 : i32
    %c0_i32_1 = arith.constant 0 : i32
    return %c0_i32, %c0_i32_0 : i32, i32
  }
  func.func @transform_10(%arg0: i32) -> (i32, i32) {
    %c0_i32 = arith.constant 0 : i32
    %c0_i32_0 = arith.constant 0 : i32
    return %c0_i32, %arg0 : i32, i32
  }
}

</mosaic_0001>

<llo_original>
// kernel: cifar_se_basic_block.1
$region0: #{cifar_se_basic_block.1}
  #allocation0 [shape = 'u32[]', space=smem, size = 0x4, offset = 0x4, fixed_abs, tag = 'smem constant byte address 0x4 - core index']
  #allocation1 [shape = 'u32[144,128]{1,0:T(1,128)}', space=vmem, size = 0x12000, scoped, tag = 'internal scratch']
  #allocation2 [shape = 'f32[16,768]{1,0:T(8,128)}', space=vmem, size = 0xc000, scoped, tag = 'scratch operand']
  #allocation3 [shape = 'f32[144,512]{1,0:T(8,128)}', space=vmem, size = 0x48000, scoped, tag = 'scratch operand']
  %s0 = inlined_call_operand.vmem [shape: f32[16,512], index: 0, kind: input, shape index: {}]
  %s1 = inlined_call_operand.vmem [shape: f32[16,144], index: 1, kind: input, shape index: {}]
  %s2 = inlined_call_operand.vmem [shape: f32[16,144], index: 2, kind: input, shape index: {}]
  %s3 = inlined_call_operand.vmem [shape: f32[16,1], index: 3, kind: input, shape index: {}]
  %s4 = inlined_call_operand.vmem [shape: f32[16,1], index: 4, kind: input, shape index: {}]
  %s5 = inlined_call_operand.vmem [shape: f32[4,16], index: 5, kind: input, shape index: {}]
  %s6 = inlined_call_operand.vmem [shape: f32[16,4], index: 6, kind: input, shape index: {}]
  %s7 = inlined_call_operand.vmem [shape: f32[8,512], index: 7, kind: input, shape index: {}]
  %s8 = inlined_call_operand.vmem [shape: f32[512,2], index: 8, kind: input, shape index: {}]
  %s9 = inlined_call_operand.vmem [shape: f32[2,512], index: 9, kind: input, shape index: {}]
  %s10 = inlined_call_operand.vmem [shape: f32[16,512], index: 10, kind: output, shape index: {}]
  %s11 = sld [smem:[#allocation0]]
  $region50: #{cifar_se_basic_block.1} parent=0
    _
  %s13 = ssub.s32 1, %s11
  %s14 = scalar_select 0, %s13, %s11
  // Predicated region
  $region2: #{cifar_se_basic_block.1} parent=0 // pred_check
    _
  $region3: #{cifar_se_basic_block.1} parent=0 // pred_check_branch
    %16 = sbr.rel (0) target = $region5
  $region4: #{cifar_se_basic_block.1} parent=0 // pred_region
    _
  $region5: #{cifar_se_basic_block.1} parent=0 // pred_fallthru
    _
  // Predicated region
  $region6: #{cifar_se_basic_block.1} parent=0 // pred_check
    _
  $region7: #{cifar_se_basic_block.1} parent=0 // pred_check_branch
    %18 = sbr.rel (0) target = $region9
  $region8: #{cifar_se_basic_block.1} parent=0 // pred_region
    _
  $region9: #{cifar_se_basic_block.1} parent=0 // pred_fallthru
    _
  // Predicated region
  $region10: #{cifar_se_basic_block.1} parent=0 // pred_check
    _
  $region11: #{cifar_se_basic_block.1} parent=0 // pred_check_branch
    %20 = sbr.rel (0) target = $region13
  $region12: #{cifar_se_basic_block.1} parent=0 // pred_region
    _
  $region13: #{cifar_se_basic_block.1} parent=0 // pred_fallthru
    _
  // Predicated region
  $region14: #{cifar_se_basic_block.1} parent=0 // pred_check
    _
  $region15: #{cifar_se_basic_block.1} parent=0 // pred_check_branch
    %22 = sbr.rel (0) target = $region17
  $region16: #{cifar_se_basic_block.1} parent=0 // pred_region
    _
  $region17: #{cifar_se_basic_block.1} parent=0 // pred_fallthru
    _
  // Predicated region
  $region18: #{cifar_se_basic_block.1} parent=0 // pred_check
    _
  $region19: #{cifar_se_basic_block.1} parent=0 // pred_check_branch
    %24 = sbr.rel (0) target = $region21
  $region20: #{cifar_se_basic_block.1} parent=0 // pred_region
    _
  $region21: #{cifar_se_basic_block.1} parent=0 // pred_fallthru
    _
  // Predicated region
  $region22: #{cifar_se_basic_block.1} parent=0 // pred_check
    _
  $region23: #{cifar_se_basic_block.1} parent=0 // pred_check_branch
    %26 = sbr.rel (0) target = $region25
  $region24: #{cifar_se_basic_block.1} parent=0 // pred_region
    _
  $region25: #{cifar_se_basic_block.1} parent=0 // pred_fallthru
    _
  // Predicated region
  $region26: #{cifar_se_basic_block.1} parent=0 // pred_check
    _
  $region27: #{cifar_se_basic_block.1} parent=0 // pred_check_branch
    %28 = sbr.rel (0) target = $region29
  $region28: #{cifar_se_basic_block.1} parent=0 // pred_region
    _
  $region29: #{cifar_se_basic_block.1} parent=0 // pred_fallthru
    _
  // Predicated region
  $region30: #{cifar_se_basic_block.1} parent=0 // pred_check
    _
  $region31: #{cifar_se_basic_block.1} parent=0 // pred_check_branch
    %30 = sbr.rel (0) target = $region33
  $region32: #{cifar_se_basic_block.1} parent=0 // pred_region
    _
  $region33: #{cifar_se_basic_block.1} parent=0 // pred_fallthru
    _
  // Predicated region
  $region34: #{cifar_se_basic_block.1} parent=0 // pred_check
    _
  $region35: #{cifar_se_basic_block.1} parent=0 // pred_check_branch
    %32 = sbr.rel (0) target = $region37
  $region36: #{cifar_se_basic_block.1} parent=0 // pred_region
    _
  $region37: #{cifar_se_basic_block.1} parent=0 // pred_fallthru
    _
  // Predicated region
  $region38: #{cifar_se_basic_block.1} parent=0 // pred_check
    _
  $region39: #{cifar_se_basic_block.1} parent=0 // pred_check_branch
    %34 = sbr.rel (0) target = $region41
  $region40: #{cifar_se_basic_block.1} parent=0 // pred_region
    _
  $region41: #{cifar_se_basic_block.1} parent=0 // pred_fallthru
    _
  %35 = vst [vmem:[#allocation2] sm:$0xff] 0.0
  %36 = vst [vmem:[#allocation2 + $0x30] sm:$0xff] 0.0
  %37 = vst [vmem:[#allocation2 + $0x28] sm:$0xff] 0.0
  %38 = vst [vmem:[#allocation2 + $0x58] sm:$0xff] 0.0
  %v39 = vld [vmem:[%s0] sm:$0xff]
  %v40 = vld [vmem:[%s0 + $0x8] sm:$0xff]
  %v41 = vld [vmem:[%s0 + $0x10] sm:$0xff]
  %v42 = vld [vmem:[%s0 + $0x18] sm:$0xff]
  %v43 = vld [vmem:[%s0 + $0x20] sm:$0xff]
  %v44 = vld [vmem:[%s0 + $0x28] sm:$0xff]
  %v45 = vld [vmem:[%s0 + $0x30] sm:$0xff]
  %v46 = vld [vmem:[%s0 + $0x38] sm:$0xff]
  %47 = vst [vmem:[#allocation2 + $0x8] sm:$0xff] %v39
  %48 = vst [vmem:[#allocation2 + $0x10] sm:$0xff] %v40
  %49 = vst [vmem:[#allocation2 + $0x18] sm:$0xff] %v41
  %50 = vst [vmem:[#allocation2 + $0x20] sm:$0xff] %v42
  %51 = vst [vmem:[#allocation2 + $0x38] sm:$0xff] %v43
  %52 = vst [vmem:[#allocation2 + $0x40] sm:$0xff] %v44
  %53 = vst [vmem:[#allocation2 + $0x48] sm:$0xff] %v45
  %54 = vst [vmem:[#allocation2 + $0x50] sm:$0xff] %v46
  %v55 = vld [vmem:[#allocation2] sm:$0xff]
  %v56 = vld [vmem:[#allocation2 + $0x8] sm:$0xff]
  %v57 = vld [vmem:[#allocation2 + $0x10] sm:$0xff]
  %v58 = vld [vmem:[#allocation2 + $0x18] sm:$0xff]
  %v59 = vld [vmem:[#allocation2 + $0x20] sm:$0xff]
  %v60 = vld [vmem:[#allocation2 + $0x30] sm:$0xff]
  %v61 = vld [vmem:[#allocation2 + $0x38] sm:$0xff]
  %v62 = vld [vmem:[#allocation2 + $0x40] sm:$0xff]
  %v63 = vld [vmem:[#allocation2 + $0x48] sm:$0xff]
  %v64 = vld [vmem:[#allocation2 + $0x50] sm:$0xff]
  %v65 = vld [vmem:[%s7] ss:$8 sm:$0xf]
  %v67 = vlaneseq
  %v68 = vshrl.u32 %v67, 7
  %v69 = vsub.s32 0, %v68
  %v70 = vrot.slane %v65, %v69
  %v71 = vlaneseq
  %v72 = vshrl.u32 %v71, 7
  %v73 = vsub.s32 1, %v72
  %v74 = vrot.slane %v65, %v73
  %v75 = vlaneseq
  %v76 = vshrl.u32 %v75, 7
  %v77 = vsub.s32 2, %v76
  %v78 = vrot.slane %v65, %v77
  %v79 = vlaneseq
  %v80 = vshrl.u32 %v79, 7
  %v81 = vsub.s32 3, %v80
  %v82 = vrot.slane %v65, %v81
  %83 = vrot.lane.b32.xlu0 %v70, 111
  %v84 = vpop.permute.xlu0 %83
  %85 = vrot.lane.b32.xlu0 %v74, 111
  %v86 = vpop.permute.xlu0 %85
  %87 = vrot.lane.b32.xlu0 %v78, 111
  %v88 = vpop.permute.xlu0 %87
  %89 = vrot.lane.b32.xlu0 %v82, 111
  %v90 = vpop.permute.xlu0 %89
  %vm91 = vcmask 908288
  %v92 = vsel %vm91, %v84, %v86
  %v93 = vsel %vm91, %v86, %v88
  %v94 = vsel %vm91, %v88, %v90
  %v100 = vmul.f32 %v55, %v84
  %v101 = vmul.f32 %v56, %v92
  %v102 = vmul.f32 %v57, %v93
  %v103 = vmul.f32 %v58, %v94
  %v104 = vmul.f32 %v59, %v90
  %v105 = vmul.f32 %v60, %v84
  %v106 = vmul.f32 %v61, %v92
  %v107 = vmul.f32 %v62, %v93
  %v108 = vmul.f32 %v63, %v94
  %v109 = vmul.f32 %v64, %v90
  %120 = vrot.lane.b32.xlu0 %v100, 17
  %v121 = vpop.permute.xlu0 %120
  %122 = vrot.lane.b32.xlu0 %v101, 17
  %v123 = vpop.permute.xlu0 %122
  %124 = vrot.lane.b32.xlu0 %v102, 17
  %v125 = vpop.permute.xlu0 %124
  %126 = vrot.lane.b32.xlu0 %v103, 17
  %v127 = vpop.permute.xlu0 %126
  %128 = vrot.lane.b32.xlu0 %v104, 17
  %v129 = vpop.permute.xlu0 %128
  %130 = vrot.lane.b32.xlu0 %v105, 17
  %v131 = vpop.permute.xlu0 %130
  %132 = vrot.lane.b32.xlu0 %v106, 17
  %v133 = vpop.permute.xlu0 %132
  %134 = vrot.lane.b32.xlu0 %v107, 17
  %v135 = vpop.permute.xlu0 %134
  %136 = vrot.lane.b32.xlu0 %v108, 17
  %v137 = vpop.permute.xlu0 %136
  %138 = vrot.lane.b32.xlu0 %v109, 17
  %v139 = vpop.permute.xlu0 %138
  %vm140 = vcmask 138240
  %v141 = vsel %vm140, %v121, %v123
  %v142 = vsel %vm140, %v123, %v125
  %v143 = vsel %vm140, %v125, %v127
  %v144 = vsel %vm140, %v127, %v129
  %v145 = vsel %vm140, %v131, %v133
  %v146 = vsel %vm140, %v133, %v135
  %v147 = vsel %vm140, %v135, %v137
  %v148 = vsel %vm140, %v137, %v139
  %157 = vst [vmem:[#allocation3] sm:$0xff] %v141
  %158 = vst [vmem:[#allocation3 + $0x8] sm:$0xff] %v142
  %159 = vst [vmem:[#allocation3 + $0x10] sm:$0xff] %v143
  %160 = vst [vmem:[#allocation3 + $0x18] sm:$0xff] %v144
  %161 = vst [vmem:[#allocation3 + $0x20] sm:$0xff] %v145
  %162 = vst [vmem:[#allocation3 + $0x28] sm:$0xff] %v146
  %163 = vst [vmem:[#allocation3 + $0x30] sm:$0xff] %v147
  %164 = vst [vmem:[#allocation3 + $0x38] sm:$0xff] %v148
  %v165 = vld [vmem:[#allocation2] sm:$0xff]
  %v166 = vld [vmem:[#allocation2 + $0x8] sm:$0xff]
  %v167 = vld [vmem:[#allocation2 + $0x10] sm:$0xff]
  %v168 = vld [vmem:[#allocation2 + $0x18] sm:$0xff]
  %v169 = vld [vmem:[#allocation2 + $0x20] sm:$0xff]
  %v170 = vld [vmem:[#allocation2 + $0x30] sm:$0xff]
  %v171 = vld [vmem:[#allocation2 + $0x38] sm:$0xff]
  %v172 = vld [vmem:[#allocation2 + $0x40] sm:$0xff]
  %v173 = vld [vmem:[#allocation2 + $0x48] sm:$0xff]
  %v174 = vld [vmem:[#allocation2 + $0x50] sm:$0xff]
  %s175 = scalar_lea.vmem %s7, 1
  %v176 = vld [vmem:[%s175] ss:$8 sm:$0xf]
  %v178 = vlaneseq
  %v179 = vshrl.u32 %v178, 7
  %v180 = vsub.s32 0, %v179
  %v181 = vrot.slane %v176, %v180
  %v182 = vlaneseq
  %v183 = vshrl.u32 %v182, 7
  %v184 = vsub.s32 1, %v183
  %v185 = vrot.slane %v176, %v184
  %v186 = vlaneseq
  %v187 = vshrl.u32 %v186, 7
  %v188 = vsub.s32 2, %v187
  %v189 = vrot.slane %v176, %v188
  %v190 = vlaneseq
  %v191 = vshrl.u32 %v190, 7
  %v192 = vsub.s32 3, %v191
  %v193 = vrot.slane %v176, %v192
  %194 = vrot.lane.b32.xlu0 %v181, 112
  %v195 = vpop.permute.xlu0 %194
  %196 = vrot.lane.b32.xlu0 %v185, 112
  %v197 = vpop.permute.xlu0 %196
  %198 = vrot.lane.b32.xlu0 %v189, 112
  %v199 = vpop.permute.xlu0 %198
  %200 = vrot.lane.b32.xlu0 %v193, 112
  %v201 = vpop.permute.xlu0 %200
  %vm202 = vcmask 916480
  %v203 = vsel %vm202, %v195, %v197
  %v204 = vsel %vm202, %v197, %v199
  %v205 = vsel %vm202, %v199, %v201
  %v211 = vmul.f32 %v165, %v195
  %v212 = vmul.f32 %v166, %v203
  %v213 = vmul.f32 %v167, %v204
  %v214 = vmul.f32 %v168, %v205
  %v215 = vmul.f32 %v169, %v201
  %v216 = vmul.f32 %v170, %v195
  %v217 = vmul.f32 %v171, %v203
  %v218 = vmul.f32 %v172, %v204
  %v219 = vmul.f32 %v173, %v205
  %v220 = vmul.f32 %v174, %v201
  %231 = vrot.lane.b32.xlu0 %v211, 16
  %v232 = vpop.permute.xlu0 %231
  %233 = vrot.lane.b32.xlu0 %v212, 16
  %v234 = vpop.permute.xlu0 %233
  %235 = vrot.lane.b32.xlu0 %v213, 16
  %v236 = vpop.permute.xlu0 %235
  %237 = vrot.lane.b32.xlu0 %v214, 16
  %v238 = vpop.permute.xlu0 %237
  %239 = vrot.lane.b32.xlu0 %v215, 16
  %v240 = vpop.permute.xlu0 %239
  %241 = vrot.lane.b32.xlu0 %v216, 16
  %v242 = vpop.permute.xlu0 %241
  %243 = vrot.lane.b32.xlu0 %v217, 16
  %v244 = vpop.permute.xlu0 %243
  %245 = vrot.lane.b32.xlu0 %v218, 16
  %v246 = vpop.permute.xlu0 %245
  %247 = vrot.lane.b32.xlu0 %v219, 16
  %v248 = vpop.permute.xlu0 %247
  %249 = vrot.lane.b32.xlu0 %v220, 16
  %v250 = vpop.permute.xlu0 %249
  %vm251 = vcmask 130048
  %v252 = vsel %vm251, %v232, %v234
  %v253 = vsel %vm251, %v234, %v236
  %v254 = vsel %vm251, %v236, %v238
  %v255 = vsel %vm251, %v238, %v240
  %v256 = vsel %vm251, %v242, %v244
  %v257 = vsel %vm251, %v244, %v246
  %v258 = vsel %vm251, %v246, %v248
  %v259 = vsel %vm251, %v248, %v250
  %268 = vst [vmem:[#allocation3 + $0x40] sm:$0xff] %v252
  %269 = vst [vmem:[#allocation3 + $0x48] sm:$0xff] %v253
  %270 = vst [vmem:[#allocation3 + $0x50] sm:$0xff] %v254
  %271 = vst [vmem:[#allocation3 + $0x58] sm:$0xff] %v255
  %272 = vst [vmem:[#allocation3 + $0x60] sm:$0xff] %v256
  %273 = vst [vmem:[#allocation3 + $0x68] sm:$0xff] %v257
  %274 = vst [vmem:[#allocation3 + $0x70] sm:$0xff] %v258
  %275 = vst [vmem:[#allocation3 + $0x78] sm:$0xff] %v259
  %v276 = vld [vmem:[#allocation2] sm:$0xff]
  %v277 = vld [vmem:[#allocation2 + $0x8] sm:$0xff]
  %v278 = vld [vmem:[#allocation2 + $0x10] sm:$0xff]
  %v279 = vld [vmem:[#allocation2 + $0x18] sm:$0xff]
  %v280 = vld [vmem:[#allocation2 + $0x20] sm:$0xff]
  %v281 = vld [vmem:[#allocation2 + $0x30] sm:$0xff]
  %v282 = vld [vmem:[#allocation2 + $0x38] sm:$0xff]
  %v283 = vld [vmem:[#allocation2 + $0x40] sm:$0xff]
  %v284 = vld [vmem:[#allocation2 + $0x48] sm:$0xff]
  %v285 = vld [vmem:[#allocation2 + $0x50] sm:$0xff]
  %s286 = scalar_lea.vmem %s7, 2
  %v287 = vld [vmem:[%s286] ss:$8 sm:$0xf]
  %v289 = vlaneseq
  %v290 = vshrl.u32 %v289, 7
  %v291 = vsub.s32 0, %v290
  %v292 = vrot.slane %v287, %v291
  %v293 = vlaneseq
  %v294 = vshrl.u32 %v293, 7
  %v295 = vsub.s32 1, %v294
  %v296 = vrot.slane %v287, %v295
  %v297 = vlaneseq
  %v298 = vshrl.u32 %v297, 7
  %v299 = vsub.s32 2, %v298
  %v300 = vrot.slane %v287, %v299
  %v301 = vlaneseq
  %v302 = vshrl.u32 %v301, 7
  %v303 = vsub.s32 3, %v302
  %v304 = vrot.slane %v287, %v303
  %305 = vrot.lane.b32.xlu0 %v292, 113
  %v306 = vpop.permute.xlu0 %305
  %307 = vrot.lane.b32.xlu0 %v296, 113
  %v308 = vpop.permute.xlu0 %307
  %309 = vrot.lane.b32.xlu0 %v300, 113
  %v310 = vpop.permute.xlu0 %309
  %311 = vrot.lane.b32.xlu0 %v304, 113
  %v312 = vpop.permute.xlu0 %311
  %vm313 = vcmask 924672
  %v314 = vsel %vm313, %v306, %v308
  %v315 = vsel %vm313, %v308, %v310
  %v316 = vsel %vm313, %v310, %v312
  %v322 = vmul.f32 %v276, %v306
  %v323 = vmul.f32 %v277, %v314
  %v324 = vmul.f32 %v278, %v315
  %v325 = vmul.f32 %v279, %v316
  %v326 = vmul.f32 %v280, %v312
  %v327 = vmul.f32 %v281, %v306
  %v328 = vmul.f32 %v282, %v314
  %v329 = vmul.f32 %v283, %v315
  %v330 = vmul.f32 %v284, %v316
  %v331 = vmul.f32 %v285, %v312
  %342 = vrot.lane.b32.xlu0 %v322, 15
  %v343 = vpop.permute.xlu0 %342
  %344 = vrot.lane.b32.xlu0 %v323, 15
  %v345 = vpop.permute.xlu0 %344
  %346 = vrot.lane.b32.xlu0 %v324, 15
  %v347 = vpop.permute.xlu0 %346
  %348 = vrot.lane.b32.xlu0 %v325, 15
  %v349 = vpop.permute.xlu0 %348
  %350 = vrot.lane.b32.xlu0 %v326, 15
  %v351 = vpop.permute.xlu0 %350
  %352 = vrot.lane.b32.xlu0 %v327, 15
  %v353 = vpop.permute.xlu0 %352
  %354 = vrot.lane.b32.xlu0 %v328, 15
  %v355 = vpop.permute.xlu0 %354
  %356 = vrot.lane.b32.xlu0 %v329, 15
  %v357 = vpop.permute.xlu0 %356
  %358 = vrot.lane.b32.xlu0 %v330, 15
  %v359 = vpop.permute.xlu0 %358
  %360 = vrot.lane.b32.xlu0 %v331, 15
  %v361 = vpop.permute.xlu0 %360
  %vm362 = vcmask 121856
  %v363 = vsel %vm362, %v343, %v345
  %v364 = vsel %vm362, %v345, %v347
  %v365 = vsel %vm362, %v347, %v349
  %v366 = vsel %vm362, %v349, %v351
  %v367 = vsel %vm362, %v353, %v355
  %v368 = vsel %vm362, %v355, %v357
  %v369 = vsel %vm362, %v357, %v359
  %v370 = vsel %vm362, %v359, %v361
  %379 = vst [vmem:[#allocation3 + $0x80] sm:$0xff] %v363
  %380 = vst [vmem:[#allocation3 + $0x88] sm:$0xff] %v364
  %381 = vst [vmem:[#allocation3 + $0x90] sm:$0xff] %v365
  %382 = vst [vmem:[#allocation3 + $0x98] sm:$0xff] %v366
  %383 = vst [vmem:[#allocation3 + $0xa0] sm:$0xff] %v367
  %384 = vst [vmem:[#allocation3 + $0xa8] sm:$0xff] %v368
  %385 = vst [vmem:[#allocation3 + $0xb0] sm:$0xff] %v369
  %386 = vst [vmem:[#allocation3 + $0xb8] sm:$0xff] %v370
  %v387 = vld [vmem:[#allocation2] sm:$0xff]
  %v388 = vld [vmem:[#allocation2 + $0x8] sm:$0xff]
  %v389 = vld [vmem:[#allocation2 + $0x10] sm:$0xff]
  %v390 = vld [vmem:[#allocation2 + $0x18] sm:$0xff]
  %v391 = vld [vmem:[#allocation2 + $0x20] sm:$0xff]
  %v392 = vld [vmem:[#allocation2 + $0x30] sm:$0xff]
  %v393 = vld [vmem:[#allocation2 + $0x38] sm:$0xff]
  %v394 = vld [vmem:[#allocation2 + $0x40] sm:$0xff]
  %v395 = vld [vmem:[#allocation2 + $0x48] sm:$0xff]
  %v396 = vld [vmem:[#allocation2 + $0x50] sm:$0xff]
  %s397 = scalar_lea.vmem %s7, 3
  %v398 = vld [vmem:[%s397] ss:$8 sm:$0xf]
  %v400 = vlaneseq
  %v401 = vshrl.u32 %v400, 7
  %v402 = vsub.s32 0, %v401
  %v403 = vrot.slane %v398, %v402
  %v404 = vlaneseq
  %v405 = vshrl.u32 %v404, 7
  %v406 = vsub.s32 1, %v405
  %v407 = vrot.slane %v398, %v406
  %v408 = vlaneseq
  %v409 = vshrl.u32 %v408, 7
  %v410 = vsub.s32 2, %v409
  %v411 = vrot.slane %v398, %v410
  %v412 = vlaneseq
  %v413 = vshrl.u32 %v412, 7
  %v414 = vsub.s32 3, %v413
  %v415 = vrot.slane %v398, %v414
  %416 = vrot.lane.b32.xlu0 %v403, 127
  %v417 = vpop.permute.xlu0 %416
  %418 = vrot.lane.b32.xlu0 %v407, 127
  %v419 = vpop.permute.xlu0 %418
  %420 = vrot.lane.b32.xlu0 %v411, 127
  %v421 = vpop.permute.xlu0 %420
  %422 = vrot.lane.b32.xlu0 %v415, 127
  %v423 = vpop.permute.xlu0 %422
  %vm424 = vcmask 1039360
  %v425 = vsel %vm424, %v417, %v419
  %v426 = vsel %vm424, %v419, %v421
  %v427 = vsel %vm424, %v421, %v423
  %v433 = vmul.f32 %v387, %v417
  %v434 = vmul.f32 %v388, %v425
  %v435 = vmul.f32 %v389, %v426
  %v436 = vmul.f32 %v390, %v427
  %v437 = vmul.f32 %v391, %v423
  %v438 = vmul.f32 %v392, %v417
  %v439 = vmul.f32 %v393, %v425
  %v440 = vmul.f32 %v394, %v426
  %v441 = vmul.f32 %v395, %v427
  %v442 = vmul.f32 %v396, %v423
  %453 = vrot.lane.b32.xlu0 %v433, 1
  %v454 = vpop.permute.xlu0 %453
  %455 = vrot.lane.b32.xlu0 %v434, 1
  %v456 = vpop.permute.xlu0 %455
  %457 = vrot.lane.b32.xlu0 %v435, 1
  %v458 = vpop.permute.xlu0 %457
  %459 = vrot.lane.b32.xlu0 %v436, 1
  %v460 = vpop.permute.xlu0 %459
  %461 = vrot.lane.b32.xlu0 %v437, 1
  %v462 = vpop.permute.xlu0 %461
  %463 = vrot.lane.b32.xlu0 %v438, 1
  %v464 = vpop.permute.xlu0 %463
  %465 = vrot.lane.b32.xlu0 %v439, 1
  %v466 = vpop.permute.xlu0 %465
  %467 = vrot.lane.b32.xlu0 %v440, 1
  %v468 = vpop.permute.xlu0 %467
  %469 = vrot.lane.b32.xlu0 %v441, 1
  %v470 = vpop.permute.xlu0 %469
  %471 = vrot.lane.b32.xlu0 %v442, 1
  %v472 = vpop.permute.xlu0 %471
  %vm473 = vcmask 7168
  %v474 = vsel %vm473, %v454, %v456
  %v475 = vsel %vm473, %v456, %v458
  %v476 = vsel %vm473, %v458, %v460
  %v477 = vsel %vm473, %v460, %v462
  %v478 = vsel %vm473, %v464, %v466
  %v479 = vsel %vm473, %v466, %v468
  %v480 = vsel %vm473, %v468, %v470
  %v481 = vsel %vm473, %v470, %v472
  %490 = vst [vmem:[#allocation3 + $0xc0] sm:$0xff] %v474
  %491 = vst [vmem:[#allocation3 + $0xc8] sm:$0xff] %v475
  %492 = vst [vmem:[#allocation3 + $0xd0] sm:$0xff] %v476
  %493 = vst [vmem:[#allocation3 + $0xd8] sm:$0xff] %v477
  %494 = vst [vmem:[#allocation3 + $0xe0] sm:$0xff] %v478
  %495 = vst [vmem:[#allocation3 + $0xe8] sm:$0xff] %v479
  %496 = vst [vmem:[#allocation3 + $0xf0] sm:$0xff] %v480
  %497 = vst [vmem:[#allocation3 + $0xf8] sm:$0xff] %v481
  %498 = vst [vmem:[#allocation3 + $0x100] sm:$0xff] %v39
  %499 = vst [vmem:[#allocation3 + $0x108] sm:$0xff] %v40
  %500 = vst [vmem:[#allocation3 + $0x110] sm:$0xff] %v41
  %501 = vst [vmem:[#allocation3 + $0x118] sm:$0xff] %v42
  %502 = vst [vmem:[#allocation3 + $0x120] sm:$0xff] %v43
  %503 = vst [vmem:[#allocation3 + $0x128] sm:$0xff] %v44
  %504 = vst [vmem:[#allocation3 + $0x130] sm:$0xff] %v45
  %505 = vst [vmem:[#allocation3 + $0x138] sm:$0xff] %v46
  %v506 = vld [vmem:[#allocation2 + $0x8] sm:$0xff]
  %v507 = vld [vmem:[#allocation2 + $0x10] sm:$0xff]
  %v508 = vld [vmem:[#allocation2 + $0x18] sm:$0xff]
  %v509 = vld [vmem:[#allocation2 + $0x20] sm:$0xff]
  %v510 = vld [vmem:[#allocation2 + $0x28] sm:$0xff]
  %v511 = vld [vmem:[#allocation2 + $0x38] sm:$0xff]
  %v512 = vld [vmem:[#allocation2 + $0x40] sm:$0xff]
  %v513 = vld [vmem:[#allocation2 + $0x48] sm:$0xff]
  %v514 = vld [vmem:[#allocation2 + $0x50] sm:$0xff]
  %v515 = vld [vmem:[#allocation2 + $0x58] sm:$0xff]
  %s516 = scalar_lea.vmem %s7, 4
  %v517 = vld [vmem:[%s516] ss:$8 sm:$0xf]
  %v519 = vlaneseq
  %v520 = vshrl.u32 %v519, 7
  %v521 = vsub.s32 0, %v520
  %v522 = vrot.slane %v517, %v521
  %v523 = vlaneseq
  %v524 = vshrl.u32 %v523, 7
  %v525 = vsub.s32 1, %v524
  %v526 = vrot.slane %v517, %v525
  %v527 = vlaneseq
  %v528 = vshrl.u32 %v527, 7
  %v529 = vsub.s32 2, %v528
  %v530 = vrot.slane %v517, %v529
  %v531 = vlaneseq
  %v532 = vshrl.u32 %v531, 7
  %v533 = vsub.s32 3, %v532
  %v534 = vrot.slane %v517, %v533
  %535 = vrot.lane.b32.xlu0 %v522, 1
  %v536 = vpop.permute.xlu0 %535
  %537 = vrot.lane.b32.xlu0 %v526, 1
  %v538 = vpop.permute.xlu0 %537
  %539 = vrot.lane.b32.xlu0 %v530, 1
  %v540 = vpop.permute.xlu0 %539
  %541 = vrot.lane.b32.xlu0 %v534, 1
  %v542 = vpop.permute.xlu0 %541
  %v543 = vsel %vm473, %v536, %v538
  %v544 = vsel %vm473, %v538, %v540
  %v545 = vsel %vm473, %v540, %v542
  %v551 = vmul.f32 %v506, %v536
  %v552 = vmul.f32 %v507, %v543
  %v553 = vmul.f32 %v508, %v544
  %v554 = vmul.f32 %v509, %v545
  %v555 = vmul.f32 %v510, %v542
  %v556 = vmul.f32 %v511, %v536
  %v557 = vmul.f32 %v512, %v543
  %v558 = vmul.f32 %v513, %v544
  %v559 = vmul.f32 %v514, %v545
  %v560 = vmul.f32 %v515, %v542
  %571 = vrot.lane.b32.xlu0 %v551, 127
  %v572 = vpop.permute.xlu0 %571
  %573 = vrot.lane.b32.xlu0 %v552, 127
  %v574 = vpop.permute.xlu0 %573
  %575 = vrot.lane.b32.xlu0 %v553, 127
  %v576 = vpop.permute.xlu0 %575
  %577 = vrot.lane.b32.xlu0 %v554, 127
  %v578 = vpop.permute.xlu0 %577
  %579 = vrot.lane.b32.xlu0 %v555, 127
  %v580 = vpop.permute.xlu0 %579
  %581 = vrot.lane.b32.xlu0 %v556, 127
  %v582 = vpop.permute.xlu0 %581
  %583 = vrot.lane.b32.xlu0 %v557, 127
  %v584 = vpop.permute.xlu0 %583
  %585 = vrot.lane.b32.xlu0 %v558, 127
  %v586 = vpop.permute.xlu0 %585
  %587 = vrot.lane.b32.xlu0 %v559, 127
  %v588 = vpop.permute.xlu0 %587
  %589 = vrot.lane.b32.xlu0 %v560, 127
  %v590 = vpop.permute.xlu0 %589
  %v591 = vsel %vm424, %v572, %v574
  %v592 = vsel %vm424, %v574, %v576
  %v593 = vsel %vm424, %v576, %v578
  %v594 = vsel %vm424, %v578, %v580
  %v595 = vsel %vm424, %v582, %v584
  %v596 = vsel %vm424, %v584, %v586
  %v597 = vsel %vm424, %v586, %v588
  %v598 = vsel %vm424, %v588, %v590
  %607 = vst [vmem:[#allocation3 + $0x140] sm:$0xff] %v591
  %608 = vst [vmem:[#allocation3 + $0x148] sm:$0xff] %v592
  %609 = vst [vmem:[#allocation3 + $0x150] sm:$0xff] %v593
  %610 = vst [vmem:[#allocation3 + $0x158] sm:$0xff] %v594
  %611 = vst [vmem:[#allocation3 + $0x160] sm:$0xff] %v595
  %612 = vst [vmem:[#allocation3 + $0x168] sm:$0xff] %v596
  %613 = vst [vmem:[#allocation3 + $0x170] sm:$0xff] %v597
  %614 = vst [vmem:[#allocation3 + $0x178] sm:$0xff] %v598
  %v615 = vld [vmem:[#allocation2 + $0x8] sm:$0xff]
  %v616 = vld [vmem:[#allocation2 + $0x10] sm:$0xff]
  %v617 = vld [vmem:[#allocation2 + $0x18] sm:$0xff]
  %v618 = vld [vmem:[#allocation2 + $0x20] sm:$0xff]
  %v619 = vld [vmem:[#allocation2 + $0x28] sm:$0xff]
  %v620 = vld [vmem:[#allocation2 + $0x38] sm:$0xff]
  %v621 = vld [vmem:[#allocation2 + $0x40] sm:$0xff]
  %v622 = vld [vmem:[#allocation2 + $0x48] sm:$0xff]
  %v623 = vld [vmem:[#allocation2 + $0x50] sm:$0xff]
  %v624 = vld [vmem:[#allocation2 + $0x58] sm:$0xff]
  %s625 = scalar_lea.vmem %s7, 5
  %v626 = vld [vmem:[%s625] ss:$8 sm:$0xf]
  %v628 = vlaneseq
  %v629 = vshrl.u32 %v628, 7
  %v630 = vsub.s32 0, %v629
  %v631 = vrot.slane %v626, %v630
  %v632 = vlaneseq
  %v633 = vshrl.u32 %v632, 7
  %v634 = vsub.s32 1, %v633
  %v635 = vrot.slane %v626, %v634
  %v636 = vlaneseq
  %v637 = vshrl.u32 %v636, 7
  %v638 = vsub.s32 2, %v637
  %v639 = vrot.slane %v626, %v638
  %v640 = vlaneseq
  %v641 = vshrl.u32 %v640, 7
  %v642 = vsub.s32 3, %v641
  %v643 = vrot.slane %v626, %v642
  %644 = vrot.lane.b32.xlu0 %v631, 15
  %v645 = vpop.permute.xlu0 %644
  %646 = vrot.lane.b32.xlu0 %v635, 15
  %v647 = vpop.permute.xlu0 %646
  %648 = vrot.lane.b32.xlu0 %v639, 15
  %v649 = vpop.permute.xlu0 %648
  %650 = vrot.lane.b32.xlu0 %v643, 15
  %v651 = vpop.permute.xlu0 %650
  %v652 = vsel %vm362, %v645, %v647
  %v653 = vsel %vm362, %v647, %v649
  %v654 = vsel %vm362, %v649, %v651
  %v660 = vmul.f32 %v615, %v645
  %v661 = vmul.f32 %v616, %v652
  %v662 = vmul.f32 %v617, %v653
  %v663 = vmul.f32 %v618, %v654
  %v664 = vmul.f32 %v619, %v651
  %v665 = vmul.f32 %v620, %v645
  %v666 = vmul.f32 %v621, %v652
  %v667 = vmul.f32 %v622, %v653
  %v668 = vmul.f32 %v623, %v654
  %v669 = vmul.f32 %v624, %v651
  %680 = vrot.lane.b32.xlu0 %v660, 113
  %v681 = vpop.permute.xlu0 %680
  %682 = vrot.lane.b32.xlu0 %v661, 113
  %v683 = vpop.permute.xlu0 %682
  %684 = vrot.lane.b32.xlu0 %v662, 113
  %v685 = vpop.permute.xlu0 %684
  %686 = vrot.lane.b32.xlu0 %v663, 113
  %v687 = vpop.permute.xlu0 %686
  %688 = vrot.lane.b32.xlu0 %v664, 113
  %v689 = vpop.permute.xlu0 %688
  %690 = vrot.lane.b32.xlu0 %v665, 113
  %v691 = vpop.permute.xlu0 %690
  %692 = vrot.lane.b32.xlu0 %v666, 113
  %v693 = vpop.permute.xlu0 %692
  %694 = vrot.lane.b32.xlu0 %v667, 113
  %v695 = vpop.permute.xlu0 %694
  %696 = vrot.lane.b32.xlu0 %v668, 113
  %v697 = vpop.permute.xlu0 %696
  %698 = vrot.lane.b32.xlu0 %v669, 113
  %v699 = vpop.permute.xlu0 %698
  %v700 = vsel %vm313, %v681, %v683
  %v701 = vsel %vm313, %v683, %v685
  %v702 = vsel %vm313, %v685, %v687
  %v703 = vsel %vm313, %v687, %v689
  %v704 = vsel %vm313, %v691, %v693
  %v705 = vsel %vm313, %v693, %v695
  %v706 = vsel %vm313, %v695, %v697
  %v707 = vsel %vm313, %v697, %v699
  %716 = vst [vmem:[#allocation3 + $0x180] sm:$0xff] %v700
  %717 = vst [vmem:[#allocation3 + $0x188] sm:$0xff] %v701
  %718 = vst [vmem:[#allocation3 + $0x190] sm:$0xff] %v702
  %719 = vst [vmem:[#allocation3 + $0x198] sm:$0xff] %v703
  %720 = vst [vmem:[#allocation3 + $0x1a0] sm:$0xff] %v704
  %721 = vst [vmem:[#allocation3 + $0x1a8] sm:$0xff] %v705
  %722 = vst [vmem:[#allocation3 + $0x1b0] sm:$0xff] %v706
  %723 = vst [vmem:[#allocation3 + $0x1b8] sm:$0xff] %v707
  %v724 = vld [vmem:[#allocation2 + $0x8] sm:$0xff]
  %v725 = vld [vmem:[#allocation2 + $0x10] sm:$0xff]
  %v726 = vld [vmem:[#allocation2 + $0x18] sm:$0xff]
  %v727 = vld [vmem:[#allocation2 + $0x20] sm:$0xff]
  %v728 = vld [vmem:[#allocation2 + $0x28] sm:$0xff]
  %v729 = vld [vmem:[#allocation2 + $0x38] sm:$0xff]
  %v730 = vld [vmem:[#allocation2 + $0x40] sm:$0xff]
  %v731 = vld [vmem:[#allocation2 + $0x48] sm:$0xff]
  %v732 = vld [vmem:[#allocation2 + $0x50] sm:$0xff]
  %v733 = vld [vmem:[#allocation2 + $0x58] sm:$0xff]
  %s734 = scalar_lea.vmem %s7, 6
  %v735 = vld [vmem:[%s734] ss:$8 sm:$0xf]
  %v737 = vlaneseq
  %v738 = vshrl.u32 %v737, 7
  %v739 = vsub.s32 0, %v738
  %v740 = vrot.slane %v735, %v739
  %v741 = vlaneseq
  %v742 = vshrl.u32 %v741, 7
  %v743 = vsub.s32 1, %v742
  %v744 = vrot.slane %v735, %v743
  %v745 = vlaneseq
  %v746 = vshrl.u32 %v745, 7
  %v747 = vsub.s32 2, %v746
  %v748 = vrot.slane %v735, %v747
  %v749 = vlaneseq
  %v750 = vshrl.u32 %v749, 7
  %v751 = vsub.s32 3, %v750
  %v752 = vrot.slane %v735, %v751
  %753 = vrot.lane.b32.xlu0 %v740, 16
  %v754 = vpop.permute.xlu0 %753
  %755 = vrot.lane.b32.xlu0 %v744, 16
  %v756 = vpop.permute.xlu0 %755
  %757 = vrot.lane.b32.xlu0 %v748, 16
  %v758 = vpop.permute.xlu0 %757
  %759 = vrot.lane.b32.xlu0 %v752, 16
  %v760 = vpop.permute.xlu0 %759
  %v761 = vsel %vm251, %v754, %v756
  %v762 = vsel %vm251, %v756, %v758
  %v763 = vsel %vm251, %v758, %v760
  %v769 = vmul.f32 %v724, %v754
  %v770 = vmul.f32 %v725, %v761
  %v771 = vmul.f32 %v726, %v762
  %v772 = vmul.f32 %v727, %v763
  %v773 = vmul.f32 %v728, %v760
  %v774 = vmul.f32 %v729, %v754
  %v775 = vmul.f32 %v730, %v761
  %v776 = vmul.f32 %v731, %v762
  %v777 = vmul.f32 %v732, %v763
  %v778 = vmul.f32 %v733, %v760
  %789 = vrot.lane.b32.xlu0 %v769, 112
  %v790 = vpop.permute.xlu0 %789
  %791 = vrot.lane.b32.xlu0 %v770, 112
  %v792 = vpop.permute.xlu0 %791
  %793 = vrot.lane.b32.xlu0 %v771, 112
  %v794 = vpop.permute.xlu0 %793
  %795 = vrot.lane.b32.xlu0 %v772, 112
  %v796 = vpop.permute.xlu0 %795
  %797 = vrot.lane.b32.xlu0 %v773, 112
  %v798 = vpop.permute.xlu0 %797
  %799 = vrot.lane.b32.xlu0 %v774, 112
  %v800 = vpop.permute.xlu0 %799
  %801 = vrot.lane.b32.xlu0 %v775, 112
  %v802 = vpop.permute.xlu0 %801
  %803 = vrot.lane.b32.xlu0 %v776, 112
  %v804 = vpop.permute.xlu0 %803
  %805 = vrot.lane.b32.xlu0 %v777, 112
  %v806 = vpop.permute.xlu0 %805
  %807 = vrot.lane.b32.xlu0 %v778, 112
  %v808 = vpop.permute.xlu0 %807
  %v809 = vsel %vm202, %v790, %v792
  %v810 = vsel %vm202, %v792, %v794
  %v811 = vsel %vm202, %v794, %v796
  %v812 = vsel %vm202, %v796, %v798
  %v813 = vsel %vm202, %v800, %v802
  %v814 = vsel %vm202, %v802, %v804
  %v815 = vsel %vm202, %v804, %v806
  %v816 = vsel %vm202, %v806, %v808
  %825 = vst [vmem:[#allocation3 + $0x1c0] sm:$0xff] %v809
  %826 = vst [vmem:[#allocation3 + $0x1c8] sm:$0xff] %v810
  %827 = vst [vmem:[#allocation3 + $0x1d0] sm:$0xff] %v811
  %828 = vst [vmem:[#allocation3 + $0x1d8] sm:$0xff] %v812
  %829 = vst [vmem:[#allocation3 + $0x1e0] sm:$0xff] %v813
  %830 = vst [vmem:[#allocation3 + $0x1e8] sm:$0xff] %v814
  %831 = vst [vmem:[#allocation3 + $0x1f0] sm:$0xff] %v815
  %832 = vst [vmem:[#allocation3 + $0x1f8] sm:$0xff] %v816
  %v833 = vld [vmem:[#allocation2 + $0x8] sm:$0xff]
  %v834 = vld [vmem:[#allocation2 + $0x10] sm:$0xff]
  %v835 = vld [vmem:[#allocation2 + $0x18] sm:$0xff]
  %v836 = vld [vmem:[#allocation2 + $0x20] sm:$0xff]
  %v837 = vld [vmem:[#allocation2 + $0x28] sm:$0xff]
  %v838 = vld [vmem:[#allocation2 + $0x38] sm:$0xff]
  %v839 = vld [vmem:[#allocation2 + $0x40] sm:$0xff]
  %v840 = vld [vmem:[#allocation2 + $0x48] sm:$0xff]
  %v841 = vld [vmem:[#allocation2 + $0x50] sm:$0xff]
  %v842 = vld [vmem:[#allocation2 + $0x58] sm:$0xff]
  %s843 = scalar_lea.vmem %s7, 7
  %v844 = vld [vmem:[%s843] ss:$8 sm:$0xf]
  %v846 = vlaneseq
  %v847 = vshrl.u32 %v846, 7
  %v848 = vsub.s32 0, %v847
  %v849 = vrot.slane %v844, %v848
  %v850 = vlaneseq
  %v851 = vshrl.u32 %v850, 7
  %v852 = vsub.s32 1, %v851
  %v853 = vrot.slane %v844, %v852
  %v854 = vlaneseq
  %v855 = vshrl.u32 %v854, 7
  %v856 = vsub.s32 2, %v855
  %v857 = vrot.slane %v844, %v856
  %v858 = vlaneseq
  %v859 = vshrl.u32 %v858, 7
  %v860 = vsub.s32 3, %v859
  %v861 = vrot.slane %v844, %v860
  %862 = vrot.lane.b32.xlu0 %v849, 17
  %v863 = vpop.permute.xlu0 %862
  %864 = vrot.lane.b32.xlu0 %v853, 17
  %v865 = vpop.permute.xlu0 %864
  %866 = vrot.lane.b32.xlu0 %v857, 17
  %v867 = vpop.permute.xlu0 %866
  %868 = vrot.lane.b32.xlu0 %v861, 17
  %v869 = vpop.permute.xlu0 %868
  %v870 = vsel %vm140, %v863, %v865
  %v871 = vsel %vm140, %v865, %v867
  %v872 = vsel %vm140, %v867, %v869
  %v878 = vmul.f32 %v833, %v863
  %v879 = vmul.f32 %v834, %v870
  %v880 = vmul.f32 %v835, %v871
  %v881 = vmul.f32 %v836, %v872
  %v882 = vmul.f32 %v837, %v869
  %v883 = vmul.f32 %v838, %v863
  %v884 = vmul.f32 %v839, %v870
  %v885 = vmul.f32 %v840, %v871
  %v886 = vmul.f32 %v841, %v872
  %v887 = vmul.f32 %v842, %v869
  %898 = vrot.lane.b32.xlu0 %v878, 111
  %v899 = vpop.permute.xlu0 %898
  %900 = vrot.lane.b32.xlu0 %v879, 111
  %v901 = vpop.permute.xlu0 %900
  %902 = vrot.lane.b32.xlu0 %v880, 111
  %v903 = vpop.permute.xlu0 %902
  %904 = vrot.lane.b32.xlu0 %v881, 111
  %v905 = vpop.permute.xlu0 %904
  %906 = vrot.lane.b32.xlu0 %v882, 111
  %v907 = vpop.permute.xlu0 %906
  %908 = vrot.lane.b32.xlu0 %v883, 111
  %v909 = vpop.permute.xlu0 %908
  %910 = vrot.lane.b32.xlu0 %v884, 111
  %v911 = vpop.permute.xlu0 %910
  %912 = vrot.lane.b32.xlu0 %v885, 111
  %v913 = vpop.permute.xlu0 %912
  %914 = vrot.lane.b32.xlu0 %v886, 111
  %v915 = vpop.permute.xlu0 %914
  %916 = vrot.lane.b32.xlu0 %v887, 111
  %v917 = vpop.permute.xlu0 %916
  %v918 = vsel %vm91, %v899, %v901
  %v919 = vsel %vm91, %v901, %v903
  %v920 = vsel %vm91, %v903, %v905
  %v921 = vsel %vm91, %v905, %v907
  %v922 = vsel %vm91, %v909, %v911
  %v923 = vsel %vm91, %v911, %v913
  %v924 = vsel %vm91, %v913, %v915
  %v925 = vsel %vm91, %v915, %v917
  %934 = vst [vmem:[#allocation3 + $0x200] sm:$0xff] %v918
  %935 = vst [vmem:[#allocation3 + $0x208] sm:$0xff] %v919
  %936 = vst [vmem:[#allocation3 + $0x210] sm:$0xff] %v920
  %937 = vst [vmem:[#allocation3 + $0x218] sm:$0xff] %v921
  %938 = vst [vmem:[#allocation3 + $0x220] sm:$0xff] %v922
  %939 = vst [vmem:[#allocation3 + $0x228] sm:$0xff] %v923
  %940 = vst [vmem:[#allocation3 + $0x230] sm:$0xff] %v924
  %941 = vst [vmem:[#allocation3 + $0x238] sm:$0xff] %v925
  %v942 = vld [vmem:[%s1] sm:$0xff]
  %v943 = vld [vmem:[%s1 + $0x8] sm:$0xff]
  %v944 = vld [vmem:[%s1 + $0x10] sm:$0xff]
  %v945 = vld [vmem:[%s1 + $0x18] sm:$0xff]
  %v946 = vld [vmem:[#allocation3] sm:$0xff]
  %v947 = vld [vmem:[#allocation3 + $0x8] sm:$0xff]
  %v948 = vld [vmem:[#allocation3 + $0x10] sm:$0xff]
  %v949 = vld [vmem:[#allocation3 + $0x18] sm:$0xff]
  %v950 = vld [vmem:[#allocation3 + $0x20] sm:$0xff]
  %v951 = vld [vmem:[#allocation3 + $0x28] sm:$0xff]
  %v952 = vld [vmem:[#allocation3 + $0x30] sm:$0xff]
  %v953 = vld [vmem:[#allocation3 + $0x38] sm:$0xff]
  %v954 = vld [vmem:[#allocation3 + $0x40] sm:$0xff]
  %v955 = vld [vmem:[#allocation3 + $0x48] sm:$0xff]
  %v956 = vld [vmem:[#allocation3 + $0x50] sm:$0xff]
  %v957 = vld [vmem:[#allocation3 + $0x58] sm:$0xff]
  %v958 = vld [vmem:[#allocation3 + $0x60] sm:$0xff]
  %v959 = vld [vmem:[#allocation3 + $0x68] sm:$0xff]
  %v960 = vld [vmem:[#allocation3 + $0x70] sm:$0xff]
  %v961 = vld [vmem:[#allocation3 + $0x78] sm:$0xff]
  %v962 = vld [vmem:[#allocation3 + $0x80] sm:$0xff]
  %v963 = vld [vmem:[#allocation3 + $0x88] sm:$0xff]
  %v964 = vld [vmem:[#allocation3 + $0x90] sm:$0xff]
  %v965 = vld [vmem:[#allocation3 + $0x98] sm:$0xff]
  %v966 = vld [vmem:[#allocation3 + $0xa0] sm:$0xff]
  %v967 = vld [vmem:[#allocation3 + $0xa8] sm:$0xff]
  %v968 = vld [vmem:[#allocation3 + $0xb0] sm:$0xff]
  %v969 = vld [vmem:[#allocation3 + $0xb8] sm:$0xff]
  %v970 = vld [vmem:[#allocation3 + $0xc0] sm:$0xff]
  %v971 = vld [vmem:[#allocation3 + $0xc8] sm:$0xff]
  %v972 = vld [vmem:[#allocation3 + $0xd0] sm:$0xff]
  %v973 = vld [vmem:[#allocation3 + $0xd8] sm:$0xff]
  %v974 = vld [vmem:[#allocation3 + $0xe0] sm:$0xff]
  %v975 = vld [vmem:[#allocation3 + $0xe8] sm:$0xff]
  %v976 = vld [vmem:[#allocation3 + $0xf0] sm:$0xff]
  %v977 = vld [vmem:[#allocation3 + $0xf8] sm:$0xff]
  %v978 = vld [vmem:[#allocation3 + $0x100] sm:$0xff]
  %v979 = vld [vmem:[#allocation3 + $0x108] sm:$0xff]
  %v980 = vld [vmem:[#allocation3 + $0x110] sm:$0xff]
  %v981 = vld [vmem:[#allocation3 + $0x118] sm:$0xff]
  %v982 = vld [vmem:[#allocation3 + $0x120] sm:$0xff]
  %v983 = vld [vmem:[#allocation3 + $0x128] sm:$0xff]
  %v984 = vld [vmem:[#allocation3 + $0x130] sm:$0xff]
  %v985 = vld [vmem:[#allocation3 + $0x138] sm:$0xff]
  %v986 = vld [vmem:[#allocation3 + $0x140] sm:$0xff]
  %v987 = vld [vmem:[#allocation3 + $0x148] sm:$0xff]
  %v988 = vld [vmem:[#allocation3 + $0x150] sm:$0xff]
  %v989 = vld [vmem:[#allocation3 + $0x158] sm:$0xff]
  %v990 = vld [vmem:[#allocation3 + $0x160] sm:$0xff]
  %v991 = vld [vmem:[#allocation3 + $0x168] sm:$0xff]
  %v992 = vld [vmem:[#allocation3 + $0x170] sm:$0xff]
  %v993 = vld [vmem:[#allocation3 + $0x178] sm:$0xff]
  %v994 = vld [vmem:[#allocation3 + $0x180] sm:$0xff]
  %v995 = vld [vmem:[#allocation3 + $0x188] sm:$0xff]
  %v996 = vld [vmem:[#allocation3 + $0x190] sm:$0xff]
  %v997 = vld [vmem:[#allocation3 + $0x198] sm:$0xff]
  %v998 = vld [vmem:[#allocation3 + $0x1a0] sm:$0xff]
  %v999 = vld [vmem:[#allocation3 + $0x1a8] sm:$0xff]
  %v1000 = vld [vmem:[#allocation3 + $0x1b0] sm:$0xff]
  %v1001 = vld [vmem:[#allocation3 + $0x1b8] sm:$0xff]
  %v1002 = vld [vmem:[#allocation3 + $0x1c0] sm:$0xff]
  %v1003 = vld [vmem:[#allocation3 + $0x1c8] sm:$0xff]
  %v1004 = vld [vmem:[#allocation3 + $0x1d0] sm:$0xff]
  %v1005 = vld [vmem:[#allocation3 + $0x1d8] sm:$0xff]
  %v1006 = vld [vmem:[#allocation3 + $0x1e0] sm:$0xff]
  %v1007 = vld [vmem:[#allocation3 + $0x1e8] sm:$0xff]
  %v1008 = vld [vmem:[#allocation3 + $0x1f0] sm:$0xff]
  %v1009 = vld [vmem:[#allocation3 + $0x1f8] sm:$0xff]
  %v1010 = vld [vmem:[#allocation3 + $0x200] sm:$0xff]
  %v1011 = vld [vmem:[#allocation3 + $0x208] sm:$0xff]
  %v1012 = vld [vmem:[#allocation3 + $0x210] sm:$0xff]
  %v1013 = vld [vmem:[#allocation3 + $0x218] sm:$0xff]
  %v1014 = vld [vmem:[#allocation3 + $0x220] sm:$0xff]
  %v1015 = vld [vmem:[#allocation3 + $0x228] sm:$0xff]
  %v1016 = vld [vmem:[#allocation3 + $0x230] sm:$0xff]
  %v1017 = vld [vmem:[#allocation3 + $0x238] sm:$0xff]
  %v1018 = vld [vmem:[%s3] sm:$0xff]
  %v1019 = vld [vmem:[%s3 + $0x8] sm:$0xff]
  %1021 = vset.pattern.permute.xlu0 0
  %1022 = vperm.xlu0 %1021, %v1018
  %v1023 = vpop.permute.xlu0 %1022
  %1026 = vset.pattern.permute.xlu0 0
  %1027 = vperm.xlu0 %1026, %v1019
  %v1028 = vpop.permute.xlu0 %1027
  %v1031 = vsel %vm251, %v943, 0
  %v1034 = vsel %vm251, %v945, 0
  %1036 = vmatprep.subr.mxu0 %v947
  %1037 = vmatpush1.msra.mxu0 %v946
  %1038 = vmatprep.subr.mxu0 %v951
  %1039 = vmatpush1.msra.mxu0 %v950
  %1040 = vmatprep.subr.mxu0 %v955
  %1041 = vmatpush1.msra.mxu0 %v954
  %1042 = vmatprep.subr.mxu0 %v959
  %1043 = vmatpush1.msra.mxu0 %v958
  %1044 = vmatprep.subr.mxu0 %v963
  %1045 = vmatpush1.msra.mxu0 %v962
  %1046 = vmatprep.subr.mxu0 %v967
  %1047 = vmatpush1.msra.mxu0 %v966
  %1048 = vmatprep.subr.mxu0 %v971
  %1049 = vmatpush1.msra.mxu0 %v970
  %1050 = vmatprep.subr.mxu0 %v975
  %1051 = vmatpush1.msra.mxu0 %v974
  %1052 = vmatprep.subr.mxu0 %v979
  %1053 = vmatpush1.msra.mxu0 %v978
  %1054 = vmatprep.subr.mxu0 %v983
  %1055 = vmatpush1.msra.mxu0 %v982
  %1056 = vmatprep.subr.mxu0 %v987
  %1057 = vmatpush1.msra.mxu0 %v986
  %1058 = vmatprep.subr.mxu0 %v991
  %1059 = vmatpush1.msra.mxu0 %v990
  %1060 = vmatprep.subr.mxu0 %v995
  %1061 = vmatpush1.msra.mxu0 %v994
  %1062 = vmatprep.subr.mxu0 %v999
  %1063 = vmatpush1.msra.mxu0 %v998
  %1064 = vmatprep.subr.mxu0 %v1003
  %1065 = vmatpush1.msra.mxu0 %v1002
  %1066 = vmatprep.subr.mxu0 %v1007
  %1067 = vmatpush1.msra.mxu0 %v1006
  %1068 = vmatprep.subr.mxu0 %v1011
  %1069 = vmatpush1.msra.mxu0 %v1010
  %1070 = vmatprep.subr.mxu0 %v1015
  %1071 = vmatpush1.msra.mxu0 %v1014
  %1072 = vmatprep.subr.mxu0 0.0
  %1073 = vmatpush1.msra.mxu0 0.0
  %1074 = vmatprep.subr.mxu0 0.0
  %1075 = vmatpush1.msra.mxu0 0.0
  %1076 = vmatprep.subr.mxu0 0.0
  %1077 = vmatpush1.msra.mxu0 0.0
  %1078 = vmatprep.subr.mxu0 0.0
  %1079 = vmatpush1.msra.mxu0 0.0
  %1080 = vmatprep.subr.mxu0 0.0
  %1081 = vmatpush1.msra.mxu0 0.0
  %1082 = vmatprep.subr.mxu0 0.0
  %1083 = vmatpush1.msra.mxu0 0.0
  %1084 = vmatprep.subr.mxu0 0.0
  %1085 = vmatpush1.msra.mxu0 0.0
  %1086 = vmatprep.subr.mxu0 0.0
  %1087 = vmatpush1.msra.mxu0 0.0
  %1088 = vmatprep.subr.mxu0 0.0
  %1089 = vmatpush1.msra.mxu0 0.0
  %1090 = vmatprep.subr.mxu0 0.0
  %1091 = vmatpush1.msra.mxu0 0.0
  %1092 = vmatprep.subr.mxu0 0.0
  %1093 = vmatpush1.msra.mxu0 0.0
  %1094 = vmatprep.subr.mxu0 0.0
  %1095 = vmatpush1.msra.mxu0 0.0
  %1096 = vmatprep.subr.mxu0 0.0
  %1097 = vmatpush1.msra.mxu0 0.0
  %1098 = vmatprep.subr.mxu0 0.0
  %1099 = vmatpush1.msra.mxu0 0.0
  %1100 = vmatprep.mubr.f32.mxu0 %v1031
  %1101 = vmatmul.mubr.f32.gmra.mrb[0].mxu0 %v942
  %v1102 = vpop.f32.mrb[0].mxu0
  %v1103 = vadd.f32 %v1023, %v1102
  %v1104 = vpop.f32.mrb[0].mxu0
  %v1105 = vadd.f32 %v1023, %v1104
  %1106 = vmatprep.mubr.f32.mxu0 %v1034
  %1107 = vmatmul.mubr.f32.gmra.mrb[0].mxu0 %v944
  %v1108 = vpop.f32.mrb[0].mxu0
  %v1109 = vadd.f32 %v1028, %v1108
  %v1110 = vpop.f32.mrb[0].mxu0
  %v1111 = vadd.f32 %v1028, %v1110
  %1112 = vdwg.mxu0
  %1113 = vmatprep.subr.mxu0 %v949
  %1114 = vmatpush1.msra.mxu0 %v948
  %1115 = vmatprep.subr.mxu0 %v953
  %1116 = vmatpush1.msra.mxu0 %v952
  %1117 = vmatprep.subr.mxu0 %v957
  %1118 = vmatpush1.msra.mxu0 %v956
  %1119 = vmatprep.subr.mxu0 %v961
  %1120 = vmatpush1.msra.mxu0 %v960
  %1121 = vmatprep.subr.mxu0 %v965
  %1122 = vmatpush1.msra.mxu0 %v964
  %1123 = vmatprep.subr.mxu0 %v969
  %1124 = vmatpush1.msra.mxu0 %v968
  %1125 = vmatprep.subr.mxu0 %v973
  %1126 = vmatpush1.msra.mxu0 %v972
  %1127 = vmatprep.subr.mxu0 %v977
  %1128 = vmatpush1.msra.mxu0 %v976
  %1129 = vmatprep.subr.mxu0 %v981
  %1130 = vmatpush1.msra.mxu0 %v980
  %1131 = vmatprep.subr.mxu0 %v985
  %1132 = vmatpush1.msra.mxu0 %v984
  %1133 = vmatprep.subr.mxu0 %v989
  %1134 = vmatpush1.msra.mxu0 %v988
  %1135 = vmatprep.subr.mxu0 %v993
  %1136 = vmatpush1.msra.mxu0 %v992
  %1137 = vmatprep.subr.mxu0 %v997
  %1138 = vmatpush1.msra.mxu0 %v996
  %1139 = vmatprep.subr.mxu0 %v1001
  %1140 = vmatpush1.msra.mxu0 %v1000
  %1141 = vmatprep.subr.mxu0 %v1005
  %1142 = vmatpush1.msra.mxu0 %v1004
  %1143 = vmatprep.subr.mxu0 %v1009
  %1144 = vmatpush1.msra.mxu0 %v1008
  %1145 = vmatprep.subr.mxu0 %v1013
  %1146 = vmatpush1.msra.mxu0 %v1012
  %1147 = vmatprep.subr.mxu0 %v1017
  %1148 = vmatpush1.msra.mxu0 %v1016
  %1149 = vmatprep.subr.mxu0 0.0
  %1150 = vmatpush1.msra.mxu0 0.0
  %1151 = vmatprep.subr.mxu0 0.0
  %1152 = vmatpush1.msra.mxu0 0.0
  %1153 = vmatprep.subr.mxu0 0.0
  %1154 = vmatpush1.msra.mxu0 0.0
  %1155 = vmatprep.subr.mxu0 0.0
  %1156 = vmatpush1.msra.mxu0 0.0
  %1157 = vmatprep.subr.mxu0 0.0
  %1158 = vmatpush1.msra.mxu0 0.0
  %1159 = vmatprep.subr.mxu0 0.0
  %1160 = vmatpush1.msra.mxu0 0.0
  %1161 = vmatprep.subr.mxu0 0.0
  %1162 = vmatpush1.msra.mxu0 0.0
  %1163 = vmatprep.subr.mxu0 0.0
  %1164 = vmatpush1.msra.mxu0 0.0
  %1165 = vmatprep.subr.mxu0 0.0
  %1166 = vmatpush1.msra.mxu0 0.0
  %1167 = vmatprep.subr.mxu0 0.0
  %1168 = vmatpush1.msra.mxu0 0.0
  %1169 = vmatprep.subr.mxu0 0.0
  %1170 = vmatpush1.msra.mxu0 0.0
  %1171 = vmatprep.subr.mxu0 0.0
  %1172 = vmatpush1.msra.mxu0 0.0
  %1173 = vmatprep.subr.mxu0 0.0
  %1174 = vmatpush1.msra.mxu0 0.0
  %1175 = vmatprep.subr.mxu0 0.0
  %1176 = vmatpush1.msra.mxu0 0.0
  %1177 = vmatprep.mubr.f32.mxu0 %v1031
  %1178 = vmatmul.mubr.f32.gmra.mrb[0].mxu0 %v942
  %v1179 = vpop.f32.mrb[0].mxu0
  %v1180 = vadd.f32 %v1023, %v1179
  %v1181 = vpop.f32.mrb[0].mxu0
  %v1182 = vadd.f32 %v1023, %v1181
  %1183 = vmatprep.mubr.f32.mxu0 %v1034
  %1184 = vmatmul.mubr.f32.gmra.mrb[0].mxu0 %v944
  %v1185 = vpop.f32.mrb[0].mxu0
  %v1186 = vadd.f32 %v1028, %v1185
  %v1187 = vpop.f32.mrb[0].mxu0
  %v1188 = vadd.f32 %v1028, %v1187
  %1189 = vdwg.mxu0
  %v1190 = vmax.f32 %v1103, 0.0
  %v1191 = vmax.f32 %v1105, 0.0
  %v1192 = vmax.f32 %v1180, 0.0
  %v1193 = vmax.f32 %v1182, 0.0
  %v1194 = vmax.f32 %v1109, 0.0
  %v1195 = vmax.f32 %v1111, 0.0
  %v1196 = vmax.f32 %v1186, 0.0
  %v1197 = vmax.f32 %v1188, 0.0
  %1198 = vst [vmem:[#allocation2 + $0x8] sm:$0xff] %v1190
  %1199 = vst [vmem:[#allocation2 + $0x10] sm:$0xff] %v1191
  %1200 = vst [vmem:[#allocation2 + $0x18] sm:$0xff] %v1192
  %1201 = vst [vmem:[#allocation2 + $0x20] sm:$0xff] %v1193
  %1202 = vst [vmem:[#allocation2 + $0x38] sm:$0xff] %v1194
  %1203 = vst [vmem:[#allocation2 + $0x40] sm:$0xff] %v1195
  %1204 = vst [vmem:[#allocation2 + $0x48] sm:$0xff] %v1196
  %1205 = vst [vmem:[#allocation2 + $0x50] sm:$0xff] %v1197
  %v1206 = vld [vmem:[#allocation2] sm:$0xff]
  %v1207 = vld [vmem:[#allocation2 + $0x8] sm:$0xff]
  %v1208 = vld [vmem:[#allocation2 + $0x10] sm:$0xff]
  %v1209 = vld [vmem:[#allocation2 + $0x18] sm:$0xff]
  %v1210 = vld [vmem:[#allocation2 + $0x20] sm:$0xff]
  %v1211 = vld [vmem:[#allocation2 + $0x30] sm:$0xff]
  %v1212 = vld [vmem:[#allocation2 + $0x38] sm:$0xff]
  %v1213 = vld [vmem:[#allocation2 + $0x40] sm:$0xff]
  %v1214 = vld [vmem:[#allocation2 + $0x48] sm:$0xff]
  %v1215 = vld [vmem:[#allocation2 + $0x50] sm:$0xff]
  %v1216 = vld [vmem:[%s7] ss:$8 sm:$0xf]
  %v1218 = vlaneseq
  %v1219 = vshrl.u32 %v1218, 7
  %v1220 = vsub.s32 0, %v1219
  %v1221 = vrot.slane %v1216, %v1220
  %v1222 = vlaneseq
  %v1223 = vshrl.u32 %v1222, 7
  %v1224 = vsub.s32 1, %v1223
  %v1225 = vrot.slane %v1216, %v1224
  %v1226 = vlaneseq
  %v1227 = vshrl.u32 %v1226, 7
  %v1228 = vsub.s32 2, %v1227
  %v1229 = vrot.slane %v1216, %v1228
  %v1230 = vlaneseq
  %v1231 = vshrl.u32 %v1230, 7
  %v1232 = vsub.s32 3, %v1231
  %v1233 = vrot.slane %v1216, %v1232
  %1234 = vrot.lane.b32.xlu0 %v1221, 111
  %v1235 = vpop.permute.xlu0 %1234
  %1236 = vrot.lane.b32.xlu0 %v1225, 111
  %v1237 = vpop.permute.xlu0 %1236
  %1238 = vrot.lane.b32.xlu0 %v1229, 111
  %v1239 = vpop.permute.xlu0 %1238
  %1240 = vrot.lane.b32.xlu0 %v1233, 111
  %v1241 = vpop.permute.xlu0 %1240
  %v1242 = vsel %vm91, %v1235, %v1237
  %v1243 = vsel %vm91, %v1237, %v1239
  %v1244 = vsel %vm91, %v1239, %v1241
  %v1250 = vmul.f32 %v1206, %v1235
  %v1251 = vmul.f32 %v1207, %v1242
  %v1252 = vmul.f32 %v1208, %v1243
  %v1253 = vmul.f32 %v1209, %v1244
  %v1254 = vmul.f32 %v1210, %v1241
  %v1255 = vmul.f32 %v1211, %v1235
  %v1256 = vmul.f32 %v1212, %v1242
  %v1257 = vmul.f32 %v1213, %v1243
  %v1258 = vmul.f32 %v1214, %v1244
  %v1259 = vmul.f32 %v1215, %v1241
  %1270 = vrot.lane.b32.xlu0 %v1250, 17
  %v1271 = vpop.permute.xlu0 %1270
  %1272 = vrot.lane.b32.xlu0 %v1251, 17
  %v1273 = vpop.permute.xlu0 %1272
  %1274 = vrot.lane.b32.xlu0 %v1252, 17
  %v1275 = vpop.permute.xlu0 %1274
  %1276 = vrot.lane.b32.xlu0 %v1253, 17
  %v1277 = vpop.permute.xlu0 %1276
  %1278 = vrot.lane.b32.xlu0 %v1254, 17
  %v1279 = vpop.permute.xlu0 %1278
  %1280 = vrot.lane.b32.xlu0 %v1255, 17
  %v1281 = vpop.permute.xlu0 %1280
  %1282 = vrot.lane.b32.xlu0 %v1256, 17
  %v1283 = vpop.permute.xlu0 %1282
  %1284 = vrot.lane.b32.xlu0 %v1257, 17
  %v1285 = vpop.permute.xlu0 %1284
  %1286 = vrot.lane.b32.xlu0 %v1258, 17
  %v1287 = vpop.permute.xlu0 %1286
  %1288 = vrot.lane.b32.xlu0 %v1259, 17
  %v1289 = vpop.permute.xlu0 %1288
  %v1290 = vsel %vm140, %v1271, %v1273
  %v1291 = vsel %vm140, %v1273, %v1275
  %v1292 = vsel %vm140, %v1275, %v1277
  %v1293 = vsel %vm140, %v1277, %v1279
  %v1294 = vsel %vm140, %v1281, %v1283
  %v1295 = vsel %vm140, %v1283, %v1285
  %v1296 = vsel %vm140, %v1285, %v1287
  %v1297 = vsel %vm140, %v1287, %v1289
  %1306 = vst [vmem:[#allocation3] sm:$0xff] %v1290
  %1307 = vst [vmem:[#allocation3 + $0x8] sm:$0xff] %v1291
  %1308 = vst [vmem:[#allocation3 + $0x10] sm:$0xff] %v1292
  %1309 = vst [vmem:[#allocation3 + $0x18] sm:$0xff] %v1293
  %1310 = vst [vmem:[#allocation3 + $0x20] sm:$0xff] %v1294
  %1311 = vst [vmem:[#allocation3 + $0x28] sm:$0xff] %v1295
  %1312 = vst [vmem:[#allocation3 + $0x30] sm:$0xff] %v1296
  %1313 = vst [vmem:[#allocation3 + $0x38] sm:$0xff] %v1297
  %v1314 = vld [vmem:[#allocation2] sm:$0xff]
  %v1315 = vld [vmem:[#allocation2 + $0x8] sm:$0xff]
  %v1316 = vld [vmem:[#allocation2 + $0x10] sm:$0xff]
  %v1317 = vld [vmem:[#allocation2 + $0x18] sm:$0xff]
  %v1318 = vld [vmem:[#allocation2 + $0x20] sm:$0xff]
  %v1319 = vld [vmem:[#allocation2 + $0x30] sm:$0xff]
  %v1320 = vld [vmem:[#allocation2 + $0x38] sm:$0xff]
  %v1321 = vld [vmem:[#allocation2 + $0x40] sm:$0xff]
  %v1322 = vld [vmem:[#allocation2 + $0x48] sm:$0xff]
  %v1323 = vld [vmem:[#allocation2 + $0x50] sm:$0xff]
  %v1324 = vld [vmem:[%s175] ss:$8 sm:$0xf]
  %v1326 = vlaneseq
  %v1327 = vshrl.u32 %v1326, 7
  %v1328 = vsub.s32 0, %v1327
  %v1329 = vrot.slane %v1324, %v1328
  %v1330 = vlaneseq
  %v1331 = vshrl.u32 %v1330, 7
  %v1332 = vsub.s32 1, %v1331
  %v1333 = vrot.slane %v1324, %v1332
  %v1334 = vlaneseq
  %v1335 = vshrl.u32 %v1334, 7
  %v1336 = vsub.s32 2, %v1335
  %v1337 = vrot.slane %v1324, %v1336
  %v1338 = vlaneseq
  %v1339 = vshrl.u32 %v1338, 7
  %v1340 = vsub.s32 3, %v1339
  %v1341 = vrot.slane %v1324, %v1340
  %1342 = vrot.lane.b32.xlu0 %v1329, 112
  %v1343 = vpop.permute.xlu0 %1342
  %1344 = vrot.lane.b32.xlu0 %v1333, 112
  %v1345 = vpop.permute.xlu0 %1344
  %1346 = vrot.lane.b32.xlu0 %v1337, 112
  %v1347 = vpop.permute.xlu0 %1346
  %1348 = vrot.lane.b32.xlu0 %v1341, 112
  %v1349 = vpop.permute.xlu0 %1348
  %v1350 = vsel %vm202, %v1343, %v1345
  %v1351 = vsel %vm202, %v1345, %v1347
  %v1352 = vsel %vm202, %v1347, %v1349
  %v1358 = vmul.f32 %v1314, %v1343
  %v1359 = vmul.f32 %v1315, %v1350
  %v1360 = vmul.f32 %v1316, %v1351
  %v1361 = vmul.f32 %v1317, %v1352
  %v1362 = vmul.f32 %v1318, %v1349
  %v1363 = vmul.f32 %v1319, %v1343
  %v1364 = vmul.f32 %v1320, %v1350
  %v1365 = vmul.f32 %v1321, %v1351
  %v1366 = vmul.f32 %v1322, %v1352
  %v1367 = vmul.f32 %v1323, %v1349
  %1378 = vrot.lane.b32.xlu0 %v1358, 16
  %v1379 = vpop.permute.xlu0 %1378
  %1380 = vrot.lane.b32.xlu0 %v1359, 16
  %v1381 = vpop.permute.xlu0 %1380
  %1382 = vrot.lane.b32.xlu0 %v1360, 16
  %v1383 = vpop.permute.xlu0 %1382
  %1384 = vrot.lane.b32.xlu0 %v1361, 16
  %v1385 = vpop.permute.xlu0 %1384
  %1386 = vrot.lane.b32.xlu0 %v1362, 16
  %v1387 = vpop.permute.xlu0 %1386
  %1388 = vrot.lane.b32.xlu0 %v1363, 16
  %v1389 = vpop.permute.xlu0 %1388
  %1390 = vrot.lane.b32.xlu0 %v1364, 16
  %v1391 = vpop.permute.xlu0 %1390
  %1392 = vrot.lane.b32.xlu0 %v1365, 16
  %v1393 = vpop.permute.xlu0 %1392
  %1394 = vrot.lane.b32.xlu0 %v1366, 16
  %v1395 = vpop.permute.xlu0 %1394
  %1396 = vrot.lane.b32.xlu0 %v1367, 16
  %v1397 = vpop.permute.xlu0 %1396
  %v1398 = vsel %vm251, %v1379, %v1381
  %v1399 = vsel %vm251, %v1381, %v1383
  %v1400 = vsel %vm251, %v1383, %v1385
  %v1401 = vsel %vm251, %v1385, %v1387
  %v1402 = vsel %vm251, %v1389, %v1391
  %v1403 = vsel %vm251, %v1391, %v1393
  %v1404 = vsel %vm251, %v1393, %v1395
  %v1405 = vsel %vm251, %v1395, %v1397
  %1414 = vst [vmem:[#allocation3 + $0x40] sm:$0xff] %v1398
  %1415 = vst [vmem:[#allocation3 + $0x48] sm:$0xff] %v1399
  %1416 = vst [vmem:[#allocation3 + $0x50] sm:$0xff] %v1400
  %1417 = vst [vmem:[#allocation3 + $0x58] sm:$0xff] %v1401
  %1418 = vst [vmem:[#allocation3 + $0x60] sm:$0xff] %v1402
  %1419 = vst [vmem:[#allocation3 + $0x68] sm:$0xff] %v1403
  %1420 = vst [vmem:[#allocation3 + $0x70] sm:$0xff] %v1404
  %1421 = vst [vmem:[#allocation3 + $0x78] sm:$0xff] %v1405
  %v1422 = vld [vmem:[#allocation2] sm:$0xff]
  %v1423 = vld [vmem:[#allocation2 + $0x8] sm:$0xff]
  %v1424 = vld [vmem:[#allocation2 + $0x10] sm:$0xff]
  %v1425 = vld [vmem:[#allocation2 + $0x18] sm:$0xff]
  %v1426 = vld [vmem:[#allocation2 + $0x20] sm:$0xff]
  %v1427 = vld [vmem:[#allocation2 + $0x30] sm:$0xff]
  %v1428 = vld [vmem:[#allocation2 + $0x38] sm:$0xff]
  %v1429 = vld [vmem:[#allocation2 + $0x40] sm:$0xff]
  %v1430 = vld [vmem:[#allocation2 + $0x48] sm:$0xff]
  %v1431 = vld [vmem:[#allocation2 + $0x50] sm:$0xff]
  %v1432 = vld [vmem:[%s286] ss:$8 sm:$0xf]
  %v1434 = vlaneseq
  %v1435 = vshrl.u32 %v1434, 7
  %v1436 = vsub.s32 0, %v1435
  %v1437 = vrot.slane %v1432, %v1436
  %v1438 = vlaneseq
  %v1439 = vshrl.u32 %v1438, 7
  %v1440 = vsub.s32 1, %v1439
  %v1441 = vrot.slane %v1432, %v1440
  %v1442 = vlaneseq
  %v1443 = vshrl.u32 %v1442, 7
  %v1444 = vsub.s32 2, %v1443
  %v1445 = vrot.slane %v1432, %v1444
  %v1446 = vlaneseq
  %v1447 = vshrl.u32 %v1446, 7
  %v1448 = vsub.s32 3, %v1447
  %v1449 = vrot.slane %v1432, %v1448
  %1450 = vrot.lane.b32.xlu0 %v1437, 113
  %v1451 = vpop.permute.xlu0 %1450
  %1452 = vrot.lane.b32.xlu0 %v1441, 113
  %v1453 = vpop.permute.xlu0 %1452
  %1454 = vrot.lane.b32.xlu0 %v1445, 113
  %v1455 = vpop.permute.xlu0 %1454
  %1456 = vrot.lane.b32.xlu0 %v1449, 113
  %v1457 = vpop.permute.xlu0 %1456
  %v1458 = vsel %vm313, %v1451, %v1453
  %v1459 = vsel %vm313, %v1453, %v1455
  %v1460 = vsel %vm313, %v1455, %v1457
  %v1466 = vmul.f32 %v1422, %v1451
  %v1467 = vmul.f32 %v1423, %v1458
  %v1468 = vmul.f32 %v1424, %v1459
  %v1469 = vmul.f32 %v1425, %v1460
  %v1470 = vmul.f32 %v1426, %v1457
  %v1471 = vmul.f32 %v1427, %v1451
  %v1472 = vmul.f32 %v1428, %v1458
  %v1473 = vmul.f32 %v1429, %v1459
  %v1474 = vmul.f32 %v1430, %v1460
  %v1475 = vmul.f32 %v1431, %v1457
  %1486 = vrot.lane.b32.xlu0 %v1466, 15
  %v1487 = vpop.permute.xlu0 %1486
  %1488 = vrot.lane.b32.xlu0 %v1467, 15
  %v1489 = vpop.permute.xlu0 %1488
  %1490 = vrot.lane.b32.xlu0 %v1468, 15
  %v1491 = vpop.permute.xlu0 %1490
  %1492 = vrot.lane.b32.xlu0 %v1469, 15
  %v1493 = vpop.permute.xlu0 %1492
  %1494 = vrot.lane.b32.xlu0 %v1470, 15
  %v1495 = vpop.permute.xlu0 %1494
  %1496 = vrot.lane.b32.xlu0 %v1471, 15
  %v1497 = vpop.permute.xlu0 %1496
  %1498 = vrot.lane.b32.xlu0 %v1472, 15
  %v1499 = vpop.permute.xlu0 %1498
  %1500 = vrot.lane.b32.xlu0 %v1473, 15
  %v1501 = vpop.permute.xlu0 %1500
  %1502 = vrot.lane.b32.xlu0 %v1474, 15
  %v1503 = vpop.permute.xlu0 %1502
  %1504 = vrot.lane.b32.xlu0 %v1475, 15
  %v1505 = vpop.permute.xlu0 %1504
  %v1506 = vsel %vm362, %v1487, %v1489
  %v1507 = vsel %vm362, %v1489, %v1491
  %v1508 = vsel %vm362, %v1491, %v1493
  %v1509 = vsel %vm362, %v1493, %v1495
  %v1510 = vsel %vm362, %v1497, %v1499
  %v1511 = vsel %vm362, %v1499, %v1501
  %v1512 = vsel %vm362, %v1501, %v1503
  %v1513 = vsel %vm362, %v1503, %v1505
  %1522 = vst [vmem:[#allocation3 + $0x80] sm:$0xff] %v1506
  %1523 = vst [vmem:[#allocation3 + $0x88] sm:$0xff] %v1507
  %1524 = vst [vmem:[#allocation3 + $0x90] sm:$0xff] %v1508
  %1525 = vst [vmem:[#allocation3 + $0x98] sm:$0xff] %v1509
  %1526 = vst [vmem:[#allocation3 + $0xa0] sm:$0xff] %v1510
  %1527 = vst [vmem:[#allocation3 + $0xa8] sm:$0xff] %v1511
  %1528 = vst [vmem:[#allocation3 + $0xb0] sm:$0xff] %v1512
  %1529 = vst [vmem:[#allocation3 + $0xb8] sm:$0xff] %v1513
  %v1530 = vld [vmem:[#allocation2] sm:$0xff]
  %v1531 = vld [vmem:[#allocation2 + $0x8] sm:$0xff]
  %v1532 = vld [vmem:[#allocation2 + $0x10] sm:$0xff]
  %v1533 = vld [vmem:[#allocation2 + $0x18] sm:$0xff]
  %v1534 = vld [vmem:[#allocation2 + $0x20] sm:$0xff]
  %v1535 = vld [vmem:[#allocation2 + $0x30] sm:$0xff]
  %v1536 = vld [vmem:[#allocation2 + $0x38] sm:$0xff]
  %v1537 = vld [vmem:[#allocation2 + $0x40] sm:$0xff]
  %v1538 = vld [vmem:[#allocation2 + $0x48] sm:$0xff]
  %v1539 = vld [vmem:[#allocation2 + $0x50] sm:$0xff]
  %v1540 = vld [vmem:[%s397] ss:$8 sm:$0xf]
  %v1542 = vlaneseq
  %v1543 = vshrl.u32 %v1542, 7
  %v1544 = vsub.s32 0, %v1543
  %v1545 = vrot.slane %v1540, %v1544
  %v1546 = vlaneseq
  %v1547 = vshrl.u32 %v1546, 7
  %v1548 = vsub.s32 1, %v1547
  %v1549 = vrot.slane %v1540, %v1548
  %v1550 = vlaneseq
  %v1551 = vshrl.u32 %v1550, 7
  %v1552 = vsub.s32 2, %v1551
  %v1553 = vrot.slane %v1540, %v1552
  %v1554 = vlaneseq
  %v1555 = vshrl.u32 %v1554, 7
  %v1556 = vsub.s32 3, %v1555
  %v1557 = vrot.slane %v1540, %v1556
  %1558 = vrot.lane.b32.xlu0 %v1545, 127
  %v1559 = vpop.permute.xlu0 %1558
  %1560 = vrot.lane.b32.xlu0 %v1549, 127
  %v1561 = vpop.permute.xlu0 %1560
  %1562 = vrot.lane.b32.xlu0 %v1553, 127
  %v1563 = vpop.permute.xlu0 %1562
  %1564 = vrot.lane.b32.xlu0 %v1557, 127
  %v1565 = vpop.permute.xlu0 %1564
  %v1566 = vsel %vm424, %v1559, %v1561
  %v1567 = vsel %vm424, %v1561, %v1563
  %v1568 = vsel %vm424, %v1563, %v1565
  %v1574 = vmul.f32 %v1530, %v1559
  %v1575 = vmul.f32 %v1531, %v1566
  %v1576 = vmul.f32 %v1532, %v1567
  %v1577 = vmul.f32 %v1533, %v1568
  %v1578 = vmul.f32 %v1534, %v1565
  %v1579 = vmul.f32 %v1535, %v1559
  %v1580 = vmul.f32 %v1536, %v1566
  %v1581 = vmul.f32 %v1537, %v1567
  %v1582 = vmul.f32 %v1538, %v1568
  %v1583 = vmul.f32 %v1539, %v1565
  %1594 = vrot.lane.b32.xlu0 %v1574, 1
  %v1595 = vpop.permute.xlu0 %1594
  %1596 = vrot.lane.b32.xlu0 %v1575, 1
  %v1597 = vpop.permute.xlu0 %1596
  %1598 = vrot.lane.b32.xlu0 %v1576, 1
  %v1599 = vpop.permute.xlu0 %1598
  %1600 = vrot.lane.b32.xlu0 %v1577, 1
  %v1601 = vpop.permute.xlu0 %1600
  %1602 = vrot.lane.b32.xlu0 %v1578, 1
  %v1603 = vpop.permute.xlu0 %1602
  %1604 = vrot.lane.b32.xlu0 %v1579, 1
  %v1605 = vpop.permute.xlu0 %1604
  %1606 = vrot.lane.b32.xlu0 %v1580, 1
  %v1607 = vpop.permute.xlu0 %1606
  %1608 = vrot.lane.b32.xlu0 %v1581, 1
  %v1609 = vpop.permute.xlu0 %1608
  %1610 = vrot.lane.b32.xlu0 %v1582, 1
  %v1611 = vpop.permute.xlu0 %1610
  %1612 = vrot.lane.b32.xlu0 %v1583, 1
  %v1613 = vpop.permute.xlu0 %1612
  %v1614 = vsel %vm473, %v1595, %v1597
  %v1615 = vsel %vm473, %v1597, %v1599
  %v1616 = vsel %vm473, %v1599, %v1601
  %v1617 = vsel %vm473, %v1601, %v1603
  %v1618 = vsel %vm473, %v1605, %v1607
  %v1619 = vsel %vm473, %v1607, %v1609
  %v1620 = vsel %vm473, %v1609, %v1611
  %v1621 = vsel %vm473, %v1611, %v1613
  %1630 = vst [vmem:[#allocation3 + $0xc0] sm:$0xff] %v1614
  %1631 = vst [vmem:[#allocation3 + $0xc8] sm:$0xff] %v1615
  %1632 = vst [vmem:[#allocation3 + $0xd0] sm:$0xff] %v1616
  %1633 = vst [vmem:[#allocation3 + $0xd8] sm:$0xff] %v1617
  %1634 = vst [vmem:[#allocation3 + $0xe0] sm:$0xff] %v1618
  %1635 = vst [vmem:[#allocation3 + $0xe8] sm:$0xff] %v1619
  %1636 = vst [vmem:[#allocation3 + $0xf0] sm:$0xff] %v1620
  %1637 = vst [vmem:[#allocation3 + $0xf8] sm:$0xff] %v1621
  %1638 = vst [vmem:[#allocation3 + $0x100] sm:$0xff] %v1190
  %1639 = vst [vmem:[#allocation3 + $0x108] sm:$0xff] %v1191
  %1640 = vst [vmem:[#allocation3 + $0x110] sm:$0xff] %v1192
  %1641 = vst [vmem:[#allocation3 + $0x118] sm:$0xff] %v1193
  %1642 = vst [vmem:[#allocation3 + $0x120] sm:$0xff] %v1194
  %1643 = vst [vmem:[#allocation3 + $0x128] sm:$0xff] %v1195
  %1644 = vst [vmem:[#allocation3 + $0x130] sm:$0xff] %v1196
  %1645 = vst [vmem:[#allocation3 + $0x138] sm:$0xff] %v1197
  %v1646 = vld [vmem:[#allocation2 + $0x8] sm:$0xff]
  %v1647 = vld [vmem:[#allocation2 + $0x10] sm:$0xff]
  %v1648 = vld [vmem:[#allocation2 + $0x18] sm:$0xff]
  %v1649 = vld [vmem:[#allocation2 + $0x20] sm:$0xff]
  %v1650 = vld [vmem:[#allocation2 + $0x28] sm:$0xff]
  %v1651 = vld [vmem:[#allocation2 + $0x38] sm:$0xff]
  %v1652 = vld [vmem:[#allocation2 + $0x40] sm:$0xff]
  %v1653 = vld [vmem:[#allocation2 + $0x48] sm:$0xff]
  %v1654 = vld [vmem:[#allocation2 + $0x50] sm:$0xff]
  %v1655 = vld [vmem:[#allocation2 + $0x58] sm:$0xff]
  %v1656 = vld [vmem:[%s516] ss:$8 sm:$0xf]
  %v1658 = vlaneseq
  %v1659 = vshrl.u32 %v1658, 7
  %v1660 = vsub.s32 0, %v1659
  %v1661 = vrot.slane %v1656, %v1660
  %v1662 = vlaneseq
  %v1663 = vshrl.u32 %v1662, 7
  %v1664 = vsub.s32 1, %v1663
  %v1665 = vrot.slane %v1656, %v1664
  %v1666 = vlaneseq
  %v1667 = vshrl.u32 %v1666, 7
  %v1668 = vsub.s32 2, %v1667
  %v1669 = vrot.slane %v1656, %v1668
  %v1670 = vlaneseq
  %v1671 = vshrl.u32 %v1670, 7
  %v1672 = vsub.s32 3, %v1671
  %v1673 = vrot.slane %v1656, %v1672
  %1674 = vrot.lane.b32.xlu0 %v1661, 1
  %v1675 = vpop.permute.xlu0 %1674
  %1676 = vrot.lane.b32.xlu0 %v1665, 1
  %v1677 = vpop.permute.xlu0 %1676
  %1678 = vrot.lane.b32.xlu0 %v1669, 1
  %v1679 = vpop.permute.xlu0 %1678
  %1680 = vrot.lane.b32.xlu0 %v1673, 1
  %v1681 = vpop.permute.xlu0 %1680
  %v1682 = vsel %vm473, %v1675, %v1677
  %v1683 = vsel %vm473, %v1677, %v1679
  %v1684 = vsel %vm473, %v1679, %v1681
  %v1690 = vmul.f32 %v1646, %v1675
  %v1691 = vmul.f32 %v1647, %v1682
  %v1692 = vmul.f32 %v1648, %v1683
  %v1693 = vmul.f32 %v1649, %v1684
  %v1694 = vmul.f32 %v1650, %v1681
  %v1695 = vmul.f32 %v1651, %v1675
  %v1696 = vmul.f32 %v1652, %v1682
  %v1697 = vmul.f32 %v1653, %v1683
  %v1698 = vmul.f32 %v1654, %v1684
  %v1699 = vmul.f32 %v1655, %v1681
  %1710 = vrot.lane.b32.xlu0 %v1690, 127
  %v1711 = vpop.permute.xlu0 %1710
  %1712 = vrot.lane.b32.xlu0 %v1691, 127
  %v1713 = vpop.permute.xlu0 %1712
  %1714 = vrot.lane.b32.xlu0 %v1692, 127
  %v1715 = vpop.permute.xlu0 %1714
  %1716 = vrot.lane.b32.xlu0 %v1693, 127
  %v1717 = vpop.permute.xlu0 %1716
  %1718 = vrot.lane.b32.xlu0 %v1694, 127
  %v1719 = vpop.permute.xlu0 %1718
  %1720 = vrot.lane.b32.xlu0 %v1695, 127
  %v1721 = vpop.permute.xlu0 %1720
  %1722 = vrot.lane.b32.xlu0 %v1696, 127
  %v1723 = vpop.permute.xlu0 %1722
  %1724 = vrot.lane.b32.xlu0 %v1697, 127
  %v1725 = vpop.permute.xlu0 %1724
  %1726 = vrot.lane.b32.xlu0 %v1698, 127
  %v1727 = vpop.permute.xlu0 %1726
  %1728 = vrot.lane.b32.xlu0 %v1699, 127
  %v1729 = vpop.permute.xlu0 %1728
  %v1730 = vsel %vm424, %v1711, %v1713
  %v1731 = vsel %vm424, %v1713, %v1715
  %v1732 = vsel %vm424, %v1715, %v1717
  %v1733 = vsel %vm424, %v1717, %v1719
  %v1734 = vsel %vm424, %v1721, %v1723
  %v1735 = vsel %vm424, %v1723, %v1725
  %v1736 = vsel %vm424, %v1725, %v1727
  %v1737 = vsel %vm424, %v1727, %v1729
  %1746 = vst [vmem:[#allocation3 + $0x140] sm:$0xff] %v1730
  %1747 = vst [vmem:[#allocation3 + $0x148] sm:$0xff] %v1731
  %1748 = vst [vmem:[#allocation3 + $0x150] sm:$0xff] %v1732
  %1749 = vst [vmem:[#allocation3 + $0x158] sm:$0xff] %v1733
  %1750 = vst [vmem:[#allocation3 + $0x160] sm:$0xff] %v1734
  %1751 = vst [vmem:[#allocation3 + $0x168] sm:$0xff] %v1735
  %1752 = vst [vmem:[#allocation3 + $0x170] sm:$0xff] %v1736
  %1753 = vst [vmem:[#allocation3 + $0x178] sm:$0xff] %v1737
  %v1754 = vld [vmem:[#allocation2 + $0x8] sm:$0xff]
  %v1755 = vld [vmem:[#allocation2 + $0x10] sm:$0xff]
  %v1756 = vld [vmem:[#allocation2 + $0x18] sm:$0xff]
  %v1757 = vld [vmem:[#allocation2 + $0x20] sm:$0xff]
  %v1758 = vld [vmem:[#allocation2 + $0x28] sm:$0xff]
  %v1759 = vld [vmem:[#allocation2 + $0x38] sm:$0xff]
  %v1760 = vld [vmem:[#allocation2 + $0x40] sm:$0xff]
  %v1761 = vld [vmem:[#allocation2 + $0x48] sm:$0xff]
  %v1762 = vld [vmem:[#allocation2 + $0x50] sm:$0xff]
  %v1763 = vld [vmem:[#allocation2 + $0x58] sm:$0xff]
  %v1764 = vld [vmem:[%s625] ss:$8 sm:$0xf]
  %v1766 = vlaneseq
  %v1767 = vshrl.u32 %v1766, 7
  %v1768 = vsub.s32 0, %v1767
  %v1769 = vrot.slane %v1764, %v1768
  %v1770 = vlaneseq
  %v1771 = vshrl.u32 %v1770, 7
  %v1772 = vsub.s32 1, %v1771
  %v1773 = vrot.slane %v1764, %v1772
  %v1774 = vlaneseq
  %v1775 = vshrl.u32 %v1774, 7
  %v1776 = vsub.s32 2, %v1775
  %v1777 = vrot.slane %v1764, %v1776
  %v1778 = vlaneseq
  %v1779 = vshrl.u32 %v1778, 7
  %v1780 = vsub.s32 3, %v1779
  %v1781 = vrot.slane %v1764, %v1780
  %1782 = vrot.lane.b32.xlu0 %v1769, 15
  %v1783 = vpop.permute.xlu0 %1782
  %1784 = vrot.lane.b32.xlu0 %v1773, 15
  %v1785 = vpop.permute.xlu0 %1784
  %1786 = vrot.lane.b32.xlu0 %v1777, 15
  %v1787 = vpop.permute.xlu0 %1786
  %1788 = vrot.lane.b32.xlu0 %v1781, 15
  %v1789 = vpop.permute.xlu0 %1788
  %v1790 = vsel %vm362, %v1783, %v1785
  %v1791 = vsel %vm362, %v1785, %v1787
  %v1792 = vsel %vm362, %v1787, %v1789
  %v1798 = vmul.f32 %v1754, %v1783
  %v1799 = vmul.f32 %v1755, %v1790
  %v1800 = vmul.f32 %v1756, %v1791
  %v1801 = vmul.f32 %v1757, %v1792
  %v1802 = vmul.f32 %v1758, %v1789
  %v1803 = vmul.f32 %v1759, %v1783
  %v1804 = vmul.f32 %v1760, %v1790
  %v1805 = vmul.f32 %v1761, %v1791
  %v1806 = vmul.f32 %v1762, %v1792
  %v1807 = vmul.f32 %v1763, %v1789
  %1818 = vrot.lane.b32.xlu0 %v1798, 113
  %v1819 = vpop.permute.xlu0 %1818
  %1820 = vrot.lane.b32.xlu0 %v1799, 113
  %v1821 = vpop.permute.xlu0 %1820
  %1822 = vrot.lane.b32.xlu0 %v1800, 113
  %v1823 = vpop.permute.xlu0 %1822
  %1824 = vrot.lane.b32.xlu0 %v1801, 113
  %v1825 = vpop.permute.xlu0 %1824
  %1826 = vrot.lane.b32.xlu0 %v1802, 113
  %v1827 = vpop.permute.xlu0 %1826
  %1828 = vrot.lane.b32.xlu0 %v1803, 113
  %v1829 = vpop.permute.xlu0 %1828
  %1830 = vrot.lane.b32.xlu0 %v1804, 113
  %v1831 = vpop.permute.xlu0 %1830
  %1832 = vrot.lane.b32.xlu0 %v1805, 113
  %v1833 = vpop.permute.xlu0 %1832
  %1834 = vrot.lane.b32.xlu0 %v1806, 113
  %v1835 = vpop.permute.xlu0 %1834
  %1836 = vrot.lane.b32.xlu0 %v1807, 113
  %v1837 = vpop.permute.xlu0 %1836
  %v1838 = vsel %vm313, %v1819, %v1821
  %v1839 = vsel %vm313, %v1821, %v1823
  %v1840 = vsel %vm313, %v1823, %v1825
  %v1841 = vsel %vm313, %v1825, %v1827
  %v1842 = vsel %vm313, %v1829, %v1831
  %v1843 = vsel %vm313, %v1831, %v1833
  %v1844 = vsel %vm313, %v1833, %v1835
  %v1845 = vsel %vm313, %v1835, %v1837
  %1854 = vst [vmem:[#allocation3 + $0x180] sm:$0xff] %v1838
  %1855 = vst [vmem:[#allocation3 + $0x188] sm:$0xff] %v1839
  %1856 = vst [vmem:[#allocation3 + $0x190] sm:$0xff] %v1840
  %1857 = vst [vmem:[#allocation3 + $0x198] sm:$0xff] %v1841
  %1858 = vst [vmem:[#allocation3 + $0x1a0] sm:$0xff] %v1842
  %1859 = vst [vmem:[#allocation3 + $0x1a8] sm:$0xff] %v1843
  %1860 = vst [vmem:[#allocation3 + $0x1b0] sm:$0xff] %v1844
  %1861 = vst [vmem:[#allocation3 + $0x1b8] sm:$0xff] %v1845
  %v1862 = vld [vmem:[#allocation2 + $0x8] sm:$0xff]
  %v1863 = vld [vmem:[#allocation2 + $0x10] sm:$0xff]
  %v1864 = vld [vmem:[#allocation2 + $0x18] sm:$0xff]
  %v1865 = vld [vmem:[#allocation2 + $0x20] sm:$0xff]
  %v1866 = vld [vmem:[#allocation2 + $0x28] sm:$0xff]
  %v1867 = vld [vmem:[#allocation2 + $0x38] sm:$0xff]
  %v1868 = vld [vmem:[#allocation2 + $0x40] sm:$0xff]
  %v1869 = vld [vmem:[#allocation2 + $0x48] sm:$0xff]
  %v1870 = vld [vmem:[#allocation2 + $0x50] sm:$0xff]
  %v1871 = vld [vmem:[#allocation2 + $0x58] sm:$0xff]
  %v1872 = vld [vmem:[%s734] ss:$8 sm:$0xf]
  %v1874 = vlaneseq
  %v1875 = vshrl.u32 %v1874, 7
  %v1876 = vsub.s32 0, %v1875
  %v1877 = vrot.slane %v1872, %v1876
  %v1878 = vlaneseq
  %v1879 = vshrl.u32 %v1878, 7
  %v1880 = vsub.s32 1, %v1879
  %v1881 = vrot.slane %v1872, %v1880
  %v1882 = vlaneseq
  %v1883 = vshrl.u32 %v1882, 7
  %v1884 = vsub.s32 2, %v1883
  %v1885 = vrot.slane %v1872, %v1884
  %v1886 = vlaneseq
  %v1887 = vshrl.u32 %v1886, 7
  %v1888 = vsub.s32 3, %v1887
  %v1889 = vrot.slane %v1872, %v1888
  %1890 = vrot.lane.b32.xlu0 %v1877, 16
  %v1891 = vpop.permute.xlu0 %1890
  %1892 = vrot.lane.b32.xlu0 %v1881, 16
  %v1893 = vpop.permute.xlu0 %1892
  %1894 = vrot.lane.b32.xlu0 %v1885, 16
  %v1895 = vpop.permute.xlu0 %1894
  %1896 = vrot.lane.b32.xlu0 %v1889, 16
  %v1897 = vpop.permute.xlu0 %1896
  %v1898 = vsel %vm251, %v1891, %v1893
  %v1899 = vsel %vm251, %v1893, %v1895
  %v1900 = vsel %vm251, %v1895, %v1897
  %v1906 = vmul.f32 %v1862, %v1891
  %v1907 = vmul.f32 %v1863, %v1898
  %v1908 = vmul.f32 %v1864, %v1899
  %v1909 = vmul.f32 %v1865, %v1900
  %v1910 = vmul.f32 %v1866, %v1897
  %v1911 = vmul.f32 %v1867, %v1891
  %v1912 = vmul.f32 %v1868, %v1898
  %v1913 = vmul.f32 %v1869, %v1899
  %v1914 = vmul.f32 %v1870, %v1900
  %v1915 = vmul.f32 %v1871, %v1897
  %1926 = vrot.lane.b32.xlu0 %v1906, 112
  %v1927 = vpop.permute.xlu0 %1926
  %1928 = vrot.lane.b32.xlu0 %v1907, 112
  %v1929 = vpop.permute.xlu0 %1928
  %1930 = vrot.lane.b32.xlu0 %v1908, 112
  %v1931 = vpop.permute.xlu0 %1930
  %1932 = vrot.lane.b32.xlu0 %v1909, 112
  %v1933 = vpop.permute.xlu0 %1932
  %1934 = vrot.lane.b32.xlu0 %v1910, 112
  %v1935 = vpop.permute.xlu0 %1934
  %1936 = vrot.lane.b32.xlu0 %v1911, 112
  %v1937 = vpop.permute.xlu0 %1936
  %1938 = vrot.lane.b32.xlu0 %v1912, 112
  %v1939 = vpop.permute.xlu0 %1938
  %1940 = vrot.lane.b32.xlu0 %v1913, 112
  %v1941 = vpop.permute.xlu0 %1940
  %1942 = vrot.lane.b32.xlu0 %v1914, 112
  %v1943 = vpop.permute.xlu0 %1942
  %1944 = vrot.lane.b32.xlu0 %v1915, 112
  %v1945 = vpop.permute.xlu0 %1944
  %v1946 = vsel %vm202, %v1927, %v1929
  %v1947 = vsel %vm202, %v1929, %v1931
  %v1948 = vsel %vm202, %v1931, %v1933
  %v1949 = vsel %vm202, %v1933, %v1935
  %v1950 = vsel %vm202, %v1937, %v1939
  %v1951 = vsel %vm202, %v1939, %v1941
  %v1952 = vsel %vm202, %v1941, %v1943
  %v1953 = vsel %vm202, %v1943, %v1945
  %1962 = vst [vmem:[#allocation3 + $0x1c0] sm:$0xff] %v1946
  %1963 = vst [vmem:[#allocation3 + $0x1c8] sm:$0xff] %v1947
  %1964 = vst [vmem:[#allocation3 + $0x1d0] sm:$0xff] %v1948
  %1965 = vst [vmem:[#allocation3 + $0x1d8] sm:$0xff] %v1949
  %1966 = vst [vmem:[#allocation3 + $0x1e0] sm:$0xff] %v1950
  %1967 = vst [vmem:[#allocation3 + $0x1e8] sm:$0xff] %v1951
  %1968 = vst [vmem:[#allocation3 + $0x1f0] sm:$0xff] %v1952
  %1969 = vst [vmem:[#allocation3 + $0x1f8] sm:$0xff] %v1953
  %v1970 = vld [vmem:[#allocation2 + $0x8] sm:$0xff]
  %v1971 = vld [vmem:[#allocation2 + $0x10] sm:$0xff]
  %v1972 = vld [vmem:[#allocation2 + $0x18] sm:$0xff]
  %v1973 = vld [vmem:[#allocation2 + $0x20] sm:$0xff]
  %v1974 = vld [vmem:[#allocation2 + $0x28] sm:$0xff]
  %v1975 = vld [vmem:[#allocation2 + $0x38] sm:$0xff]
  %v1976 = vld [vmem:[#allocation2 + $0x40] sm:$0xff]
  %v1977 = vld [vmem:[#allocation2 + $0x48] sm:$0xff]
  %v1978 = vld [vmem:[#allocation2 + $0x50] sm:$0xff]
  %v1979 = vld [vmem:[#allocation2 + $0x58] sm:$0xff]
  %v1980 = vld [vmem:[%s843] ss:$8 sm:$0xf]
  %v1982 = vlaneseq
  %v1983 = vshrl.u32 %v1982, 7
  %v1984 = vsub.s32 0, %v1983
  %v1985 = vrot.slane %v1980, %v1984
  %v1986 = vlaneseq
  %v1987 = vshrl.u32 %v1986, 7
  %v1988 = vsub.s32 1, %v1987
  %v1989 = vrot.slane %v1980, %v1988
  %v1990 = vlaneseq
  %v1991 = vshrl.u32 %v1990, 7
  %v1992 = vsub.s32 2, %v1991
  %v1993 = vrot.slane %v1980, %v1992
  %v1994 = vlaneseq
  %v1995 = vshrl.u32 %v1994, 7
  %v1996 = vsub.s32 3, %v1995
  %v1997 = vrot.slane %v1980, %v1996
  %1998 = vrot.lane.b32.xlu0 %v1985, 17
  %v1999 = vpop.permute.xlu0 %1998
  %2000 = vrot.lane.b32.xlu0 %v1989, 17
  %v2001 = vpop.permute.xlu0 %2000
  %2002 = vrot.lane.b32.xlu0 %v1993, 17
  %v2003 = vpop.permute.xlu0 %2002
  %2004 = vrot.lane.b32.xlu0 %v1997, 17
  %v2005 = vpop.permute.xlu0 %2004
  %v2006 = vsel %vm140, %v1999, %v2001
  %v2007 = vsel %vm140, %v2001, %v2003
  %v2008 = vsel %vm140, %v2003, %v2005
  %v2014 = vmul.f32 %v1970, %v1999
  %v2015 = vmul.f32 %v1971, %v2006
  %v2016 = vmul.f32 %v1972, %v2007
  %v2017 = vmul.f32 %v1973, %v2008
  %v2018 = vmul.f32 %v1974, %v2005
  %v2019 = vmul.f32 %v1975, %v1999
  %v2020 = vmul.f32 %v1976, %v2006
  %v2021 = vmul.f32 %v1977, %v2007
  %v2022 = vmul.f32 %v1978, %v2008
  %v2023 = vmul.f32 %v1979, %v2005
  %2034 = vrot.lane.b32.xlu0 %v2014, 111
  %v2035 = vpop.permute.xlu0 %2034
  %2036 = vrot.lane.b32.xlu0 %v2015, 111
  %v2037 = vpop.permute.xlu0 %2036
  %2038 = vrot.lane.b32.xlu0 %v2016, 111
  %v2039 = vpop.permute.xlu0 %2038
  %2040 = vrot.lane.b32.xlu0 %v2017, 111
  %v2041 = vpop.permute.xlu0 %2040
  %2042 = vrot.lane.b32.xlu0 %v2018, 111
  %v2043 = vpop.permute.xlu0 %2042
  %2044 = vrot.lane.b32.xlu0 %v2019, 111
  %v2045 = vpop.permute.xlu0 %2044
  %2046 = vrot.lane.b32.xlu0 %v2020, 111
  %v2047 = vpop.permute.xlu0 %2046
  %2048 = vrot.lane.b32.xlu0 %v2021, 111
  %v2049 = vpop.permute.xlu0 %2048
  %2050 = vrot.lane.b32.xlu0 %v2022, 111
  %v2051 = vpop.permute.xlu0 %2050
  %2052 = vrot.lane.b32.xlu0 %v2023, 111
  %v2053 = vpop.permute.xlu0 %2052
  %v2054 = vsel %vm91, %v2035, %v2037
  %v2055 = vsel %vm91, %v2037, %v2039
  %v2056 = vsel %vm91, %v2039, %v2041
  %v2057 = vsel %vm91, %v2041, %v2043
  %v2058 = vsel %vm91, %v2045, %v2047
  %v2059 = vsel %vm91, %v2047, %v2049
  %v2060 = vsel %vm91, %v2049, %v2051
  %v2061 = vsel %vm91, %v2051, %v2053
  %2070 = vst [vmem:[#allocation3 + $0x200] sm:$0xff] %v2054
  %2071 = vst [vmem:[#allocation3 + $0x208] sm:$0xff] %v2055
  %2072 = vst [vmem:[#allocation3 + $0x210] sm:$0xff] %v2056
  %2073 = vst [vmem:[#allocation3 + $0x218] sm:$0xff] %v2057
  %2074 = vst [vmem:[#allocation3 + $0x220] sm:$0xff] %v2058
  %2075 = vst [vmem:[#allocation3 + $0x228] sm:$0xff] %v2059
  %2076 = vst [vmem:[#allocation3 + $0x230] sm:$0xff] %v2060
  %2077 = vst [vmem:[#allocation3 + $0x238] sm:$0xff] %v2061
  %v2078 = vld [vmem:[%s2] sm:$0xff]
  %v2079 = vld [vmem:[%s2 + $0x8] sm:$0xff]
  %v2080 = vld [vmem:[%s2 + $0x10] sm:$0xff]
  %v2081 = vld [vmem:[%s2 + $0x18] sm:$0xff]
  %v2082 = vld [vmem:[#allocation3] sm:$0xff]
  %v2083 = vld [vmem:[#allocation3 + $0x8] sm:$0xff]
  %v2084 = vld [vmem:[#allocation3 + $0x10] sm:$0xff]
  %v2085 = vld [vmem:[#allocation3 + $0x18] sm:$0xff]
  %v2086 = vld [vmem:[#allocation3 + $0x20] sm:$0xff]
  %v2087 = vld [vmem:[#allocation3 + $0x28] sm:$0xff]
  %v2088 = vld [vmem:[#allocation3 + $0x30] sm:$0xff]
  %v2089 = vld [vmem:[#allocation3 + $0x38] sm:$0xff]
  %v2090 = vld [vmem:[#allocation3 + $0x40] sm:$0xff]
  %v2091 = vld [vmem:[#allocation3 + $0x48] sm:$0xff]
  %v2092 = vld [vmem:[#allocation3 + $0x50] sm:$0xff]
  %v2093 = vld [vmem:[#allocation3 + $0x58] sm:$0xff]
  %v2094 = vld [vmem:[#allocation3 + $0x60] sm:$0xff]
  %v2095 = vld [vmem:[#allocation3 + $0x68] sm:$0xff]
  %v2096 = vld [vmem:[#allocation3 + $0x70] sm:$0xff]
  %v2097 = vld [vmem:[#allocation3 + $0x78] sm:$0xff]
  %v2098 = vld [vmem:[#allocation3 + $0x80] sm:$0xff]
  %v2099 = vld [vmem:[#allocation3 + $0x88] sm:$0xff]
  %v2100 = vld [vmem:[#allocation3 + $0x90] sm:$0xff]
  %v2101 = vld [vmem:[#allocation3 + $0x98] sm:$0xff]
  %v2102 = vld [vmem:[#allocation3 + $0xa0] sm:$0xff]
  %v2103 = vld [vmem:[#allocation3 + $0xa8] sm:$0xff]
  %v2104 = vld [vmem:[#allocation3 + $0xb0] sm:$0xff]
  %v2105 = vld [vmem:[#allocation3 + $0xb8] sm:$0xff]
  %v2106 = vld [vmem:[#allocation3 + $0xc0] sm:$0xff]
  %v2107 = vld [vmem:[#allocation3 + $0xc8] sm:$0xff]
  %v2108 = vld [vmem:[#allocation3 + $0xd0] sm:$0xff]
  %v2109 = vld [vmem:[#allocation3 + $0xd8] sm:$0xff]
  %v2110 = vld [vmem:[#allocation3 + $0xe0] sm:$0xff]
  %v2111 = vld [vmem:[#allocation3 + $0xe8] sm:$0xff]
  %v2112 = vld [vmem:[#allocation3 + $0xf0] sm:$0xff]
  %v2113 = vld [vmem:[#allocation3 + $0xf8] sm:$0xff]
  %v2114 = vld [vmem:[#allocation3 + $0x100] sm:$0xff]
  %v2115 = vld [vmem:[#allocation3 + $0x108] sm:$0xff]
  %v2116 = vld [vmem:[#allocation3 + $0x110] sm:$0xff]
  %v2117 = vld [vmem:[#allocation3 + $0x118] sm:$0xff]
  %v2118 = vld [vmem:[#allocation3 + $0x120] sm:$0xff]
  %v2119 = vld [vmem:[#allocation3 + $0x128] sm:$0xff]
  %v2120 = vld [vmem:[#allocation3 + $0x130] sm:$0xff]
  %v2121 = vld [vmem:[#allocation3 + $0x138] sm:$0xff]
  %v2122 = vld [vmem:[#allocation3 + $0x140] sm:$0xff]
  %v2123 = vld [vmem:[#allocation3 + $0x148] sm:$0xff]
  %v2124 = vld [vmem:[#allocation3 + $0x150] sm:$0xff]
  %v2125 = vld [vmem:[#allocation3 + $0x158] sm:$0xff]
  %v2126 = vld [vmem:[#allocation3 + $0x160] sm:$0xff]
  %v2127 = vld [vmem:[#allocation3 + $0x168] sm:$0xff]
  %v2128 = vld [vmem:[#allocation3 + $0x170] sm:$0xff]
  %v2129 = vld [vmem:[#allocation3 + $0x178] sm:$0xff]
  %v2130 = vld [vmem:[#allocation3 + $0x180] sm:$0xff]
  %v2131 = vld [vmem:[#allocation3 + $0x188] sm:$0xff]
  %v2132 = vld [vmem:[#allocation3 + $0x190] sm:$0xff]
  %v2133 = vld [vmem:[#allocation3 + $0x198] sm:$0xff]
  %v2134 = vld [vmem:[#allocation3 + $0x1a0] sm:$0xff]
  %v2135 = vld [vmem:[#allocation3 + $0x1a8] sm:$0xff]
  %v2136 = vld [vmem:[#allocation3 + $0x1b0] sm:$0xff]
  %v2137 = vld [vmem:[#allocation3 + $0x1b8] sm:$0xff]
  %v2138 = vld [vmem:[#allocation3 + $0x1c0] sm:$0xff]
  %v2139 = vld [vmem:[#allocation3 + $0x1c8] sm:$0xff]
  %v2140 = vld [vmem:[#allocation3 + $0x1d0] sm:$0xff]
  %v2141 = vld [vmem:[#allocation3 + $0x1d8] sm:$0xff]
  %v2142 = vld [vmem:[#allocation3 + $0x1e0] sm:$0xff]
  %v2143 = vld [vmem:[#allocation3 + $0x1e8] sm:$0xff]
  %v2144 = vld [vmem:[#allocation3 + $0x1f0] sm:$0xff]
  %v2145 = vld [vmem:[#allocation3 + $0x1f8] sm:$0xff]
  %v2146 = vld [vmem:[#allocation3 + $0x200] sm:$0xff]
  %v2147 = vld [vmem:[#allocation3 + $0x208] sm:$0xff]
  %v2148 = vld [vmem:[#allocation3 + $0x210] sm:$0xff]
  %v2149 = vld [vmem:[#allocation3 + $0x218] sm:$0xff]
  %v2150 = vld [vmem:[#allocation3 + $0x220] sm:$0xff]
  %v2151 = vld [vmem:[#allocation3 + $0x228] sm:$0xff]
  %v2152 = vld [vmem:[#allocation3 + $0x230] sm:$0xff]
  %v2153 = vld [vmem:[#allocation3 + $0x238] sm:$0xff]
  %v2154 = vld [vmem:[%s4] sm:$0xff]
  %v2155 = vld [vmem:[%s4 + $0x8] sm:$0xff]
  %2157 = vset.pattern.permute.xlu0 0
  %2158 = vperm.xlu0 %2157, %v2154
  %v2159 = vpop.permute.xlu0 %2158
  %2162 = vset.pattern.permute.xlu0 0
  %2163 = vperm.xlu0 %2162, %v2155
  %v2164 = vpop.permute.xlu0 %2163
  %v2167 = vsel %vm251, %v2079, 0
  %v2170 = vsel %vm251, %v2081, 0
  %2172 = vmatprep.subr.mxu0 %v2083
  %2173 = vmatpush1.msra.mxu0 %v2082
  %2174 = vmatprep.subr.mxu0 %v2087
  %2175 = vmatpush1.msra.mxu0 %v2086
  %2176 = vmatprep.subr.mxu0 %v2091
  %2177 = vmatpush1.msra.mxu0 %v2090
  %2178 = vmatprep.subr.mxu0 %v2095
  %2179 = vmatpush1.msra.mxu0 %v2094
  %2180 = vmatprep.subr.mxu0 %v2099
  %2181 = vmatpush1.msra.mxu0 %v2098
  %2182 = vmatprep.subr.mxu0 %v2103
  %2183 = vmatpush1.msra.mxu0 %v2102
  %2184 = vmatprep.subr.mxu0 %v2107
  %2185 = vmatpush1.msra.mxu0 %v2106
  %2186 = vmatprep.subr.mxu0 %v2111
  %2187 = vmatpush1.msra.mxu0 %v2110
  %2188 = vmatprep.subr.mxu0 %v2115
  %2189 = vmatpush1.msra.mxu0 %v2114
  %2190 = vmatprep.subr.mxu0 %v2119
  %2191 = vmatpush1.msra.mxu0 %v2118
  %2192 = vmatprep.subr.mxu0 %v2123
  %2193 = vmatpush1.msra.mxu0 %v2122
  %2194 = vmatprep.subr.mxu0 %v2127
  %2195 = vmatpush1.msra.mxu0 %v2126
  %2196 = vmatprep.subr.mxu0 %v2131
  %2197 = vmatpush1.msra.mxu0 %v2130
  %2198 = vmatprep.subr.mxu0 %v2135
  %2199 = vmatpush1.msra.mxu0 %v2134
  %2200 = vmatprep.subr.mxu0 %v2139
  %2201 = vmatpush1.msra.mxu0 %v2138
  %2202 = vmatprep.subr.mxu0 %v2143
  %2203 = vmatpush1.msra.mxu0 %v2142
  %2204 = vmatprep.subr.mxu0 %v2147
  %2205 = vmatpush1.msra.mxu0 %v2146
  %2206 = vmatprep.subr.mxu0 %v2151
  %2207 = vmatpush1.msra.mxu0 %v2150
  %2208 = vmatprep.subr.mxu0 0.0
  %2209 = vmatpush1.msra.mxu0 0.0
  %2210 = vmatprep.subr.mxu0 0.0
  %2211 = vmatpush1.msra.mxu0 0.0
  %2212 = vmatprep.subr.mxu0 0.0
  %2213 = vmatpush1.msra.mxu0 0.0
  %2214 = vmatprep.subr.mxu0 0.0
  %2215 = vmatpush1.msra.mxu0 0.0
  %2216 = vmatprep.subr.mxu0 0.0
  %2217 = vmatpush1.msra.mxu0 0.0
  %2218 = vmatprep.subr.mxu0 0.0
  %2219 = vmatpush1.msra.mxu0 0.0
  %2220 = vmatprep.subr.mxu0 0.0
  %2221 = vmatpush1.msra.mxu0 0.0
  %2222 = vmatprep.subr.mxu0 0.0
  %2223 = vmatpush1.msra.mxu0 0.0
  %2224 = vmatprep.subr.mxu0 0.0
  %2225 = vmatpush1.msra.mxu0 0.0
  %2226 = vmatprep.subr.mxu0 0.0
  %2227 = vmatpush1.msra.mxu0 0.0
  %2228 = vmatprep.subr.mxu0 0.0
  %2229 = vmatpush1.msra.mxu0 0.0
  %2230 = vmatprep.subr.mxu0 0.0
  %2231 = vmatpush1.msra.mxu0 0.0
  %2232 = vmatprep.subr.mxu0 0.0
  %2233 = vmatpush1.msra.mxu0 0.0
  %2234 = vmatprep.subr.mxu0 0.0
  %2235 = vmatpush1.msra.mxu0 0.0
  %2236 = vmatprep.mubr.f32.mxu0 %v2167
  %2237 = vmatmul.mubr.f32.gmra.mrb[0].mxu0 %v2078
  %v2238 = vpop.f32.mrb[0].mxu0
  %v2239 = vadd.f32 %v2159, %v2238
  %v2240 = vpop.f32.mrb[0].mxu0
  %v2241 = vadd.f32 %v2159, %v2240
  %2242 = vmatprep.mubr.f32.mxu0 %v2170
  %2243 = vmatmul.mubr.f32.gmra.mrb[0].mxu0 %v2080
  %v2244 = vpop.f32.mrb[0].mxu0
  %v2245 = vadd.f32 %v2164, %v2244
  %v2246 = vpop.f32.mrb[0].mxu0
  %v2247 = vadd.f32 %v2164, %v2246
  %2248 = vdwg.mxu0
  %2249 = vmatprep.subr.mxu0 %v2085
  %2250 = vmatpush1.msra.mxu0 %v2084
  %2251 = vmatprep.subr.mxu0 %v2089
  %2252 = vmatpush1.msra.mxu0 %v2088
  %2253 = vmatprep.subr.mxu0 %v2093
  %2254 = vmatpush1.msra.mxu0 %v2092
  %2255 = vmatprep.subr.mxu0 %v2097
  %2256 = vmatpush1.msra.mxu0 %v2096
  %2257 = vmatprep.subr.mxu0 %v2101
  %2258 = vmatpush1.msra.mxu0 %v2100
  %2259 = vmatprep.subr.mxu0 %v2105
  %2260 = vmatpush1.msra.mxu0 %v2104
  %2261 = vmatprep.subr.mxu0 %v2109
  %2262 = vmatpush1.msra.mxu0 %v2108
  %2263 = vmatprep.subr.mxu0 %v2113
  %2264 = vmatpush1.msra.mxu0 %v2112
  %2265 = vmatprep.subr.mxu0 %v2117
  %2266 = vmatpush1.msra.mxu0 %v2116
  %2267 = vmatprep.subr.mxu0 %v2121
  %2268 = vmatpush1.msra.mxu0 %v2120
  %2269 = vmatprep.subr.mxu0 %v2125
  %2270 = vmatpush1.msra.mxu0 %v2124
  %2271 = vmatprep.subr.mxu0 %v2129
  %2272 = vmatpush1.msra.mxu0 %v2128
  %2273 = vmatprep.subr.mxu0 %v2133
  %2274 = vmatpush1.msra.mxu0 %v2132
  %2275 = vmatprep.subr.mxu0 %v2137
  %2276 = vmatpush1.msra.mxu0 %v2136
  %2277 = vmatprep.subr.mxu0 %v2141
  %2278 = vmatpush1.msra.mxu0 %v2140
  %2279 = vmatprep.subr.mxu0 %v2145
  %2280 = vmatpush1.msra.mxu0 %v2144
  %2281 = vmatprep.subr.mxu0 %v2149
  %2282 = vmatpush1.msra.mxu0 %v2148
  %2283 = vmatprep.subr.mxu0 %v2153
  %2284 = vmatpush1.msra.mxu0 %v2152
  %2285 = vmatprep.subr.mxu0 0.0
  %2286 = vmatpush1.msra.mxu0 0.0
  %2287 = vmatprep.subr.mxu0 0.0
  %2288 = vmatpush1.msra.mxu0 0.0
  %2289 = vmatprep.subr.mxu0 0.0
  %2290 = vmatpush1.msra.mxu0 0.0
  %2291 = vmatprep.subr.mxu0 0.0
  %2292 = vmatpush1.msra.mxu0 0.0
  %2293 = vmatprep.subr.mxu0 0.0
  %2294 = vmatpush1.msra.mxu0 0.0
  %2295 = vmatprep.subr.mxu0 0.0
  %2296 = vmatpush1.msra.mxu0 0.0
  %2297 = vmatprep.subr.mxu0 0.0
  %2298 = vmatpush1.msra.mxu0 0.0
  %2299 = vmatprep.subr.mxu0 0.0
  %2300 = vmatpush1.msra.mxu0 0.0
  %2301 = vmatprep.subr.mxu0 0.0
  %2302 = vmatpush1.msra.mxu0 0.0
  %2303 = vmatprep.subr.mxu0 0.0
  %2304 = vmatpush1.msra.mxu0 0.0
  %2305 = vmatprep.subr.mxu0 0.0
  %2306 = vmatpush1.msra.mxu0 0.0
  %2307 = vmatprep.subr.mxu0 0.0
  %2308 = vmatpush1.msra.mxu0 0.0
  %2309 = vmatprep.subr.mxu0 0.0
  %2310 = vmatpush1.msra.mxu0 0.0
  %2311 = vmatprep.subr.mxu0 0.0
  %2312 = vmatpush1.msra.mxu0 0.0
  %2313 = vmatprep.mubr.f32.mxu0 %v2167
  %2314 = vmatmul.mubr.f32.gmra.mrb[0].mxu0 %v2078
  %v2315 = vpop.f32.mrb[0].mxu0
  %v2316 = vadd.f32 %v2159, %v2315
  %v2317 = vpop.f32.mrb[0].mxu0
  %v2318 = vadd.f32 %v2159, %v2317
  %2319 = vmatprep.mubr.f32.mxu0 %v2170
  %2320 = vmatmul.mubr.f32.gmra.mrb[0].mxu0 %v2080
  %v2321 = vpop.f32.mrb[0].mxu0
  %v2322 = vadd.f32 %v2164, %v2321
  %v2323 = vpop.f32.mrb[0].mxu0
  %v2324 = vadd.f32 %v2164, %v2323
  %2325 = vdwg.mxu0
  %v2326 = vld [vmem:[%s8] sm:$0xff]
  %v2327 = vld [vmem:[%s8 + $0x8] sm:$0xff]
  %v2328 = vld [vmem:[%s8 + $0x10] sm:$0xff]
  %v2329 = vld [vmem:[%s8 + $0x18] sm:$0xff]
  %v2330 = vld [vmem:[%s8 + $0x20] sm:$0xff]
  %v2331 = vld [vmem:[%s8 + $0x28] sm:$0xff]
  %v2332 = vld [vmem:[%s8 + $0x30] sm:$0xff]
  %v2333 = vld [vmem:[%s8 + $0x38] sm:$0xff]
  %v2334 = vld [vmem:[%s8 + $0x40] sm:$0xff]
  %v2335 = vld [vmem:[%s8 + $0x48] sm:$0xff]
  %v2336 = vld [vmem:[%s8 + $0x50] sm:$0xff]
  %v2337 = vld [vmem:[%s8 + $0x58] sm:$0xff]
  %v2338 = vld [vmem:[%s8 + $0x60] sm:$0xff]
  %v2339 = vld [vmem:[%s8 + $0x68] sm:$0xff]
  %v2340 = vld [vmem:[%s8 + $0x70] sm:$0xff]
  %v2341 = vld [vmem:[%s8 + $0x78] sm:$0xff]
  %v2342 = vld [vmem:[%s8 + $0x80] sm:$0xff]
  %v2343 = vld [vmem:[%s8 + $0x88] sm:$0xff]
  %v2344 = vld [vmem:[%s8 + $0x90] sm:$0xff]
  %v2345 = vld [vmem:[%s8 + $0x98] sm:$0xff]
  %v2346 = vld [vmem:[%s8 + $0xa0] sm:$0xff]
  %v2347 = vld [vmem:[%s8 + $0xa8] sm:$0xff]
  %v2348 = vld [vmem:[%s8 + $0xb0] sm:$0xff]
  %v2349 = vld [vmem:[%s8 + $0xb8] sm:$0xff]
  %v2350 = vld [vmem:[%s8 + $0xc0] sm:$0xff]
  %v2351 = vld [vmem:[%s8 + $0xc8] sm:$0xff]
  %v2352 = vld [vmem:[%s8 + $0xd0] sm:$0xff]
  %v2353 = vld [vmem:[%s8 + $0xd8] sm:$0xff]
  %v2354 = vld [vmem:[%s8 + $0xe0] sm:$0xff]
  %v2355 = vld [vmem:[%s8 + $0xe8] sm:$0xff]
  %v2356 = vld [vmem:[%s8 + $0xf0] sm:$0xff]
  %v2357 = vld [vmem:[%s8 + $0xf8] sm:$0xff]
  %v2358 = vld [vmem:[%s8 + $0x100] sm:$0xff]
  %v2359 = vld [vmem:[%s8 + $0x108] sm:$0xff]
  %v2360 = vld [vmem:[%s8 + $0x110] sm:$0xff]
  %v2361 = vld [vmem:[%s8 + $0x118] sm:$0xff]
  %v2362 = vld [vmem:[%s8 + $0x120] sm:$0xff]
  %v2363 = vld [vmem:[%s8 + $0x128] sm:$0xff]
  %v2364 = vld [vmem:[%s8 + $0x130] sm:$0xff]
  %v2365 = vld [vmem:[%s8 + $0x138] sm:$0xff]
  %v2366 = vld [vmem:[%s8 + $0x140] sm:$0xff]
  %v2367 = vld [vmem:[%s8 + $0x148] sm:$0xff]
  %v2368 = vld [vmem:[%s8 + $0x150] sm:$0xff]
  %v2369 = vld [vmem:[%s8 + $0x158] sm:$0xff]
  %v2370 = vld [vmem:[%s8 + $0x160] sm:$0xff]
  %v2371 = vld [vmem:[%s8 + $0x168] sm:$0xff]
  %v2372 = vld [vmem:[%s8 + $0x170] sm:$0xff]
  %v2373 = vld [vmem:[%s8 + $0x178] sm:$0xff]
  %v2374 = vld [vmem:[%s8 + $0x180] sm:$0xff]
  %v2375 = vld [vmem:[%s8 + $0x188] sm:$0xff]
  %v2376 = vld [vmem:[%s8 + $0x190] sm:$0xff]
  %v2377 = vld [vmem:[%s8 + $0x198] sm:$0xff]
  %v2378 = vld [vmem:[%s8 + $0x1a0] sm:$0xff]
  %v2379 = vld [vmem:[%s8 + $0x1a8] sm:$0xff]
  %v2380 = vld [vmem:[%s8 + $0x1b0] sm:$0xff]
  %v2381 = vld [vmem:[%s8 + $0x1b8] sm:$0xff]
  %v2382 = vld [vmem:[%s8 + $0x1c0] sm:$0xff]
  %v2383 = vld [vmem:[%s8 + $0x1c8] sm:$0xff]
  %v2384 = vld [vmem:[%s8 + $0x1d0] sm:$0xff]
  %v2385 = vld [vmem:[%s8 + $0x1d8] sm:$0xff]
  %v2386 = vld [vmem:[%s8 + $0x1e0] sm:$0xff]
  %v2387 = vld [vmem:[%s8 + $0x1e8] sm:$0xff]
  %v2388 = vld [vmem:[%s8 + $0x1f0] sm:$0xff]
  %v2389 = vld [vmem:[%s8 + $0x1f8] sm:$0xff]
  %2390 = vmatprep.subr.mxu0 0.0
  %2391 = vmatpush1.msra.mxu0 %v2326
  %2392 = vmatprep.subr.mxu0 0.0
  %2393 = vmatpush1.msra.mxu0 %v2327
  %2394 = vmatprep.subr.mxu0 0.0
  %2395 = vmatpush1.msra.mxu0 %v2328
  %2396 = vmatprep.subr.mxu0 0.0
  %2397 = vmatpush1.msra.mxu0 %v2329
  %2398 = vmatprep.subr.mxu0 0.0
  %2399 = vmatpush1.msra.mxu0 %v2330
  %2400 = vmatprep.subr.mxu0 0.0
  %2401 = vmatpush1.msra.mxu0 %v2331
  %2402 = vmatprep.subr.mxu0 0.0
  %2403 = vmatpush1.msra.mxu0 %v2332
  %2404 = vmatprep.subr.mxu0 0.0
  %2405 = vmatpush1.msra.mxu0 %v2333
  %2406 = vmatprep.subr.mxu0 0.0
  %2407 = vmatpush1.msra.mxu0 %v2334
  %2408 = vmatprep.subr.mxu0 0.0
  %2409 = vmatpush1.msra.mxu0 %v2335
  %2410 = vmatprep.subr.mxu0 0.0
  %2411 = vmatpush1.msra.mxu0 %v2336
  %2412 = vmatprep.subr.mxu0 0.0
  %2413 = vmatpush1.msra.mxu0 %v2337
  %2414 = vmatprep.subr.mxu0 0.0
  %2415 = vmatpush1.msra.mxu0 %v2338
  %2416 = vmatprep.subr.mxu0 0.0
  %2417 = vmatpush1.msra.mxu0 %v2339
  %2418 = vmatprep.subr.mxu0 0.0
  %2419 = vmatpush1.msra.mxu0 %v2340
  %2420 = vmatprep.subr.mxu0 0.0
  %2421 = vmatpush1.msra.mxu0 %v2341
  %2422 = vmatprep.subr.mxu0 0.0
  %2423 = vmatpush1.msra.mxu0 %v2342
  %2424 = vmatprep.subr.mxu0 0.0
  %2425 = vmatpush1.msra.mxu0 %v2343
  %2426 = vmatprep.subr.mxu0 0.0
  %2427 = vmatpush1.msra.mxu0 %v2344
  %2428 = vmatprep.subr.mxu0 0.0
  %2429 = vmatpush1.msra.mxu0 %v2345
  %2430 = vmatprep.subr.mxu0 0.0
  %2431 = vmatpush1.msra.mxu0 %v2346
  %2432 = vmatprep.subr.mxu0 0.0
  %2433 = vmatpush1.msra.mxu0 %v2347
  %2434 = vmatprep.subr.mxu0 0.0
  %2435 = vmatpush1.msra.mxu0 %v2348
  %2436 = vmatprep.subr.mxu0 0.0
  %2437 = vmatpush1.msra.mxu0 %v2349
  %2438 = vmatprep.subr.mxu0 0.0
  %2439 = vmatpush1.msra.mxu0 %v2350
  %2440 = vmatprep.subr.mxu0 0.0
  %2441 = vmatpush1.msra.mxu0 %v2351
  %2442 = vmatprep.subr.mxu0 0.0
  %2443 = vmatpush1.msra.mxu0 %v2352
  %2444 = vmatprep.subr.mxu0 0.0
  %2445 = vmatpush1.msra.mxu0 %v2353
  %2446 = vmatprep.subr.mxu0 0.0
  %2447 = vmatpush1.msra.mxu0 %v2354
  %2448 = vmatprep.subr.mxu0 0.0
  %2449 = vmatpush1.msra.mxu0 %v2355
  %2450 = vmatprep.subr.mxu0 0.0
  %2451 = vmatpush1.msra.mxu0 %v2356
  %2452 = vmatprep.subr.mxu0 0.0
  %2453 = vmatpush1.msra.mxu0 %v2357
  %2454 = vmatprep.mubr.f32.mxu0 %v2241
  %2455 = vmatmul.mubr.f32.gmra.mrb[0].mxu0 %v2239
  %v2456 = vpop.f32.mrb[0].mxu0
  %v2457 = vadd.f32 0.0, %v2456
  %v2458 = vpop.f32.mrb[0].mxu0
  %2459 = vmatprep.mubr.f32.mxu0 %v2247
  %2460 = vmatmul.mubr.f32.gmra.mrb[0].mxu0 %v2245
  %v2461 = vpop.f32.mrb[0].mxu0
  %v2462 = vadd.f32 0.0, %v2461
  %v2463 = vpop.f32.mrb[0].mxu0
  %2464 = vdwg.mxu0
  %2465 = vmatprep.subr.mxu0 0.0
  %2466 = vmatpush1.msra.mxu0 %v2358
  %2467 = vmatprep.subr.mxu0 0.0
  %2468 = vmatpush1.msra.mxu0 %v2359
  %2469 = vmatprep.subr.mxu0 0.0
  %2470 = vmatpush1.msra.mxu0 %v2360
  %2471 = vmatprep.subr.mxu0 0.0
  %2472 = vmatpush1.msra.mxu0 %v2361
  %2473 = vmatprep.subr.mxu0 0.0
  %2474 = vmatpush1.msra.mxu0 %v2362
  %2475 = vmatprep.subr.mxu0 0.0
  %2476 = vmatpush1.msra.mxu0 %v2363
  %2477 = vmatprep.subr.mxu0 0.0
  %2478 = vmatpush1.msra.mxu0 %v2364
  %2479 = vmatprep.subr.mxu0 0.0
  %2480 = vmatpush1.msra.mxu0 %v2365
  %2481 = vmatprep.subr.mxu0 0.0
  %2482 = vmatpush1.msra.mxu0 %v2366
  %2483 = vmatprep.subr.mxu0 0.0
  %2484 = vmatpush1.msra.mxu0 %v2367
  %2485 = vmatprep.subr.mxu0 0.0
  %2486 = vmatpush1.msra.mxu0 %v2368
  %2487 = vmatprep.subr.mxu0 0.0
  %2488 = vmatpush1.msra.mxu0 %v2369
  %2489 = vmatprep.subr.mxu0 0.0
  %2490 = vmatpush1.msra.mxu0 %v2370
  %2491 = vmatprep.subr.mxu0 0.0
  %2492 = vmatpush1.msra.mxu0 %v2371
  %2493 = vmatprep.subr.mxu0 0.0
  %2494 = vmatpush1.msra.mxu0 %v2372
  %2495 = vmatprep.subr.mxu0 0.0
  %2496 = vmatpush1.msra.mxu0 %v2373
  %2497 = vmatprep.subr.mxu0 0.0
  %2498 = vmatpush1.msra.mxu0 %v2374
  %2499 = vmatprep.subr.mxu0 0.0
  %2500 = vmatpush1.msra.mxu0 %v2375
  %2501 = vmatprep.subr.mxu0 0.0
  %2502 = vmatpush1.msra.mxu0 %v2376
  %2503 = vmatprep.subr.mxu0 0.0
  %2504 = vmatpush1.msra.mxu0 %v2377
  %2505 = vmatprep.subr.mxu0 0.0
  %2506 = vmatpush1.msra.mxu0 %v2378
  %2507 = vmatprep.subr.mxu0 0.0
  %2508 = vmatpush1.msra.mxu0 %v2379
  %2509 = vmatprep.subr.mxu0 0.0
  %2510 = vmatpush1.msra.mxu0 %v2380
  %2511 = vmatprep.subr.mxu0 0.0
  %2512 = vmatpush1.msra.mxu0 %v2381
  %2513 = vmatprep.subr.mxu0 0.0
  %2514 = vmatpush1.msra.mxu0 %v2382
  %2515 = vmatprep.subr.mxu0 0.0
  %2516 = vmatpush1.msra.mxu0 %v2383
  %2517 = vmatprep.subr.mxu0 0.0
  %2518 = vmatpush1.msra.mxu0 %v2384
  %2519 = vmatprep.subr.mxu0 0.0
  %2520 = vmatpush1.msra.mxu0 %v2385
  %2521 = vmatprep.subr.mxu0 0.0
  %2522 = vmatpush1.msra.mxu0 %v2386
  %2523 = vmatprep.subr.mxu0 0.0
  %2524 = vmatpush1.msra.mxu0 %v2387
  %2525 = vmatprep.subr.mxu0 0.0
  %2526 = vmatpush1.msra.mxu0 %v2388
  %2527 = vmatprep.subr.mxu0 0.0
  %2528 = vmatpush1.msra.mxu0 %v2389
  %2529 = vmatprep.mubr.f32.mxu0 %v2318
  %2530 = vmatmul.mubr.f32.gmra.mrb[0].mxu0 %v2316
  %v2531 = vpop.f32.mrb[0].mxu0
  %v2532 = vadd.f32 %v2457, %v2531
  %v2533 = vpop.f32.mrb[0].mxu0
  %2534 = vmatprep.mubr.f32.mxu0 %v2324
  %2535 = vmatmul.mubr.f32.gmra.mrb[0].mxu0 %v2322
  %v2536 = vpop.f32.mrb[0].mxu0
  %v2537 = vadd.f32 %v2462, %v2536
  %v2538 = vpop.f32.mrb[0].mxu0
  %2539 = vdwg.mxu0
  %v2540 = vld [vmem:[%s5] sm:$0xf]
  %v2542 = vsel %vm251, %v2540, 0
  %2544 = vmatprep.subr.mxu0 0.0
  %2545 = vmatpush1.msra.mxu0 %v2532
  %2546 = vmatprep.subr.mxu0 0.0
  %2547 = vmatpush1.msra.mxu0 %v2537
  %2548 = vmatprep.subr.mxu0 0.0
  %2549 = vmatpush1.msra.mxu0 0.0
  %2550 = vmatprep.subr.mxu0 0.0
  %2551 = vmatpush1.msra.mxu0 0.0
  %2552 = vmatprep.subr.mxu0 0.0
  %2553 = vmatpush1.msra.mxu0 0.0
  %2554 = vmatprep.subr.mxu0 0.0
  %2555 = vmatpush1.msra.mxu0 0.0
  %2556 = vmatprep.subr.mxu0 0.0
  %2557 = vmatpush1.msra.mxu0 0.0
  %2558 = vmatprep.subr.mxu0 0.0
  %2559 = vmatpush1.msra.mxu0 0.0
  %2560 = vmatprep.subr.mxu0 0.0
  %2561 = vmatpush1.msra.mxu0 0.0
  %2562 = vmatprep.subr.mxu0 0.0
  %2563 = vmatpush1.msra.mxu0 0.0
  %2564 = vmatprep.subr.mxu0 0.0
  %2565 = vmatpush1.msra.mxu0 0.0
  %2566 = vmatprep.subr.mxu0 0.0
  %2567 = vmatpush1.msra.mxu0 0.0
  %2568 = vmatprep.subr.mxu0 0.0
  %2569 = vmatpush1.msra.mxu0 0.0
  %2570 = vmatprep.subr.mxu0 0.0
  %2571 = vmatpush1.msra.mxu0 0.0
  %2572 = vmatprep.subr.mxu0 0.0
  %2573 = vmatpush1.msra.mxu0 0.0
  %2574 = vmatprep.subr.mxu0 0.0
  %2575 = vmatpush1.msra.mxu0 0.0
  %2576 = vmatprep.subr.mxu0 0.0
  %2577 = vmatpush1.msra.mxu0 0.0
  %2578 = vmatprep.subr.mxu0 0.0
  %2579 = vmatpush1.msra.mxu0 0.0
  %2580 = vmatprep.subr.mxu0 0.0
  %2581 = vmatpush1.msra.mxu0 0.0
  %2582 = vmatprep.subr.mxu0 0.0
  %2583 = vmatpush1.msra.mxu0 0.0
  %2584 = vmatprep.subr.mxu0 0.0
  %2585 = vmatpush1.msra.mxu0 0.0
  %2586 = vmatprep.subr.mxu0 0.0
  %2587 = vmatpush1.msra.mxu0 0.0
  %2588 = vmatprep.subr.mxu0 0.0
  %2589 = vmatpush1.msra.mxu0 0.0
  %2590 = vmatprep.subr.mxu0 0.0
  %2591 = vmatpush1.msra.mxu0 0.0
  %2592 = vmatprep.subr.mxu0 0.0
  %2593 = vmatpush1.msra.mxu0 0.0
  %2594 = vmatprep.subr.mxu0 0.0
  %2595 = vmatpush1.msra.mxu0 0.0
  %2596 = vmatprep.subr.mxu0 0.0
  %2597 = vmatpush1.msra.mxu0 0.0
  %2598 = vmatprep.subr.mxu0 0.0
  %2599 = vmatpush1.msra.mxu0 0.0
  %2600 = vmatprep.subr.mxu0 0.0
  %2601 = vmatpush1.msra.mxu0 0.0
  %2602 = vmatprep.subr.mxu0 0.0
  %2603 = vmatpush1.msra.mxu0 0.0
  %2604 = vmatprep.subr.mxu0 0.0
  %2605 = vmatpush1.msra.mxu0 0.0
  %2606 = vmatprep.subr.mxu0 0.0
  %2607 = vmatpush1.msra.mxu0 0.0
  %2608 = vmatprep.mubr.f32.mxu0 0.0
  %2609 = vmatmul.mubr.f32.gmra.mrb[0].mxu0 %v2542
  %v2610 = vpop.f32.mrb[0].mxu0
  %v2611 = vadd.f32 0.0, %v2610
  %v2612 = vpop.f32.mrb[0].mxu0
  %2613 = vdwg.mxu0
  %v2614 = vmax.f32 %v2611, 0.0
  %v2615 = vld [vmem:[%s6] sm:$0xff]
  %v2616 = vld [vmem:[%s6 + $0x8] sm:$0xff]
  %vm2617 = vcmask 31744
  %v2619 = vsel %vm2617, %v2615, 0
  %v2622 = vsel %vm2617, %v2616, 0
  %vm2624 = vcmask 1043456
  %v2626 = vsel %vm2624, %v2614, 0
  %2628 = vmatprep.subr.mxu0 0.0
  %2629 = vmatpush1.msra.mxu0 %v2626
  %2630 = vmatprep.subr.mxu0 0.0
  %2631 = vmatpush1.msra.mxu0 0.0
  %2632 = vmatprep.subr.mxu0 0.0
  %2633 = vmatpush1.msra.mxu0 0.0
  %2634 = vmatprep.subr.mxu0 0.0
  %2635 = vmatpush1.msra.mxu0 0.0
  %2636 = vmatprep.subr.mxu0 0.0
  %2637 = vmatpush1.msra.mxu0 0.0
  %2638 = vmatprep.subr.mxu0 0.0
  %2639 = vmatpush1.msra.mxu0 0.0
  %2640 = vmatprep.subr.mxu0 0.0
  %2641 = vmatpush1.msra.mxu0 0.0
  %2642 = vmatprep.subr.mxu0 0.0
  %2643 = vmatpush1.msra.mxu0 0.0
  %2644 = vmatprep.subr.mxu0 0.0
  %2645 = vmatpush1.msra.mxu0 0.0
  %2646 = vmatprep.subr.mxu0 0.0
  %2647 = vmatpush1.msra.mxu0 0.0
  %2648 = vmatprep.subr.mxu0 0.0
  %2649 = vmatpush1.msra.mxu0 0.0
  %2650 = vmatprep.subr.mxu0 0.0
  %2651 = vmatpush1.msra.mxu0 0.0
  %2652 = vmatprep.subr.mxu0 0.0
  %2653 = vmatpush1.msra.mxu0 0.0
  %2654 = vmatprep.subr.mxu0 0.0
  %2655 = vmatpush1.msra.mxu0 0.0
  %2656 = vmatprep.subr.mxu0 0.0
  %2657 = vmatpush1.msra.mxu0 0.0
  %2658 = vmatprep.subr.mxu0 0.0
  %2659 = vmatpush1.msra.mxu0 0.0
  %2660 = vmatprep.subr.mxu0 0.0
  %2661 = vmatpush1.msra.mxu0 0.0
  %2662 = vmatprep.subr.mxu0 0.0
  %2663 = vmatpush1.msra.mxu0 0.0
  %2664 = vmatprep.subr.mxu0 0.0
  %2665 = vmatpush1.msra.mxu0 0.0
  %2666 = vmatprep.subr.mxu0 0.0
  %2667 = vmatpush1.msra.mxu0 0.0
  %2668 = vmatprep.subr.mxu0 0.0
  %2669 = vmatpush1.msra.mxu0 0.0
  %2670 = vmatprep.subr.mxu0 0.0
  %2671 = vmatpush1.msra.mxu0 0.0
  %2672 = vmatprep.subr.mxu0 0.0
  %2673 = vmatpush1.msra.mxu0 0.0
  %2674 = vmatprep.subr.mxu0 0.0
  %2675 = vmatpush1.msra.mxu0 0.0
  %2676 = vmatprep.subr.mxu0 0.0
  %2677 = vmatpush1.msra.mxu0 0.0
  %2678 = vmatprep.subr.mxu0 0.0
  %2679 = vmatpush1.msra.mxu0 0.0
  %2680 = vmatprep.subr.mxu0 0.0
  %2681 = vmatpush1.msra.mxu0 0.0
  %2682 = vmatprep.subr.mxu0 0.0
  %2683 = vmatpush1.msra.mxu0 0.0
  %2684 = vmatprep.subr.mxu0 0.0
  %2685 = vmatpush1.msra.mxu0 0.0
  %2686 = vmatprep.subr.mxu0 0.0
  %2687 = vmatpush1.msra.mxu0 0.0
  %2688 = vmatprep.subr.mxu0 0.0
  %2689 = vmatpush1.msra.mxu0 0.0
  %2690 = vmatprep.subr.mxu0 0.0
  %2691 = vmatpush1.msra.mxu0 0.0
  %2692 = vmatprep.mubr.f32.mxu0 0.0
  %2693 = vmatmul.mubr.f32.gmra.mrb[0].mxu0 %v2619
  %v2694 = vpop.f32.mrb[0].mxu0
  %v2695 = vadd.f32 0.0, %v2694
  %v2696 = vpop.f32.mrb[0].mxu0
  %2697 = vmatprep.mubr.f32.mxu0 0.0
  %2698 = vmatmul.mubr.f32.gmra.mrb[0].mxu0 %v2622
  %v2699 = vpop.f32.mrb[0].mxu0
  %v2700 = vadd.f32 0.0, %v2699
  %v2701 = vpop.f32.mrb[0].mxu0
  %2702 = vdwg.mxu0
  %v2703 = vxor.u32 %v2695, 2147483648
  %v2704 = vxor.u32 %v2700, 2147483648
  %v2705 = vmul.f32 %v2703, 1.442695
  %v2706 = vpow.pop %v2705
  %v2707 = vmul.f32 %v2704, 1.442695
  %v2708 = vpow.pop %v2707
  %v2709 = vadd.f32 %v2706, 1.0
  %v2710 = vadd.f32 %v2708, 1.0
  %v2711 = vrcp.pop %v2709
  %v2712 = vmul.f32 1.0, %v2711
  %v2713 = vrcp.pop %v2710
  %v2714 = vmul.f32 1.0, %v2713
  %v2715 = vld [vmem:[%s9] sm:$0xff]
  %v2717 = vcombine.high %v2715, %v2715
  %v2719 = vunpack.c.l.s4 1983009808
  %v2720 = vunpack.c.0.s8 %v2719
  %v2721 = vlaneseq
  %v2722 = vshrl.u32 %v2721, 7
  %v2723 = vsub.s32 %v2720, %v2722
  %v2724 = vrot.slane %v2715, %v2723
  %v2726 = vunpack.c.l.s4 1983009808
  %v2727 = vunpack.c.0.s8 %v2726
  %v2728 = vlaneseq
  %v2729 = vshrl.u32 %v2728, 7
  %v2730 = vsub.s32 %v2727, %v2729
  %v2731 = vrot.slane %v2717, %v2730
  %v2732 = vcombine.high %v2724, %v2724
  %v2733 = vcombine.high %v2731, %v2731
  %vm2734 = vcmask 15360
  %v2736 = vsel %vm2734, %v2712, 0
  %v2739 = vsel %vm2734, %v2714, 0
  %vm2741 = vcmask 1041408
  %v2742 = vsel %vm2741, %v2724, 0
  %v2744 = vsel %vm2741, %v2732, 0
  %v2746 = vsel %vm2741, %v2731, 0
  %v2748 = vsel %vm2741, %v2733, 0
  %2750 = vmatprep.subr.mxu0 %v2744
  %2751 = vmatpush1.msra.mxu0 %v2742
  %2752 = vmatprep.subr.mxu0 0.0
  %2753 = vmatpush1.msra.mxu0 0.0
  %2754 = vmatprep.subr.mxu0 0.0
  %2755 = vmatpush1.msra.mxu0 0.0
  %2756 = vmatprep.subr.mxu0 0.0
  %2757 = vmatpush1.msra.mxu0 0.0
  %2758 = vmatprep.subr.mxu0 0.0
  %2759 = vmatpush1.msra.mxu0 0.0
  %2760 = vmatprep.subr.mxu0 0.0
  %2761 = vmatpush1.msra.mxu0 0.0
  %2762 = vmatprep.subr.mxu0 0.0
  %2763 = vmatpush1.msra.mxu0 0.0
  %2764 = vmatprep.subr.mxu0 0.0
  %2765 = vmatpush1.msra.mxu0 0.0
  %2766 = vmatprep.subr.mxu0 0.0
  %2767 = vmatpush1.msra.mxu0 0.0
  %2768 = vmatprep.subr.mxu0 0.0
  %2769 = vmatpush1.msra.mxu0 0.0
  %2770 = vmatprep.subr.mxu0 0.0
  %2771 = vmatpush1.msra.mxu0 0.0
  %2772 = vmatprep.subr.mxu0 0.0
  %2773 = vmatpush1.msra.mxu0 0.0
  %2774 = vmatprep.subr.mxu0 0.0
  %2775 = vmatpush1.msra.mxu0 0.0
  %2776 = vmatprep.subr.mxu0 0.0
  %2777 = vmatpush1.msra.mxu0 0.0
  %2778 = vmatprep.subr.mxu0 0.0
  %2779 = vmatpush1.msra.mxu0 0.0
  %2780 = vmatprep.subr.mxu0 0.0
  %2781 = vmatpush1.msra.mxu0 0.0
  %2782 = vmatprep.subr.mxu0 0.0
  %2783 = vmatpush1.msra.mxu0 0.0
  %2784 = vmatprep.subr.mxu0 0.0
  %2785 = vmatpush1.msra.mxu0 0.0
  %2786 = vmatprep.subr.mxu0 0.0
  %2787 = vmatpush1.msra.mxu0 0.0
  %2788 = vmatprep.subr.mxu0 0.0
  %2789 = vmatpush1.msra.mxu0 0.0
  %2790 = vmatprep.subr.mxu0 0.0
  %2791 = vmatpush1.msra.mxu0 0.0
  %2792 = vmatprep.subr.mxu0 0.0
  %2793 = vmatpush1.msra.mxu0 0.0
  %2794 = vmatprep.subr.mxu0 0.0
  %2795 = vmatpush1.msra.mxu0 0.0
  %2796 = vmatprep.subr.mxu0 0.0
  %2797 = vmatpush1.msra.mxu0 0.0
  %2798 = vmatprep.subr.mxu0 0.0
  %2799 = vmatpush1.msra.mxu0 0.0
  %2800 = vmatprep.subr.mxu0 0.0
  %2801 = vmatpush1.msra.mxu0 0.0
  %2802 = vmatprep.subr.mxu0 0.0
  %2803 = vmatpush1.msra.mxu0 0.0
  %2804 = vmatprep.subr.mxu0 0.0
  %2805 = vmatpush1.msra.mxu0 0.0
  %2806 = vmatprep.subr.mxu0 0.0
  %2807 = vmatpush1.msra.mxu0 0.0
  %2808 = vmatprep.subr.mxu0 0.0
  %2809 = vmatpush1.msra.mxu0 0.0
  %2810 = vmatprep.subr.mxu0 0.0
  %2811 = vmatpush1.msra.mxu0 0.0
  %2812 = vmatprep.subr.mxu0 0.0
  %2813 = vmatpush1.msra.mxu0 0.0
  %2814 = vmatprep.mubr.f32.mxu0 0.0
  %2815 = vmatmul.mubr.f32.gmra.mrb[0].mxu0 %v2736
  %v2816 = vpop.f32.mrb[0].mxu0
  %v2817 = vadd.f32 0.0, %v2816
  %v2818 = vpop.f32.mrb[0].mxu0
  %v2819 = vadd.f32 0.0, %v2818
  %2820 = vmatprep.mubr.f32.mxu0 0.0
  %2821 = vmatmul.mubr.f32.gmra.mrb[0].mxu0 %v2739
  %v2822 = vpop.f32.mrb[0].mxu0
  %v2823 = vadd.f32 0.0, %v2822
  %v2824 = vpop.f32.mrb[0].mxu0
  %v2825 = vadd.f32 0.0, %v2824
  %2826 = vdwg.mxu0
  %2827 = vmatprep.subr.mxu0 %v2748
  %2828 = vmatpush1.msra.mxu0 %v2746
  %2829 = vmatprep.subr.mxu0 0.0
  %2830 = vmatpush1.msra.mxu0 0.0
  %2831 = vmatprep.subr.mxu0 0.0
  %2832 = vmatpush1.msra.mxu0 0.0
  %2833 = vmatprep.subr.mxu0 0.0
  %2834 = vmatpush1.msra.mxu0 0.0
  %2835 = vmatprep.subr.mxu0 0.0
  %2836 = vmatpush1.msra.mxu0 0.0
  %2837 = vmatprep.subr.mxu0 0.0
  %2838 = vmatpush1.msra.mxu0 0.0
  %2839 = vmatprep.subr.mxu0 0.0
  %2840 = vmatpush1.msra.mxu0 0.0
  %2841 = vmatprep.subr.mxu0 0.0
  %2842 = vmatpush1.msra.mxu0 0.0
  %2843 = vmatprep.subr.mxu0 0.0
  %2844 = vmatpush1.msra.mxu0 0.0
  %2845 = vmatprep.subr.mxu0 0.0
  %2846 = vmatpush1.msra.mxu0 0.0
  %2847 = vmatprep.subr.mxu0 0.0
  %2848 = vmatpush1.msra.mxu0 0.0
  %2849 = vmatprep.subr.mxu0 0.0
  %2850 = vmatpush1.msra.mxu0 0.0
  %2851 = vmatprep.subr.mxu0 0.0
  %2852 = vmatpush1.msra.mxu0 0.0
  %2853 = vmatprep.subr.mxu0 0.0
  %2854 = vmatpush1.msra.mxu0 0.0
  %2855 = vmatprep.subr.mxu0 0.0
  %2856 = vmatpush1.msra.mxu0 0.0
  %2857 = vmatprep.subr.mxu0 0.0
  %2858 = vmatpush1.msra.mxu0 0.0
  %2859 = vmatprep.subr.mxu0 0.0
  %2860 = vmatpush1.msra.mxu0 0.0
  %2861 = vmatprep.subr.mxu0 0.0
  %2862 = vmatpush1.msra.mxu0 0.0
  %2863 = vmatprep.subr.mxu0 0.0
  %2864 = vmatpush1.msra.mxu0 0.0
  %2865 = vmatprep.subr.mxu0 0.0
  %2866 = vmatpush1.msra.mxu0 0.0
  %2867 = vmatprep.subr.mxu0 0.0
  %2868 = vmatpush1.msra.mxu0 0.0
  %2869 = vmatprep.subr.mxu0 0.0
  %2870 = vmatpush1.msra.mxu0 0.0
  %2871 = vmatprep.subr.mxu0 0.0
  %2872 = vmatpush1.msra.mxu0 0.0
  %2873 = vmatprep.subr.mxu0 0.0
  %2874 = vmatpush1.msra.mxu0 0.0
  %2875 = vmatprep.subr.mxu0 0.0
  %2876 = vmatpush1.msra.mxu0 0.0
  %2877 = vmatprep.subr.mxu0 0.0
  %2878 = vmatpush1.msra.mxu0 0.0
  %2879 = vmatprep.subr.mxu0 0.0
  %2880 = vmatpush1.msra.mxu0 0.0
  %2881 = vmatprep.subr.mxu0 0.0
  %2882 = vmatpush1.msra.mxu0 0.0
  %2883 = vmatprep.subr.mxu0 0.0
  %2884 = vmatpush1.msra.mxu0 0.0
  %2885 = vmatprep.subr.mxu0 0.0
  %2886 = vmatpush1.msra.mxu0 0.0
  %2887 = vmatprep.subr.mxu0 0.0
  %2888 = vmatpush1.msra.mxu0 0.0
  %2889 = vmatprep.subr.mxu0 0.0
  %2890 = vmatpush1.msra.mxu0 0.0
  %2891 = vmatprep.mubr.f32.mxu0 0.0
  %2892 = vmatmul.mubr.f32.gmra.mrb[0].mxu0 %v2736
  %v2893 = vpop.f32.mrb[0].mxu0
  %v2894 = vadd.f32 0.0, %v2893
  %v2895 = vpop.f32.mrb[0].mxu0
  %v2896 = vadd.f32 0.0, %v2895
  %2897 = vmatprep.mubr.f32.mxu0 0.0
  %2898 = vmatmul.mubr.f32.gmra.mrb[0].mxu0 %v2739
  %v2899 = vpop.f32.mrb[0].mxu0
  %v2900 = vadd.f32 0.0, %v2899
  %v2901 = vpop.f32.mrb[0].mxu0
  %v2902 = vadd.f32 0.0, %v2901
  %2903 = vdwg.mxu0
  %v2904 = vmul.f32 %v2239, %v2817
  %v2905 = vmul.f32 %v2241, %v2819
  %v2906 = vmul.f32 %v2316, %v2894
  %v2907 = vmul.f32 %v2318, %v2896
  %v2908 = vmul.f32 %v2245, %v2823
  %v2909 = vmul.f32 %v2247, %v2825
  %v2910 = vmul.f32 %v2322, %v2900
  %v2911 = vmul.f32 %v2324, %v2902
  %v2912 = vadd.f32 %v2904, %v39
  %v2913 = vadd.f32 %v2905, %v40
  %v2914 = vadd.f32 %v2906, %v41
  %v2915 = vadd.f32 %v2907, %v42
  %v2916 = vadd.f32 %v2908, %v43
  %v2917 = vadd.f32 %v2909, %v44
  %v2918 = vadd.f32 %v2910, %v45
  %v2919 = vadd.f32 %v2911, %v46
  %v2920 = vmax.f32 %v2912, 0.0
  %v2921 = vmax.f32 %v2913, 0.0
  %v2922 = vmax.f32 %v2914, 0.0
  %v2923 = vmax.f32 %v2915, 0.0
  %v2924 = vmax.f32 %v2916, 0.0
  %v2925 = vmax.f32 %v2917, 0.0
  %v2926 = vmax.f32 %v2918, 0.0
  %v2927 = vmax.f32 %v2919, 0.0
  %2928 = vst [vmem:[%s10] sm:$0xff] %v2920
  %2929 = vst [vmem:[%s10 + $0x8] sm:$0xff] %v2921
  %2930 = vst [vmem:[%s10 + $0x10] sm:$0xff] %v2922
  %2931 = vst [vmem:[%s10 + $0x18] sm:$0xff] %v2923
  %2932 = vst [vmem:[%s10 + $0x20] sm:$0xff] %v2924
  %2933 = vst [vmem:[%s10 + $0x28] sm:$0xff] %v2925
  %2934 = vst [vmem:[%s10 + $0x30] sm:$0xff] %v2926
  %2935 = vst [vmem:[%s10 + $0x38] sm:$0xff] %v2927
  // Predicated region
  $region42: #{cifar_se_basic_block.1} parent=0 // pred_check
    _
  $region43: #{cifar_se_basic_block.1} parent=0 // pred_check_branch
    %2937 = sbr.rel (0) target = $region45
  $region44: #{cifar_se_basic_block.1} parent=0 // pred_region
    _
  $region45: #{cifar_se_basic_block.1} parent=0 // pred_fallthru
    _
  // Predicated region
  $region46: #{cifar_se_basic_block.1} parent=0 // pred_check
    _
  $region47: #{cifar_se_basic_block.1} parent=0 // pred_check_branch
    %2939 = sbr.rel (0) target = $region49
  $region48: #{cifar_se_basic_block.1} parent=0 // pred_region
    _
  $region49: #{cifar_se_basic_block.1} parent=0 // pred_fallthru
    _

</llo_original>
